<compile_context>
chip_gen: v7x
topology: tpu7x:2x2x1
jax: 0.10.0
libtpu: 0.0.40
codegen_flags: <defaults>
</compile_context>

<pallas_src>
import functools

import jax
import jax.numpy as jnp
from jax import lax
from jax.experimental import pallas as pl
from jax.experimental.pallas import tpu as pltpu

# ---- small ERNIE-like config ----
VOCAB = 100
HIDDEN = 32
N_LAYERS = 2
N_HEADS = 2
HEAD_DIM = HIDDEN // N_HEADS
INTERMEDIATE = 64
MAX_POS = 64
EPS = 1e-12
NEG_BIAS = -10000.0


def _full_spec(shape):
    """BlockSpec covering the whole array for a grid of (1,)."""
    nd = len(shape)
    return pl.BlockSpec(shape, lambda i, _n=nd: (0,) * _n)


# ---------------- fused in-kernel helpers (traced, VMEM-resident) ----------------

def _layer_norm(x, g, b):
    mean = jnp.mean(x, axis=-1, keepdims=True)
    xc = x - mean
    var = jnp.mean(xc * xc, axis=-1, keepdims=True)
    return xc * lax.rsqrt(var + EPS) * g + b


def _gelu(y):
    # TODO(synk): tanh-approx GELU; HF ERNIE default "gelu" is erf-exact (~1e-3 diff).
    c = jnp.float32(0.7978845608028654)  # sqrt(2/pi)
    return 0.5 * y * (1.0 + jnp.tanh(c * (y + 0.044715 * y * y * y)))


# ---------------- single fused Pallas kernel ----------------

def _ernie_kernel(B, S,
                  emb_ref, mask_ref,
                  emb_ln_g_ref, emb_ln_b_ref,
                  qkv_w_ref, qkv_b_ref,
                  o_w_ref, o_b_ref,
                  ln1_g_ref, ln1_b_ref,
                  w1_ref, b1_ref,
                  w2_ref, b2_ref,
                  ln2_g_ref, ln2_b_ref,
                  cls_ref,
                  ctx_ref):
    H, D, nH = HIDDEN, HEAD_DIM, N_HEADS
    scale = jnp.float32(1.0 / (D ** 0.5))

    # embedding LayerNorm (no fake zero residual)
    h = emb_ref[...].astype(jnp.float32)
    h = _layer_norm(h, emb_ln_g_ref[...], emb_ln_b_ref[...])

    # additive attention bias built in-kernel from the (B, S) 0/1 mask
    neg = (1.0 - mask_ref[...].astype(jnp.float32)) * jnp.float32(NEG_BIAS)  # (B, S)

    for l in range(N_LAYERS):  # statically unrolled; all weights already in VMEM
        # fused QKV projection: single (B*S, H) x (H, 3H) matmul
        qkv = (jnp.dot(h, qkv_w_ref[l], preferred_element_type=jnp.float32)
               + qkv_b_ref[l])                                   # (B*S, 3H)

        # attention per (batch, head) as static 2-D slices of the VMEM value
        for b in range(B):
            rows = slice(b * S, (b + 1) * S)
            bias = neg[b:b + 1, :]                               # (1, S) key-axis bias
            for hd in range(nH):
                q = qkv[rows, hd * D:(hd + 1) * D]               # (S, D)
                k = qkv[rows, H + hd * D:H + (hd + 1) * D]       # (S, D)
                v = qkv[rows, 2 * H + hd * D:2 * H + (hd + 1) * D]
                s = lax.dot_general(q, k, (((1,), (1,)), ((), ())),
                                    preferred_element_type=jnp.float32) * scale
                s = s + bias
                s = s - jnp.max(s, axis=-1, keepdims=True)
                p = jnp.exp(s)
                p = p * pl.reciprocal(jnp.sum(p, axis=-1, keepdims=True),
                                      approx=True)
                ctx_ref[rows, hd * D:(hd + 1) * D] = jnp.dot(
                    p, v, preferred_element_type=jnp.float32)

        attn = (jnp.dot(ctx_ref[...], o_w_ref[l],
                        preferred_element_type=jnp.float32) + o_b_ref[l])
        h = _layer_norm(attn + h, ln1_g_ref[l], ln1_b_ref[l])

        ffn = _gelu(jnp.dot(h, w1_ref[l],
                            preferred_element_type=jnp.float32) + b1_ref[l])
        ffn = jnp.dot(ffn, w2_ref[l],
                      preferred_element_type=jnp.float32) + b2_ref[l]
        h = _layer_norm(ffn + h, ln2_g_ref[l], ln2_b_ref[l])

    # CLS token = first row of each batch's sequence
    for b in range(B):
        cls_ref[b:b + 1, :] = h[b * S:b * S + 1, :].astype(cls_ref.dtype)


# ---------------- parameters & forward ----------------

def init_params(key):
    def dense(k, shape):
        return 0.02 * jax.random.normal(k, shape, dtype=jnp.float32)

    H, I, L = HIDDEN, INTERMEDIATE, N_LAYERS
    keys = jax.random.split(key, 7)
    return {
        "word_emb": dense(keys[0], (VOCAB, H)),
        "pos_emb": dense(keys[1], (MAX_POS, H)),
        "type_emb": dense(keys[2], (2, H)),
        "emb_ln_g": jnp.ones((1, H), jnp.float32),
        "emb_ln_b": jnp.zeros((1, H), jnp.float32),
        # per-layer weights stacked along a leading layer axis
        "qkv_w": dense(keys[3], (L, H, 3 * H)),
        "qkv_b": jnp.zeros((L, 1, 3 * H), jnp.float32),
        "o_w": dense(keys[4], (L, H, H)),
        "o_b": jnp.zeros((L, 1, H), jnp.float32),
        "ln1_g": jnp.ones((L, 1, H), jnp.float32),
        "ln1_b": jnp.zeros((L, 1, H), jnp.float32),
        "w1": dense(keys[5], (L, H, I)),
        "b1": jnp.zeros((L, 1, I), jnp.float32),
        "w2": dense(keys[6], (L, I, H)),
        "b2": jnp.zeros((L, 1, H), jnp.float32),
        "ln2_g": jnp.ones((L, 1, H), jnp.float32),
        "ln2_b": jnp.zeros((L, 1, H), jnp.float32),
    }


@jax.jit
def ernie_forward(params, input_ids, attention_mask):
    B, S = input_ids.shape

    # Embedding lookup (data-dependent gather) is XLA glue; everything else is Pallas.
    # TODO(synk): token_type_ids assumed all-zero (matches reference call signature).
    emb = (params["word_emb"][input_ids]
           + params["pos_emb"][:S][None, :, :]
           + params["type_emb"][0][None, None, :])
    emb = emb.reshape(B * S, HIDDEN).astype(jnp.float32)
    mask = attention_mask.astype(jnp.float32)            # (B, S) 0/1, expanded in-kernel

    in_arrays = [emb, mask,
                 params["emb_ln_g"], params["emb_ln_b"],
                 params["qkv_w"], params["qkv_b"],
                 params["o_w"], params["o_b"],
                 params["ln1_g"], params["ln1_b"],
                 params["w1"], params["b1"],
                 params["w2"], params["b2"],
                 params["ln2_g"], params["ln2_b"]]

    cls = pl.pallas_call(
        functools.partial(_ernie_kernel, B, S),
        grid=(1,),                                        # toy size: one fused VMEM-resident call
        out_shape=jax.ShapeDtypeStruct((B, HIDDEN), jnp.float32),
        in_specs=[_full_spec(a.shape) for a in in_arrays],
        out_specs=_full_spec((B, HIDDEN)),
        scratch_shapes=[pltpu.VMEM((B * S, HIDDEN), jnp.float32)],  # attention context
        compiler_params=pltpu.CompilerParams(
            dimension_semantics=("arbitrary",)),
    )(*in_arrays)
    return cls


if __name__ == "__main__":
    key = jax.random.PRNGKey(0)
    pkey, ikey = jax.random.split(key)

    B, S = 2, 8
    params = init_params(pkey)
    input_ids = jax.random.randint(ikey, (B, S), 0, VOCAB, dtype=jnp.int32)
    attention_mask = jnp.ones((B, S), dtype=jnp.int32).at[:, 6:].set(0)  # pad last 2

    cls = ernie_forward(params, input_ids, attention_mask)
    cls = jax.block_until_ready(cls)

    assert cls.shape == (B, HIDDEN), cls.shape
    assert jnp.all(jnp.isfinite(cls))
    print("KERNEL_OK")
</pallas_src>

<mosaic_0001>
module attributes {stable_mosaic.version = 11 : i64} {
  func.func @_ernie_kernel(%arg0: i32, %arg1: memref<16x32xf32, #tpu.memory_space<vmem>>, %arg2: memref<2x8xf32, #tpu.memory_space<vmem>>, %arg3: memref<1x32xf32, #tpu.memory_space<vmem>>, %arg4: memref<1x32xf32, #tpu.memory_space<vmem>>, %arg5: memref<2x32x96xf32, #tpu.memory_space<vmem>>, %arg6: memref<2x1x96xf32, #tpu.memory_space<vmem>>, %arg7: memref<2x32x32xf32, #tpu.memory_space<vmem>>, %arg8: memref<2x1x32xf32, #tpu.memory_space<vmem>>, %arg9: memref<2x1x32xf32, #tpu.memory_space<vmem>>, %arg10: memref<2x1x32xf32, #tpu.memory_space<vmem>>, %arg11: memref<2x32x64xf32, #tpu.memory_space<vmem>>, %arg12: memref<2x1x64xf32, #tpu.memory_space<vmem>>, %arg13: memref<2x64x32xf32, #tpu.memory_space<vmem>>, %arg14: memref<2x1x32xf32, #tpu.memory_space<vmem>>, %arg15: memref<2x1x32xf32, #tpu.memory_space<vmem>>, %arg16: memref<2x1x32xf32, #tpu.memory_space<vmem>>, %arg17: memref<2x32xf32, #tpu.memory_space<vmem>>, %arg18: memref<16x32xf32, #tpu.memory_space<vmem>>) attributes {dimension_semantics = [#tpu.dimension_semantics<arbitrary>], iteration_bounds = array<i64: 1>, scalar_prefetch = 0 : i64, scratch_operands = 1 : i64, tpu.core_type = #tpu.core_type<tc>, window_params = [{pipeline_mode = #tpu.pipeline_mode<synchronous>, transform_indices = @transform_0, window_bounds = array<i64: 16, 32>}, {pipeline_mode = #tpu.pipeline_mode<synchronous>, transform_indices = @transform_1, window_bounds = array<i64: 2, 8>}, {pipeline_mode = #tpu.pipeline_mode<synchronous>, transform_indices = @transform_2, window_bounds = array<i64: 1, 32>}, {pipeline_mode = #tpu.pipeline_mode<synchronous>, transform_indices = @transform_3, window_bounds = array<i64: 1, 32>}, {pipeline_mode = #tpu.pipeline_mode<synchronous>, transform_indices = @transform_4, window_bounds = array<i64: 2, 32, 96>}, {pipeline_mode = #tpu.pipeline_mode<synchronous>, transform_indices = @transform_5, window_bounds = array<i64: 2, 1, 96>}, {pipeline_mode = #tpu.pipeline_mode<synchronous>, transform_indices = @transform_6, window_bounds = array<i64: 2, 32, 32>}, {pipeline_mode = #tpu.pipeline_mode<synchronous>, transform_indices = @transform_7, window_bounds = array<i64: 2, 1, 32>}, {pipeline_mode = #tpu.pipeline_mode<synchronous>, transform_indices = @transform_8, window_bounds = array<i64: 2, 1, 32>}, {pipeline_mode = #tpu.pipeline_mode<synchronous>, transform_indices = @transform_9, window_bounds = array<i64: 2, 1, 32>}, {pipeline_mode = #tpu.pipeline_mode<synchronous>, transform_indices = @transform_10, window_bounds = array<i64: 2, 32, 64>}, {pipeline_mode = #tpu.pipeline_mode<synchronous>, transform_indices = @transform_11, window_bounds = array<i64: 2, 1, 64>}, {pipeline_mode = #tpu.pipeline_mode<synchronous>, transform_indices = @transform_12, window_bounds = array<i64: 2, 64, 32>}, {pipeline_mode = #tpu.pipeline_mode<synchronous>, transform_indices = @transform_13, window_bounds = array<i64: 2, 1, 32>}, {pipeline_mode = #tpu.pipeline_mode<synchronous>, transform_indices = @transform_14, window_bounds = array<i64: 2, 1, 32>}, {pipeline_mode = #tpu.pipeline_mode<synchronous>, transform_indices = @transform_15, window_bounds = array<i64: 2, 1, 32>}, {pipeline_mode = #tpu.pipeline_mode<synchronous>, transform_indices = @transform_16, window_bounds = array<i64: 2, 32>}]} {
    %c0 = arith.constant 0 : index
    %c0_0 = arith.constant 0 : index
    %0 = vector.load %arg1[%c0, %c0_0] : memref<16x32xf32, #tpu.memory_space<vmem>>, vector<16x32xf32>
    %c0_1 = arith.constant 0 : index
    %c0_2 = arith.constant 0 : index
    %1 = vector.load %arg3[%c0_1, %c0_2] : memref<1x32xf32, #tpu.memory_space<vmem>>, vector<1x32xf32>
    %c0_3 = arith.constant 0 : index
    %c0_4 = arith.constant 0 : index
    %2 = vector.load %arg4[%c0_3, %c0_4] : memref<1x32xf32, #tpu.memory_space<vmem>>, vector<1x32xf32>
    %cst = arith.constant dense<0.000000e+00> : vector<16xf32>
    %3 = vector.multi_reduction <add>, %0, %cst [1] : vector<16x32xf32> to vector<16xf32>
    %4 = vector.shape_cast %3 : vector<16xf32> to vector<16x1xf32>
    %cst_5 = arith.constant 3.200000e+01 : f32
    %5 = vector.broadcast %cst_5 : f32 to vector<16x1xf32>
    %6 = arith.divf %4, %5 : vector<16x1xf32>
    %7 = vector.broadcast %6 : vector<16x1xf32> to vector<16x32xf32>
    %8 = arith.subf %0, %7 : vector<16x32xf32>
    %9 = arith.mulf %8, %8 : vector<16x32xf32>
    %cst_6 = arith.constant dense<0.000000e+00> : vector<16xf32>
    %10 = vector.multi_reduction <add>, %9, %cst_6 [1] : vector<16x32xf32> to vector<16xf32>
    %11 = vector.shape_cast %10 : vector<16xf32> to vector<16x1xf32>
    %cst_7 = arith.constant 3.200000e+01 : f32
    %12 = vector.broadcast %cst_7 : f32 to vector<16x1xf32>
    %13 = arith.divf %11, %12 : vector<16x1xf32>
    %cst_8 = arith.constant 9.99999996E-13 : f32
    %14 = vector.broadcast %cst_8 : f32 to vector<16x1xf32>
    %15 = arith.addf %13, %14 : vector<16x1xf32>
    %16 = math.rsqrt %15 : vector<16x1xf32>
    %17 = vector.broadcast %16 : vector<16x1xf32> to vector<16x32xf32>
    %18 = arith.mulf %8, %17 : vector<16x32xf32>
    %19 = vector.broadcast %1 : vector<1x32xf32> to vector<16x32xf32>
    %20 = arith.mulf %18, %19 : vector<16x32xf32>
    %21 = vector.broadcast %2 : vector<1x32xf32> to vector<16x32xf32>
    %22 = arith.addf %20, %21 : vector<16x32xf32>
    %c0_9 = arith.constant 0 : index
    %c0_10 = arith.constant 0 : index
    %23 = vector.load %arg2[%c0_9, %c0_10] : memref<2x8xf32, #tpu.memory_space<vmem>>, vector<2x8xf32>
    %cst_11 = arith.constant 1.000000e+00 : f32
    %24 = vector.broadcast %cst_11 : f32 to vector<2x8xf32>
    %25 = arith.subf %24, %23 : vector<2x8xf32>
    %cst_12 = arith.constant -1.000000e+04 : f32
    %26 = vector.broadcast %cst_12 : f32 to vector<2x8xf32>
    %27 = arith.mulf %25, %26 : vector<2x8xf32>
    %c0_13 = arith.constant 0 : index
    %c0_14 = arith.constant 0 : index
    %c0_15 = arith.constant 0 : index
    %28 = vector.load %arg5[%c0_13, %c0_14, %c0_15] : memref<2x32x96xf32, #tpu.memory_space<vmem>>, vector<1x32x96xf32>
    %29 = vector.shape_cast %28 : vector<1x32x96xf32> to vector<32x96xf32>
    %cst_16 = arith.constant dense<0.000000e+00> : vector<16x96xf32>
    %30 = tpu.matmul %22, %29, %cst_16 {dimension_numbers = #tpu.dot_dimension_numbers<[1], [0], [0], [1], [0, 0, 1, 1], [], []>} : vector<16x32xf32>, vector<32x96xf32>, vector<16x96xf32> -> vector<16x96xf32>
    %c0_17 = arith.constant 0 : index
    %c0_18 = arith.constant 0 : index
    %c0_19 = arith.constant 0 : index
    %31 = vector.load %arg6[%c0_17, %c0_18, %c0_19] : memref<2x1x96xf32, #tpu.memory_space<vmem>>, vector<1x1x96xf32>
    %32 = vector.shape_cast %31 : vector<1x1x96xf32> to vector<1x96xf32>
    %33 = vector.broadcast %32 : vector<1x96xf32> to vector<16x96xf32>
    %34 = arith.addf %30, %33 : vector<16x96xf32>
    %35 = vector.extract_strided_slice %27 {offsets = [0, 0], sizes = [1, 8], strides = [1, 1]} : vector<2x8xf32> to vector<1x8xf32>
    %36 = vector.extract_strided_slice %34 {offsets = [0, 0], sizes = [8, 16], strides = [1, 1]} : vector<16x96xf32> to vector<8x16xf32>
    %37 = vector.extract_strided_slice %34 {offsets = [0, 32], sizes = [8, 16], strides = [1, 1]} : vector<16x96xf32> to vector<8x16xf32>
    %38 = vector.extract_strided_slice %34 {offsets = [0, 64], sizes = [8, 16], strides = [1, 1]} : vector<16x96xf32> to vector<8x16xf32>
    %cst_20 = arith.constant dense<0.000000e+00> : vector<8x8xf32>
    %39 = tpu.matmul %36, %37, %cst_20 {dimension_numbers = #tpu.dot_dimension_numbers<[1], [1], [0], [0], [0, 0, 1, 0], [], []>} : vector<8x16xf32>, vector<8x16xf32>, vector<8x8xf32> -> vector<8x8xf32>
    %cst_21 = arith.constant 2.500000e-01 : f32
    %40 = vector.broadcast %cst_21 : f32 to vector<8x8xf32>
    %41 = arith.mulf %39, %40 : vector<8x8xf32>
    %42 = vector.broadcast %35 : vector<1x8xf32> to vector<8x8xf32>
    %43 = arith.addf %41, %42 : vector<8x8xf32>
    %cst_22 = arith.constant dense<0xFF800000> : vector<8xf32>
    %44 = vector.multi_reduction <maximumf>, %43, %cst_22 [1] : vector<8x8xf32> to vector<8xf32>
    %45 = vector.shape_cast %44 : vector<8xf32> to vector<8x1xf32>
    %46 = vector.broadcast %45 : vector<8x1xf32> to vector<8x8xf32>
    %47 = arith.subf %43, %46 : vector<8x8xf32>
    %48 = math.exp %47 : vector<8x8xf32>
    %cst_23 = arith.constant dense<0.000000e+00> : vector<8xf32>
    %49 = vector.multi_reduction <add>, %48, %cst_23 [1] : vector<8x8xf32> to vector<8xf32>
    %50 = vector.shape_cast %49 : vector<8xf32> to vector<8x1xf32>
    %51 = tpu.reciprocal %50 {approx = true} : vector<8x1xf32> -> vector<8x1xf32>
    %52 = vector.broadcast %51 : vector<8x1xf32> to vector<8x8xf32>
    %53 = arith.mulf %48, %52 : vector<8x8xf32>
    %cst_24 = arith.constant dense<0.000000e+00> : vector<8x16xf32>
    %54 = tpu.matmul %53, %38, %cst_24 {dimension_numbers = #tpu.dot_dimension_numbers<[1], [0], [0], [1], [0, 0, 1, 1], [], []>} : vector<8x8xf32>, vector<8x16xf32>, vector<8x16xf32> -> vector<8x16xf32>
    %c0_25 = arith.constant 0 : index
    %c0_26 = arith.constant 0 : index
    %55 = vector.load %arg18[%c0_25, %c0_26] : memref<16x32xf32, #tpu.memory_space<vmem>>, vector<8x16xf32>
    tpu.vector_store %arg18[%c0_25, %c0_26], %54 {strides = array<i32>} : memref<16x32xf32, #tpu.memory_space<vmem>>, vector<8x16xf32>,
    %56 = vector.extract_strided_slice %34 {offsets = [0, 16], sizes = [8, 16], strides = [1, 1]} : vector<16x96xf32> to vector<8x16xf32>
    %57 = vector.extract_strided_slice %34 {offsets = [0, 48], sizes = [8, 16], strides = [1, 1]} : vector<16x96xf32> to vector<8x16xf32>
    %58 = vector.extract_strided_slice %34 {offsets = [0, 80], sizes = [8, 16], strides = [1, 1]} : vector<16x96xf32> to vector<8x16xf32>
    %cst_27 = arith.constant dense<0.000000e+00> : vector<8x8xf32>
    %59 = tpu.matmul %56, %57, %cst_27 {dimension_numbers = #tpu.dot_dimension_numbers<[1], [1], [0], [0], [0, 0, 1, 0], [], []>} : vector<8x16xf32>, vector<8x16xf32>, vector<8x8xf32> -> vector<8x8xf32>
    %cst_28 = arith.constant 2.500000e-01 : f32
    %60 = vector.broadcast %cst_28 : f32 to vector<8x8xf32>
    %61 = arith.mulf %59, %60 : vector<8x8xf32>
    %62 = vector.broadcast %35 : vector<1x8xf32> to vector<8x8xf32>
    %63 = arith.addf %61, %62 : vector<8x8xf32>
    %cst_29 = arith.constant dense<0xFF800000> : vector<8xf32>
    %64 = vector.multi_reduction <maximumf>, %63, %cst_29 [1] : vector<8x8xf32> to vector<8xf32>
    %65 = vector.shape_cast %64 : vector<8xf32> to vector<8x1xf32>
    %66 = vector.broadcast %65 : vector<8x1xf32> to vector<8x8xf32>
    %67 = arith.subf %63, %66 : vector<8x8xf32>
    %68 = math.exp %67 : vector<8x8xf32>
    %cst_30 = arith.constant dense<0.000000e+00> : vector<8xf32>
    %69 = vector.multi_reduction <add>, %68, %cst_30 [1] : vector<8x8xf32> to vector<8xf32>
    %70 = vector.shape_cast %69 : vector<8xf32> to vector<8x1xf32>
    %71 = tpu.reciprocal %70 {approx = true} : vector<8x1xf32> -> vector<8x1xf32>
    %72 = vector.broadcast %71 : vector<8x1xf32> to vector<8x8xf32>
    %73 = arith.mulf %68, %72 : vector<8x8xf32>
    %cst_31 = arith.constant dense<0.000000e+00> : vector<8x16xf32>
    %74 = tpu.matmul %73, %58, %cst_31 {dimension_numbers = #tpu.dot_dimension_numbers<[1], [0], [0], [1], [0, 0, 1, 1], [], []>} : vector<8x8xf32>, vector<8x16xf32>, vector<8x16xf32> -> vector<8x16xf32>
    %c0_32 = arith.constant 0 : index
    %c16 = arith.constant 16 : index
    %75 = vector.load %arg18[%c0_32, %c16] : memref<16x32xf32, #tpu.memory_space<vmem>>, vector<8x16xf32>
    tpu.vector_store %arg18[%c0_32, %c16], %74 {strides = array<i32>} : memref<16x32xf32, #tpu.memory_space<vmem>>, vector<8x16xf32>,
    %76 = vector.extract_strided_slice %27 {offsets = [1, 0], sizes = [1, 8], strides = [1, 1]} : vector<2x8xf32> to vector<1x8xf32>
    %77 = vector.extract_strided_slice %34 {offsets = [8, 0], sizes = [8, 16], strides = [1, 1]} : vector<16x96xf32> to vector<8x16xf32>
    %78 = vector.extract_strided_slice %34 {offsets = [8, 32], sizes = [8, 16], strides = [1, 1]} : vector<16x96xf32> to vector<8x16xf32>
    %79 = vector.extract_strided_slice %34 {offsets = [8, 64], sizes = [8, 16], strides = [1, 1]} : vector<16x96xf32> to vector<8x16xf32>
    %cst_33 = arith.constant dense<0.000000e+00> : vector<8x8xf32>
    %80 = tpu.matmul %77, %78, %cst_33 {dimension_numbers = #tpu.dot_dimension_numbers<[1], [1], [0], [0], [0, 0, 1, 0], [], []>} : vector<8x16xf32>, vector<8x16xf32>, vector<8x8xf32> -> vector<8x8xf32>
    %cst_34 = arith.constant 2.500000e-01 : f32
    %81 = vector.broadcast %cst_34 : f32 to vector<8x8xf32>
    %82 = arith.mulf %80, %81 : vector<8x8xf32>
    %83 = vector.broadcast %76 : vector<1x8xf32> to vector<8x8xf32>
    %84 = arith.addf %82, %83 : vector<8x8xf32>
    %cst_35 = arith.constant dense<0xFF800000> : vector<8xf32>
    %85 = vector.multi_reduction <maximumf>, %84, %cst_35 [1] : vector<8x8xf32> to vector<8xf32>
    %86 = vector.shape_cast %85 : vector<8xf32> to vector<8x1xf32>
    %87 = vector.broadcast %86 : vector<8x1xf32> to vector<8x8xf32>
    %88 = arith.subf %84, %87 : vector<8x8xf32>
    %89 = math.exp %88 : vector<8x8xf32>
    %cst_36 = arith.constant dense<0.000000e+00> : vector<8xf32>
    %90 = vector.multi_reduction <add>, %89, %cst_36 [1] : vector<8x8xf32> to vector<8xf32>
    %91 = vector.shape_cast %90 : vector<8xf32> to vector<8x1xf32>
    %92 = tpu.reciprocal %91 {approx = true} : vector<8x1xf32> -> vector<8x1xf32>
    %93 = vector.broadcast %92 : vector<8x1xf32> to vector<8x8xf32>
    %94 = arith.mulf %89, %93 : vector<8x8xf32>
    %cst_37 = arith.constant dense<0.000000e+00> : vector<8x16xf32>
    %95 = tpu.matmul %94, %79, %cst_37 {dimension_numbers = #tpu.dot_dimension_numbers<[1], [0], [0], [1], [0, 0, 1, 1], [], []>} : vector<8x8xf32>, vector<8x16xf32>, vector<8x16xf32> -> vector<8x16xf32>
    %c8 = arith.constant 8 : index
    %c0_38 = arith.constant 0 : index
    %96 = vector.load %arg18[%c8, %c0_38] : memref<16x32xf32, #tpu.memory_space<vmem>>, vector<8x16xf32>
    tpu.vector_store %arg18[%c8, %c0_38], %95 {strides = array<i32>} : memref<16x32xf32, #tpu.memory_space<vmem>>, vector<8x16xf32>,
    %97 = vector.extract_strided_slice %34 {offsets = [8, 16], sizes = [8, 16], strides = [1, 1]} : vector<16x96xf32> to vector<8x16xf32>
    %98 = vector.extract_strided_slice %34 {offsets = [8, 48], sizes = [8, 16], strides = [1, 1]} : vector<16x96xf32> to vector<8x16xf32>
    %99 = vector.extract_strided_slice %34 {offsets = [8, 80], sizes = [8, 16], strides = [1, 1]} : vector<16x96xf32> to vector<8x16xf32>
    %cst_39 = arith.constant dense<0.000000e+00> : vector<8x8xf32>
    %100 = tpu.matmul %97, %98, %cst_39 {dimension_numbers = #tpu.dot_dimension_numbers<[1], [1], [0], [0], [0, 0, 1, 0], [], []>} : vector<8x16xf32>, vector<8x16xf32>, vector<8x8xf32> -> vector<8x8xf32>
    %cst_40 = arith.constant 2.500000e-01 : f32
    %101 = vector.broadcast %cst_40 : f32 to vector<8x8xf32>
    %102 = arith.mulf %100, %101 : vector<8x8xf32>
    %103 = vector.broadcast %76 : vector<1x8xf32> to vector<8x8xf32>
    %104 = arith.addf %102, %103 : vector<8x8xf32>
    %cst_41 = arith.constant dense<0xFF800000> : vector<8xf32>
    %105 = vector.multi_reduction <maximumf>, %104, %cst_41 [1] : vector<8x8xf32> to vector<8xf32>
    %106 = vector.shape_cast %105 : vector<8xf32> to vector<8x1xf32>
    %107 = vector.broadcast %106 : vector<8x1xf32> to vector<8x8xf32>
    %108 = arith.subf %104, %107 : vector<8x8xf32>
    %109 = math.exp %108 : vector<8x8xf32>
    %cst_42 = arith.constant dense<0.000000e+00> : vector<8xf32>
    %110 = vector.multi_reduction <add>, %109, %cst_42 [1] : vector<8x8xf32> to vector<8xf32>
    %111 = vector.shape_cast %110 : vector<8xf32> to vector<8x1xf32>
    %112 = tpu.reciprocal %111 {approx = true} : vector<8x1xf32> -> vector<8x1xf32>
    %113 = vector.broadcast %112 : vector<8x1xf32> to vector<8x8xf32>
    %114 = arith.mulf %109, %113 : vector<8x8xf32>
    %cst_43 = arith.constant dense<0.000000e+00> : vector<8x16xf32>
    %115 = tpu.matmul %114, %99, %cst_43 {dimension_numbers = #tpu.dot_dimension_numbers<[1], [0], [0], [1], [0, 0, 1, 1], [], []>} : vector<8x8xf32>, vector<8x16xf32>, vector<8x16xf32> -> vector<8x16xf32>
    %c8_44 = arith.constant 8 : index
    %c16_45 = arith.constant 16 : index
    %116 = vector.load %arg18[%c8_44, %c16_45] : memref<16x32xf32, #tpu.memory_space<vmem>>, vector<8x16xf32>
    tpu.vector_store %arg18[%c8_44, %c16_45], %115 {strides = array<i32>} : memref<16x32xf32, #tpu.memory_space<vmem>>, vector<8x16xf32>,
    %c0_46 = arith.constant 0 : index
    %c0_47 = arith.constant 0 : index
    %117 = vector.load %arg18[%c0_46, %c0_47] : memref<16x32xf32, #tpu.memory_space<vmem>>, vector<16x32xf32>
    %c0_48 = arith.constant 0 : index
    %c0_49 = arith.constant 0 : index
    %c0_50 = arith.constant 0 : index
    %118 = vector.load %arg7[%c0_48, %c0_49, %c0_50] : memref<2x32x32xf32, #tpu.memory_space<vmem>>, vector<1x32x32xf32>
    %119 = vector.shape_cast %118 : vector<1x32x32xf32> to vector<32x32xf32>
    %cst_51 = arith.constant dense<0.000000e+00> : vector<16x32xf32>
    %120 = tpu.matmul %117, %119, %cst_51 {dimension_numbers = #tpu.dot_dimension_numbers<[1], [0], [0], [1], [0, 0, 1, 1], [], []>} : vector<16x32xf32>, vector<32x32xf32>, vector<16x32xf32> -> vector<16x32xf32>
    %c0_52 = arith.constant 0 : index
    %c0_53 = arith.constant 0 : index
    %c0_54 = arith.constant 0 : index
    %121 = vector.load %arg8[%c0_52, %c0_53, %c0_54] : memref<2x1x32xf32, #tpu.memory_space<vmem>>, vector<1x1x32xf32>
    %122 = vector.shape_cast %121 : vector<1x1x32xf32> to vector<1x32xf32>
    %123 = vector.broadcast %122 : vector<1x32xf32> to vector<16x32xf32>
    %124 = arith.addf %120, %123 : vector<16x32xf32>
    %125 = arith.addf %124, %22 : vector<16x32xf32>
    %c0_55 = arith.constant 0 : index
    %c0_56 = arith.constant 0 : index
    %c0_57 = arith.constant 0 : index
    %126 = vector.load %arg9[%c0_55, %c0_56, %c0_57] : memref<2x1x32xf32, #tpu.memory_space<vmem>>, vector<1x1x32xf32>
    %127 = vector.shape_cast %126 : vector<1x1x32xf32> to vector<1x32xf32>
    %c0_58 = arith.constant 0 : index
    %c0_59 = arith.constant 0 : index
    %c0_60 = arith.constant 0 : index
    %128 = vector.load %arg10[%c0_58, %c0_59, %c0_60] : memref<2x1x32xf32, #tpu.memory_space<vmem>>, vector<1x1x32xf32>
    %129 = vector.shape_cast %128 : vector<1x1x32xf32> to vector<1x32xf32>
    %cst_61 = arith.constant dense<0.000000e+00> : vector<16xf32>
    %130 = vector.multi_reduction <add>, %125, %cst_61 [1] : vector<16x32xf32> to vector<16xf32>
    %131 = vector.shape_cast %130 : vector<16xf32> to vector<16x1xf32>
    %cst_62 = arith.constant 3.200000e+01 : f32
    %132 = vector.broadcast %cst_62 : f32 to vector<16x1xf32>
    %133 = arith.divf %131, %132 : vector<16x1xf32>
    %134 = vector.broadcast %133 : vector<16x1xf32> to vector<16x32xf32>
    %135 = arith.subf %125, %134 : vector<16x32xf32>
    %136 = arith.mulf %135, %135 : vector<16x32xf32>
    %cst_63 = arith.constant dense<0.000000e+00> : vector<16xf32>
    %137 = vector.multi_reduction <add>, %136, %cst_63 [1] : vector<16x32xf32> to vector<16xf32>
    %138 = vector.shape_cast %137 : vector<16xf32> to vector<16x1xf32>
    %cst_64 = arith.constant 3.200000e+01 : f32
    %139 = vector.broadcast %cst_64 : f32 to vector<16x1xf32>
    %140 = arith.divf %138, %139 : vector<16x1xf32>
    %cst_65 = arith.constant 9.99999996E-13 : f32
    %141 = vector.broadcast %cst_65 : f32 to vector<16x1xf32>
    %142 = arith.addf %140, %141 : vector<16x1xf32>
    %143 = math.rsqrt %142 : vector<16x1xf32>
    %144 = vector.broadcast %143 : vector<16x1xf32> to vector<16x32xf32>
    %145 = arith.mulf %135, %144 : vector<16x32xf32>
    %146 = vector.broadcast %127 : vector<1x32xf32> to vector<16x32xf32>
    %147 = arith.mulf %145, %146 : vector<16x32xf32>
    %148 = vector.broadcast %129 : vector<1x32xf32> to vector<16x32xf32>
    %149 = arith.addf %147, %148 : vector<16x32xf32>
    %c0_66 = arith.constant 0 : index
    %c0_67 = arith.constant 0 : index
    %c0_68 = arith.constant 0 : index
    %150 = vector.load %arg11[%c0_66, %c0_67, %c0_68] : memref<2x32x64xf32, #tpu.memory_space<vmem>>, vector<1x32x64xf32>
    %151 = vector.shape_cast %150 : vector<1x32x64xf32> to vector<32x64xf32>
    %cst_69 = arith.constant dense<0.000000e+00> : vector<16x64xf32>
    %152 = tpu.matmul %149, %151, %cst_69 {dimension_numbers = #tpu.dot_dimension_numbers<[1], [0], [0], [1], [0, 0, 1, 1], [], []>} : vector<16x32xf32>, vector<32x64xf32>, vector<16x64xf32> -> vector<16x64xf32>
    %c0_70 = arith.constant 0 : index
    %c0_71 = arith.constant 0 : index
    %c0_72 = arith.constant 0 : index
    %153 = vector.load %arg12[%c0_70, %c0_71, %c0_72] : memref<2x1x64xf32, #tpu.memory_space<vmem>>, vector<1x1x64xf32>
    %154 = vector.shape_cast %153 : vector<1x1x64xf32> to vector<1x64xf32>
    %155 = vector.broadcast %154 : vector<1x64xf32> to vector<16x64xf32>
    %156 = arith.addf %152, %155 : vector<16x64xf32>
    %cst_73 = arith.constant 5.000000e-01 : f32
    %157 = vector.broadcast %cst_73 : f32 to vector<16x64xf32>
    %158 = arith.mulf %157, %156 : vector<16x64xf32>
    %cst_74 = arith.constant 4.471500e-02 : f32
    %159 = vector.broadcast %cst_74 : f32 to vector<16x64xf32>
    %160 = arith.mulf %159, %156 : vector<16x64xf32>
    %161 = arith.mulf %160, %156 : vector<16x64xf32>
    %162 = arith.mulf %161, %156 : vector<16x64xf32>
    %163 = arith.addf %156, %162 : vector<16x64xf32>
    %cst_75 = arith.constant 0.797884583 : f32
    %164 = vector.broadcast %cst_75 : f32 to vector<16x64xf32>
    %165 = arith.mulf %164, %163 : vector<16x64xf32>
    %166 = math.tanh %165 : vector<16x64xf32>
    %cst_76 = arith.constant 1.000000e+00 : f32
    %167 = vector.broadcast %cst_76 : f32 to vector<16x64xf32>
    %168 = arith.addf %167, %166 : vector<16x64xf32>
    %169 = arith.mulf %158, %168 : vector<16x64xf32>
    %c0_77 = arith.constant 0 : index
    %c0_78 = arith.constant 0 : index
    %c0_79 = arith.constant 0 : index
    %170 = vector.load %arg13[%c0_77, %c0_78, %c0_79] : memref<2x64x32xf32, #tpu.memory_space<vmem>>, vector<1x64x32xf32>
    %171 = vector.shape_cast %170 : vector<1x64x32xf32> to vector<64x32xf32>
    %cst_80 = arith.constant dense<0.000000e+00> : vector<16x32xf32>
    %172 = tpu.matmul %169, %171, %cst_80 {dimension_numbers = #tpu.dot_dimension_numbers<[1], [0], [0], [1], [0, 0, 1, 1], [], []>} : vector<16x64xf32>, vector<64x32xf32>, vector<16x32xf32> -> vector<16x32xf32>
    %c0_81 = arith.constant 0 : index
    %c0_82 = arith.constant 0 : index
    %c0_83 = arith.constant 0 : index
    %173 = vector.load %arg14[%c0_81, %c0_82, %c0_83] : memref<2x1x32xf32, #tpu.memory_space<vmem>>, vector<1x1x32xf32>
    %174 = vector.shape_cast %173 : vector<1x1x32xf32> to vector<1x32xf32>
    %175 = vector.broadcast %174 : vector<1x32xf32> to vector<16x32xf32>
    %176 = arith.addf %172, %175 : vector<16x32xf32>
    %177 = arith.addf %176, %149 : vector<16x32xf32>
    %c0_84 = arith.constant 0 : index
    %c0_85 = arith.constant 0 : index
    %c0_86 = arith.constant 0 : index
    %178 = vector.load %arg15[%c0_84, %c0_85, %c0_86] : memref<2x1x32xf32, #tpu.memory_space<vmem>>, vector<1x1x32xf32>
    %179 = vector.shape_cast %178 : vector<1x1x32xf32> to vector<1x32xf32>
    %c0_87 = arith.constant 0 : index
    %c0_88 = arith.constant 0 : index
    %c0_89 = arith.constant 0 : index
    %180 = vector.load %arg16[%c0_87, %c0_88, %c0_89] : memref<2x1x32xf32, #tpu.memory_space<vmem>>, vector<1x1x32xf32>
    %181 = vector.shape_cast %180 : vector<1x1x32xf32> to vector<1x32xf32>
    %cst_90 = arith.constant dense<0.000000e+00> : vector<16xf32>
    %182 = vector.multi_reduction <add>, %177, %cst_90 [1] : vector<16x32xf32> to vector<16xf32>
    %183 = vector.shape_cast %182 : vector<16xf32> to vector<16x1xf32>
    %cst_91 = arith.constant 3.200000e+01 : f32
    %184 = vector.broadcast %cst_91 : f32 to vector<16x1xf32>
    %185 = arith.divf %183, %184 : vector<16x1xf32>
    %186 = vector.broadcast %185 : vector<16x1xf32> to vector<16x32xf32>
    %187 = arith.subf %177, %186 : vector<16x32xf32>
    %188 = arith.mulf %187, %187 : vector<16x32xf32>
    %cst_92 = arith.constant dense<0.000000e+00> : vector<16xf32>
    %189 = vector.multi_reduction <add>, %188, %cst_92 [1] : vector<16x32xf32> to vector<16xf32>
    %190 = vector.shape_cast %189 : vector<16xf32> to vector<16x1xf32>
    %cst_93 = arith.constant 3.200000e+01 : f32
    %191 = vector.broadcast %cst_93 : f32 to vector<16x1xf32>
    %192 = arith.divf %190, %191 : vector<16x1xf32>
    %cst_94 = arith.constant 9.99999996E-13 : f32
    %193 = vector.broadcast %cst_94 : f32 to vector<16x1xf32>
    %194 = arith.addf %192, %193 : vector<16x1xf32>
    %195 = math.rsqrt %194 : vector<16x1xf32>
    %196 = vector.broadcast %195 : vector<16x1xf32> to vector<16x32xf32>
    %197 = arith.mulf %187, %196 : vector<16x32xf32>
    %198 = vector.broadcast %179 : vector<1x32xf32> to vector<16x32xf32>
    %199 = arith.mulf %197, %198 : vector<16x32xf32>
    %200 = vector.broadcast %181 : vector<1x32xf32> to vector<16x32xf32>
    %201 = arith.addf %199, %200 : vector<16x32xf32>
    %c1 = arith.constant 1 : index
    %c0_95 = arith.constant 0 : index
    %c0_96 = arith.constant 0 : index
    %202 = vector.load %arg5[%c1, %c0_95, %c0_96] : memref<2x32x96xf32, #tpu.memory_space<vmem>>, vector<1x32x96xf32>
    %203 = vector.shape_cast %202 : vector<1x32x96xf32> to vector<32x96xf32>
    %cst_97 = arith.constant dense<0.000000e+00> : vector<16x96xf32>
    %204 = tpu.matmul %201, %203, %cst_97 {dimension_numbers = #tpu.dot_dimension_numbers<[1], [0], [0], [1], [0, 0, 1, 1], [], []>} : vector<16x32xf32>, vector<32x96xf32>, vector<16x96xf32> -> vector<16x96xf32>
    %c1_98 = arith.constant 1 : index
    %c0_99 = arith.constant 0 : index
    %c0_100 = arith.constant 0 : index
    %205 = vector.load %arg6[%c1_98, %c0_99, %c0_100] : memref<2x1x96xf32, #tpu.memory_space<vmem>>, vector<1x1x96xf32>
    %206 = vector.shape_cast %205 : vector<1x1x96xf32> to vector<1x96xf32>
    %207 = vector.broadcast %206 : vector<1x96xf32> to vector<16x96xf32>
    %208 = arith.addf %204, %207 : vector<16x96xf32>
    %209 = vector.extract_strided_slice %27 {offsets = [0, 0], sizes = [1, 8], strides = [1, 1]} : vector<2x8xf32> to vector<1x8xf32>
    %210 = vector.extract_strided_slice %208 {offsets = [0, 0], sizes = [8, 16], strides = [1, 1]} : vector<16x96xf32> to vector<8x16xf32>
    %211 = vector.extract_strided_slice %208 {offsets = [0, 32], sizes = [8, 16], strides = [1, 1]} : vector<16x96xf32> to vector<8x16xf32>
    %212 = vector.extract_strided_slice %208 {offsets = [0, 64], sizes = [8, 16], strides = [1, 1]} : vector<16x96xf32> to vector<8x16xf32>
    %cst_101 = arith.constant dense<0.000000e+00> : vector<8x8xf32>
    %213 = tpu.matmul %210, %211, %cst_101 {dimension_numbers = #tpu.dot_dimension_numbers<[1], [1], [0], [0], [0, 0, 1, 0], [], []>} : vector<8x16xf32>, vector<8x16xf32>, vector<8x8xf32> -> vector<8x8xf32>
    %cst_102 = arith.constant 2.500000e-01 : f32
    %214 = vector.broadcast %cst_102 : f32 to vector<8x8xf32>
    %215 = arith.mulf %213, %214 : vector<8x8xf32>
    %216 = vector.broadcast %209 : vector<1x8xf32> to vector<8x8xf32>
    %217 = arith.addf %215, %216 : vector<8x8xf32>
    %cst_103 = arith.constant dense<0xFF800000> : vector<8xf32>
    %218 = vector.multi_reduction <maximumf>, %217, %cst_103 [1] : vector<8x8xf32> to vector<8xf32>
    %219 = vector.shape_cast %218 : vector<8xf32> to vector<8x1xf32>
    %220 = vector.broadcast %219 : vector<8x1xf32> to vector<8x8xf32>
    %221 = arith.subf %217, %220 : vector<8x8xf32>
    %222 = math.exp %221 : vector<8x8xf32>
    %cst_104 = arith.constant dense<0.000000e+00> : vector<8xf32>
    %223 = vector.multi_reduction <add>, %222, %cst_104 [1] : vector<8x8xf32> to vector<8xf32>
    %224 = vector.shape_cast %223 : vector<8xf32> to vector<8x1xf32>
    %225 = tpu.reciprocal %224 {approx = true} : vector<8x1xf32> -> vector<8x1xf32>
    %226 = vector.broadcast %225 : vector<8x1xf32> to vector<8x8xf32>
    %227 = arith.mulf %222, %226 : vector<8x8xf32>
    %cst_105 = arith.constant dense<0.000000e+00> : vector<8x16xf32>
    %228 = tpu.matmul %227, %212, %cst_105 {dimension_numbers = #tpu.dot_dimension_numbers<[1], [0], [0], [1], [0, 0, 1, 1], [], []>} : vector<8x8xf32>, vector<8x16xf32>, vector<8x16xf32> -> vector<8x16xf32>
    %c0_106 = arith.constant 0 : index
    %c0_107 = arith.constant 0 : index
    %229 = vector.load %arg18[%c0_106, %c0_107] : memref<16x32xf32, #tpu.memory_space<vmem>>, vector<8x16xf32>
    tpu.vector_store %arg18[%c0_106, %c0_107], %228 {strides = array<i32>} : memref<16x32xf32, #tpu.memory_space<vmem>>, vector<8x16xf32>,
    %230 = vector.extract_strided_slice %208 {offsets = [0, 16], sizes = [8, 16], strides = [1, 1]} : vector<16x96xf32> to vector<8x16xf32>
    %231 = vector.extract_strided_slice %208 {offsets = [0, 48], sizes = [8, 16], strides = [1, 1]} : vector<16x96xf32> to vector<8x16xf32>
    %232 = vector.extract_strided_slice %208 {offsets = [0, 80], sizes = [8, 16], strides = [1, 1]} : vector<16x96xf32> to vector<8x16xf32>
    %cst_108 = arith.constant dense<0.000000e+00> : vector<8x8xf32>
    %233 = tpu.matmul %230, %231, %cst_108 {dimension_numbers = #tpu.dot_dimension_numbers<[1], [1], [0], [0], [0, 0, 1, 0], [], []>} : vector<8x16xf32>, vector<8x16xf32>, vector<8x8xf32> -> vector<8x8xf32>
    %cst_109 = arith.constant 2.500000e-01 : f32
    %234 = vector.broadcast %cst_109 : f32 to vector<8x8xf32>
    %235 = arith.mulf %233, %234 : vector<8x8xf32>
    %236 = vector.broadcast %209 : vector<1x8xf32> to vector<8x8xf32>
    %237 = arith.addf %235, %236 : vector<8x8xf32>
    %cst_110 = arith.constant dense<0xFF800000> : vector<8xf32>
    %238 = vector.multi_reduction <maximumf>, %237, %cst_110 [1] : vector<8x8xf32> to vector<8xf32>
    %239 = vector.shape_cast %238 : vector<8xf32> to vector<8x1xf32>
    %240 = vector.broadcast %239 : vector<8x1xf32> to vector<8x8xf32>
    %241 = arith.subf %237, %240 : vector<8x8xf32>
    %242 = math.exp %241 : vector<8x8xf32>
    %cst_111 = arith.constant dense<0.000000e+00> : vector<8xf32>
    %243 = vector.multi_reduction <add>, %242, %cst_111 [1] : vector<8x8xf32> to vector<8xf32>
    %244 = vector.shape_cast %243 : vector<8xf32> to vector<8x1xf32>
    %245 = tpu.reciprocal %244 {approx = true} : vector<8x1xf32> -> vector<8x1xf32>
    %246 = vector.broadcast %245 : vector<8x1xf32> to vector<8x8xf32>
    %247 = arith.mulf %242, %246 : vector<8x8xf32>
    %cst_112 = arith.constant dense<0.000000e+00> : vector<8x16xf32>
    %248 = tpu.matmul %247, %232, %cst_112 {dimension_numbers = #tpu.dot_dimension_numbers<[1], [0], [0], [1], [0, 0, 1, 1], [], []>} : vector<8x8xf32>, vector<8x16xf32>, vector<8x16xf32> -> vector<8x16xf32>
    %c0_113 = arith.constant 0 : index
    %c16_114 = arith.constant 16 : index
    %249 = vector.load %arg18[%c0_113, %c16_114] : memref<16x32xf32, #tpu.memory_space<vmem>>, vector<8x16xf32>
    tpu.vector_store %arg18[%c0_113, %c16_114], %248 {strides = array<i32>} : memref<16x32xf32, #tpu.memory_space<vmem>>, vector<8x16xf32>,
    %250 = vector.extract_strided_slice %27 {offsets = [1, 0], sizes = [1, 8], strides = [1, 1]} : vector<2x8xf32> to vector<1x8xf32>
    %251 = vector.extract_strided_slice %208 {offsets = [8, 0], sizes = [8, 16], strides = [1, 1]} : vector<16x96xf32> to vector<8x16xf32>
    %252 = vector.extract_strided_slice %208 {offsets = [8, 32], sizes = [8, 16], strides = [1, 1]} : vector<16x96xf32> to vector<8x16xf32>
    %253 = vector.extract_strided_slice %208 {offsets = [8, 64], sizes = [8, 16], strides = [1, 1]} : vector<16x96xf32> to vector<8x16xf32>
    %cst_115 = arith.constant dense<0.000000e+00> : vector<8x8xf32>
    %254 = tpu.matmul %251, %252, %cst_115 {dimension_numbers = #tpu.dot_dimension_numbers<[1], [1], [0], [0], [0, 0, 1, 0], [], []>} : vector<8x16xf32>, vector<8x16xf32>, vector<8x8xf32> -> vector<8x8xf32>
    %cst_116 = arith.constant 2.500000e-01 : f32
    %255 = vector.broadcast %cst_116 : f32 to vector<8x8xf32>
    %256 = arith.mulf %254, %255 : vector<8x8xf32>
    %257 = vector.broadcast %250 : vector<1x8xf32> to vector<8x8xf32>
    %258 = arith.addf %256, %257 : vector<8x8xf32>
    %cst_117 = arith.constant dense<0xFF800000> : vector<8xf32>
    %259 = vector.multi_reduction <maximumf>, %258, %cst_117 [1] : vector<8x8xf32> to vector<8xf32>
    %260 = vector.shape_cast %259 : vector<8xf32> to vector<8x1xf32>
    %261 = vector.broadcast %260 : vector<8x1xf32> to vector<8x8xf32>
    %262 = arith.subf %258, %261 : vector<8x8xf32>
    %263 = math.exp %262 : vector<8x8xf32>
    %cst_118 = arith.constant dense<0.000000e+00> : vector<8xf32>
    %264 = vector.multi_reduction <add>, %263, %cst_118 [1] : vector<8x8xf32> to vector<8xf32>
    %265 = vector.shape_cast %264 : vector<8xf32> to vector<8x1xf32>
    %266 = tpu.reciprocal %265 {approx = true} : vector<8x1xf32> -> vector<8x1xf32>
    %267 = vector.broadcast %266 : vector<8x1xf32> to vector<8x8xf32>
    %268 = arith.mulf %263, %267 : vector<8x8xf32>
    %cst_119 = arith.constant dense<0.000000e+00> : vector<8x16xf32>
    %269 = tpu.matmul %268, %253, %cst_119 {dimension_numbers = #tpu.dot_dimension_numbers<[1], [0], [0], [1], [0, 0, 1, 1], [], []>} : vector<8x8xf32>, vector<8x16xf32>, vector<8x16xf32> -> vector<8x16xf32>
    %c8_120 = arith.constant 8 : index
    %c0_121 = arith.constant 0 : index
    %270 = vector.load %arg18[%c8_120, %c0_121] : memref<16x32xf32, #tpu.memory_space<vmem>>, vector<8x16xf32>
    tpu.vector_store %arg18[%c8_120, %c0_121], %269 {strides = array<i32>} : memref<16x32xf32, #tpu.memory_space<vmem>>, vector<8x16xf32>,
    %271 = vector.extract_strided_slice %208 {offsets = [8, 16], sizes = [8, 16], strides = [1, 1]} : vector<16x96xf32> to vector<8x16xf32>
    %272 = vector.extract_strided_slice %208 {offsets = [8, 48], sizes = [8, 16], strides = [1, 1]} : vector<16x96xf32> to vector<8x16xf32>
    %273 = vector.extract_strided_slice %208 {offsets = [8, 80], sizes = [8, 16], strides = [1, 1]} : vector<16x96xf32> to vector<8x16xf32>
    %cst_122 = arith.constant dense<0.000000e+00> : vector<8x8xf32>
    %274 = tpu.matmul %271, %272, %cst_122 {dimension_numbers = #tpu.dot_dimension_numbers<[1], [1], [0], [0], [0, 0, 1, 0], [], []>} : vector<8x16xf32>, vector<8x16xf32>, vector<8x8xf32> -> vector<8x8xf32>
    %cst_123 = arith.constant 2.500000e-01 : f32
    %275 = vector.broadcast %cst_123 : f32 to vector<8x8xf32>
    %276 = arith.mulf %274, %275 : vector<8x8xf32>
    %277 = vector.broadcast %250 : vector<1x8xf32> to vector<8x8xf32>
    %278 = arith.addf %276, %277 : vector<8x8xf32>
    %cst_124 = arith.constant dense<0xFF800000> : vector<8xf32>
    %279 = vector.multi_reduction <maximumf>, %278, %cst_124 [1] : vector<8x8xf32> to vector<8xf32>
    %280 = vector.shape_cast %279 : vector<8xf32> to vector<8x1xf32>
    %281 = vector.broadcast %280 : vector<8x1xf32> to vector<8x8xf32>
    %282 = arith.subf %278, %281 : vector<8x8xf32>
    %283 = math.exp %282 : vector<8x8xf32>
    %cst_125 = arith.constant dense<0.000000e+00> : vector<8xf32>
    %284 = vector.multi_reduction <add>, %283, %cst_125 [1] : vector<8x8xf32> to vector<8xf32>
    %285 = vector.shape_cast %284 : vector<8xf32> to vector<8x1xf32>
    %286 = tpu.reciprocal %285 {approx = true} : vector<8x1xf32> -> vector<8x1xf32>
    %287 = vector.broadcast %286 : vector<8x1xf32> to vector<8x8xf32>
    %288 = arith.mulf %283, %287 : vector<8x8xf32>
    %cst_126 = arith.constant dense<0.000000e+00> : vector<8x16xf32>
    %289 = tpu.matmul %288, %273, %cst_126 {dimension_numbers = #tpu.dot_dimension_numbers<[1], [0], [0], [1], [0, 0, 1, 1], [], []>} : vector<8x8xf32>, vector<8x16xf32>, vector<8x16xf32> -> vector<8x16xf32>
    %c8_127 = arith.constant 8 : index
    %c16_128 = arith.constant 16 : index
    %290 = vector.load %arg18[%c8_127, %c16_128] : memref<16x32xf32, #tpu.memory_space<vmem>>, vector<8x16xf32>
    tpu.vector_store %arg18[%c8_127, %c16_128], %289 {strides = array<i32>} : memref<16x32xf32, #tpu.memory_space<vmem>>, vector<8x16xf32>,
    %c0_129 = arith.constant 0 : index
    %c0_130 = arith.constant 0 : index
    %291 = vector.load %arg18[%c0_129, %c0_130] : memref<16x32xf32, #tpu.memory_space<vmem>>, vector<16x32xf32>
    %c1_131 = arith.constant 1 : index
    %c0_132 = arith.constant 0 : index
    %c0_133 = arith.constant 0 : index
    %292 = vector.load %arg7[%c1_131, %c0_132, %c0_133] : memref<2x32x32xf32, #tpu.memory_space<vmem>>, vector<1x32x32xf32>
    %293 = vector.shape_cast %292 : vector<1x32x32xf32> to vector<32x32xf32>
    %cst_134 = arith.constant dense<0.000000e+00> : vector<16x32xf32>
    %294 = tpu.matmul %291, %293, %cst_134 {dimension_numbers = #tpu.dot_dimension_numbers<[1], [0], [0], [1], [0, 0, 1, 1], [], []>} : vector<16x32xf32>, vector<32x32xf32>, vector<16x32xf32> -> vector<16x32xf32>
    %c1_135 = arith.constant 1 : index
    %c0_136 = arith.constant 0 : index
    %c0_137 = arith.constant 0 : index
    %295 = vector.load %arg8[%c1_135, %c0_136, %c0_137] : memref<2x1x32xf32, #tpu.memory_space<vmem>>, vector<1x1x32xf32>
    %296 = vector.shape_cast %295 : vector<1x1x32xf32> to vector<1x32xf32>
    %297 = vector.broadcast %296 : vector<1x32xf32> to vector<16x32xf32>
    %298 = arith.addf %294, %297 : vector<16x32xf32>
    %299 = arith.addf %298, %201 : vector<16x32xf32>
    %c1_138 = arith.constant 1 : index
    %c0_139 = arith.constant 0 : index
    %c0_140 = arith.constant 0 : index
    %300 = vector.load %arg9[%c1_138, %c0_139, %c0_140] : memref<2x1x32xf32, #tpu.memory_space<vmem>>, vector<1x1x32xf32>
    %301 = vector.shape_cast %300 : vector<1x1x32xf32> to vector<1x32xf32>
    %c1_141 = arith.constant 1 : index
    %c0_142 = arith.constant 0 : index
    %c0_143 = arith.constant 0 : index
    %302 = vector.load %arg10[%c1_141, %c0_142, %c0_143] : memref<2x1x32xf32, #tpu.memory_space<vmem>>, vector<1x1x32xf32>
    %303 = vector.shape_cast %302 : vector<1x1x32xf32> to vector<1x32xf32>
    %cst_144 = arith.constant dense<0.000000e+00> : vector<16xf32>
    %304 = vector.multi_reduction <add>, %299, %cst_144 [1] : vector<16x32xf32> to vector<16xf32>
    %305 = vector.shape_cast %304 : vector<16xf32> to vector<16x1xf32>
    %cst_145 = arith.constant 3.200000e+01 : f32
    %306 = vector.broadcast %cst_145 : f32 to vector<16x1xf32>
    %307 = arith.divf %305, %306 : vector<16x1xf32>
    %308 = vector.broadcast %307 : vector<16x1xf32> to vector<16x32xf32>
    %309 = arith.subf %299, %308 : vector<16x32xf32>
    %310 = arith.mulf %309, %309 : vector<16x32xf32>
    %cst_146 = arith.constant dense<0.000000e+00> : vector<16xf32>
    %311 = vector.multi_reduction <add>, %310, %cst_146 [1] : vector<16x32xf32> to vector<16xf32>
    %312 = vector.shape_cast %311 : vector<16xf32> to vector<16x1xf32>
    %cst_147 = arith.constant 3.200000e+01 : f32
    %313 = vector.broadcast %cst_147 : f32 to vector<16x1xf32>
    %314 = arith.divf %312, %313 : vector<16x1xf32>
    %cst_148 = arith.constant 9.99999996E-13 : f32
    %315 = vector.broadcast %cst_148 : f32 to vector<16x1xf32>
    %316 = arith.addf %314, %315 : vector<16x1xf32>
    %317 = math.rsqrt %316 : vector<16x1xf32>
    %318 = vector.broadcast %317 : vector<16x1xf32> to vector<16x32xf32>
    %319 = arith.mulf %309, %318 : vector<16x32xf32>
    %320 = vector.broadcast %301 : vector<1x32xf32> to vector<16x32xf32>
    %321 = arith.mulf %319, %320 : vector<16x32xf32>
    %322 = vector.broadcast %303 : vector<1x32xf32> to vector<16x32xf32>
    %323 = arith.addf %321, %322 : vector<16x32xf32>
    %c1_149 = arith.constant 1 : index
    %c0_150 = arith.constant 0 : index
    %c0_151 = arith.constant 0 : index
    %324 = vector.load %arg11[%c1_149, %c0_150, %c0_151] : memref<2x32x64xf32, #tpu.memory_space<vmem>>, vector<1x32x64xf32>
    %325 = vector.shape_cast %324 : vector<1x32x64xf32> to vector<32x64xf32>
    %cst_152 = arith.constant dense<0.000000e+00> : vector<16x64xf32>
    %326 = tpu.matmul %323, %325, %cst_152 {dimension_numbers = #tpu.dot_dimension_numbers<[1], [0], [0], [1], [0, 0, 1, 1], [], []>} : vector<16x32xf32>, vector<32x64xf32>, vector<16x64xf32> -> vector<16x64xf32>
    %c1_153 = arith.constant 1 : index
    %c0_154 = arith.constant 0 : index
    %c0_155 = arith.constant 0 : index
    %327 = vector.load %arg12[%c1_153, %c0_154, %c0_155] : memref<2x1x64xf32, #tpu.memory_space<vmem>>, vector<1x1x64xf32>
    %328 = vector.shape_cast %327 : vector<1x1x64xf32> to vector<1x64xf32>
    %329 = vector.broadcast %328 : vector<1x64xf32> to vector<16x64xf32>
    %330 = arith.addf %326, %329 : vector<16x64xf32>
    %cst_156 = arith.constant 5.000000e-01 : f32
    %331 = vector.broadcast %cst_156 : f32 to vector<16x64xf32>
    %332 = arith.mulf %331, %330 : vector<16x64xf32>
    %cst_157 = arith.constant 4.471500e-02 : f32
    %333 = vector.broadcast %cst_157 : f32 to vector<16x64xf32>
    %334 = arith.mulf %333, %330 : vector<16x64xf32>
    %335 = arith.mulf %334, %330 : vector<16x64xf32>
    %336 = arith.mulf %335, %330 : vector<16x64xf32>
    %337 = arith.addf %330, %336 : vector<16x64xf32>
    %cst_158 = arith.constant 0.797884583 : f32
    %338 = vector.broadcast %cst_158 : f32 to vector<16x64xf32>
    %339 = arith.mulf %338, %337 : vector<16x64xf32>
    %340 = math.tanh %339 : vector<16x64xf32>
    %cst_159 = arith.constant 1.000000e+00 : f32
    %341 = vector.broadcast %cst_159 : f32 to vector<16x64xf32>
    %342 = arith.addf %341, %340 : vector<16x64xf32>
    %343 = arith.mulf %332, %342 : vector<16x64xf32>
    %c1_160 = arith.constant 1 : index
    %c0_161 = arith.constant 0 : index
    %c0_162 = arith.constant 0 : index
    %344 = vector.load %arg13[%c1_160, %c0_161, %c0_162] : memref<2x64x32xf32, #tpu.memory_space<vmem>>, vector<1x64x32xf32>
    %345 = vector.shape_cast %344 : vector<1x64x32xf32> to vector<64x32xf32>
    %cst_163 = arith.constant dense<0.000000e+00> : vector<16x32xf32>
    %346 = tpu.matmul %343, %345, %cst_163 {dimension_numbers = #tpu.dot_dimension_numbers<[1], [0], [0], [1], [0, 0, 1, 1], [], []>} : vector<16x64xf32>, vector<64x32xf32>, vector<16x32xf32> -> vector<16x32xf32>
    %c1_164 = arith.constant 1 : index
    %c0_165 = arith.constant 0 : index
    %c0_166 = arith.constant 0 : index
    %347 = vector.load %arg14[%c1_164, %c0_165, %c0_166] : memref<2x1x32xf32, #tpu.memory_space<vmem>>, vector<1x1x32xf32>
    %348 = vector.shape_cast %347 : vector<1x1x32xf32> to vector<1x32xf32>
    %349 = vector.broadcast %348 : vector<1x32xf32> to vector<16x32xf32>
    %350 = arith.addf %346, %349 : vector<16x32xf32>
    %351 = arith.addf %350, %323 : vector<16x32xf32>
    %c1_167 = arith.constant 1 : index
    %c0_168 = arith.constant 0 : index
    %c0_169 = arith.constant 0 : index
    %352 = vector.load %arg15[%c1_167, %c0_168, %c0_169] : memref<2x1x32xf32, #tpu.memory_space<vmem>>, vector<1x1x32xf32>
    %353 = vector.shape_cast %352 : vector<1x1x32xf32> to vector<1x32xf32>
    %c1_170 = arith.constant 1 : index
    %c0_171 = arith.constant 0 : index
    %c0_172 = arith.constant 0 : index
    %354 = vector.load %arg16[%c1_170, %c0_171, %c0_172] : memref<2x1x32xf32, #tpu.memory_space<vmem>>, vector<1x1x32xf32>
    %355 = vector.shape_cast %354 : vector<1x1x32xf32> to vector<1x32xf32>
    %cst_173 = arith.constant dense<0.000000e+00> : vector<16xf32>
    %356 = vector.multi_reduction <add>, %351, %cst_173 [1] : vector<16x32xf32> to vector<16xf32>
    %357 = vector.shape_cast %356 : vector<16xf32> to vector<16x1xf32>
    %cst_174 = arith.constant 3.200000e+01 : f32
    %358 = vector.broadcast %cst_174 : f32 to vector<16x1xf32>
    %359 = arith.divf %357, %358 : vector<16x1xf32>
    %360 = vector.broadcast %359 : vector<16x1xf32> to vector<16x32xf32>
    %361 = arith.subf %351, %360 : vector<16x32xf32>
    %362 = arith.mulf %361, %361 : vector<16x32xf32>
    %cst_175 = arith.constant dense<0.000000e+00> : vector<16xf32>
    %363 = vector.multi_reduction <add>, %362, %cst_175 [1] : vector<16x32xf32> to vector<16xf32>
    %364 = vector.shape_cast %363 : vector<16xf32> to vector<16x1xf32>
    %cst_176 = arith.constant 3.200000e+01 : f32
    %365 = vector.broadcast %cst_176 : f32 to vector<16x1xf32>
    %366 = arith.divf %364, %365 : vector<16x1xf32>
    %cst_177 = arith.constant 9.99999996E-13 : f32
    %367 = vector.broadcast %cst_177 : f32 to vector<16x1xf32>
    %368 = arith.addf %366, %367 : vector<16x1xf32>
    %369 = math.rsqrt %368 : vector<16x1xf32>
    %370 = vector.broadcast %369 : vector<16x1xf32> to vector<16x32xf32>
    %371 = arith.mulf %361, %370 : vector<16x32xf32>
    %372 = vector.broadcast %353 : vector<1x32xf32> to vector<16x32xf32>
    %373 = arith.mulf %371, %372 : vector<16x32xf32>
    %374 = vector.broadcast %355 : vector<1x32xf32> to vector<16x32xf32>
    %375 = arith.addf %373, %374 : vector<16x32xf32>
    %376 = vector.extract_strided_slice %375 {offsets = [0, 0], sizes = [1, 32], strides = [1, 1]} : vector<16x32xf32> to vector<1x32xf32>
    %c0_178 = arith.constant 0 : index
    %c0_179 = arith.constant 0 : index
    %377 = vector.load %arg17[%c0_178, %c0_179] : memref<2x32xf32, #tpu.memory_space<vmem>>, vector<1x32xf32>
    tpu.vector_store %arg17[%c0_178, %c0_179], %376 {strides = array<i32>} : memref<2x32xf32, #tpu.memory_space<vmem>>, vector<1x32xf32>,
    %378 = vector.extract_strided_slice %375 {offsets = [8, 0], sizes = [1, 32], strides = [1, 1]} : vector<16x32xf32> to vector<1x32xf32>
    %c1_180 = arith.constant 1 : index
    %c0_181 = arith.constant 0 : index
    %379 = vector.load %arg17[%c1_180, %c0_181] : memref<2x32xf32, #tpu.memory_space<vmem>>, vector<1x32xf32>
    tpu.vector_store %arg17[%c1_180, %c0_181], %378 {strides = array<i32>} : memref<2x32xf32, #tpu.memory_space<vmem>>, vector<1x32xf32>,
    return
  }
  func.func @transform_0(%arg0: i32) -> (i32, i32) {
    %c0_i32 = arith.constant 0 : i32
    %c0_i32_0 = arith.constant 0 : i32
    %c0_i32_1 = arith.constant 0 : i32
    return %c0_i32, %c0_i32_0 : i32, i32
  }
  func.func @transform_1(%arg0: i32) -> (i32, i32) {
    %c0_i32 = arith.constant 0 : i32
    %c0_i32_0 = arith.constant 0 : i32
    %c0_i32_1 = arith.constant 0 : i32
    return %c0_i32, %c0_i32_0 : i32, i32
  }
  func.func @transform_2(%arg0: i32) -> (i32, i32) {
    %c0_i32 = arith.constant 0 : i32
    %c0_i32_0 = arith.constant 0 : i32
    %c0_i32_1 = arith.constant 0 : i32
    return %c0_i32, %c0_i32_0 : i32, i32
  }
  func.func @transform_3(%arg0: i32) -> (i32, i32) {
    %c0_i32 = arith.constant 0 : i32
    %c0_i32_0 = arith.constant 0 : i32
    %c0_i32_1 = arith.constant 0 : i32
    return %c0_i32, %c0_i32_0 : i32, i32
  }
  func.func @transform_4(%arg0: i32) -> (i32, i32, i32) {
    %c0_i32 = arith.constant 0 : i32
    %c0_i32_0 = arith.constant 0 : i32
    %c0_i32_1 = arith.constant 0 : i32
    %c0_i32_2 = arith.constant 0 : i32
    return %c0_i32, %c0_i32_0, %c0_i32_1 : i32, i32, i32
  }
  func.func @transform_5(%arg0: i32) -> (i32, i32, i32) {
    %c0_i32 = arith.constant 0 : i32
    %c0_i32_0 = arith.constant 0 : i32
    %c0_i32_1 = arith.constant 0 : i32
    %c0_i32_2 = arith.constant 0 : i32
    return %c0_i32, %c0_i32_0, %c0_i32_1 : i32, i32, i32
  }
  func.func @transform_6(%arg0: i32) -> (i32, i32, i32) {
    %c0_i32 = arith.constant 0 : i32
    %c0_i32_0 = arith.constant 0 : i32
    %c0_i32_1 = arith.constant 0 : i32
    %c0_i32_2 = arith.constant 0 : i32
    return %c0_i32, %c0_i32_0, %c0_i32_1 : i32, i32, i32
  }
  func.func @transform_7(%arg0: i32) -> (i32, i32, i32) {
    %c0_i32 = arith.constant 0 : i32
    %c0_i32_0 = arith.constant 0 : i32
    %c0_i32_1 = arith.constant 0 : i32
    %c0_i32_2 = arith.constant 0 : i32
    return %c0_i32, %c0_i32_0, %c0_i32_1 : i32, i32, i32
  }
  func.func @transform_8(%arg0: i32) -> (i32, i32, i32) {
    %c0_i32 = arith.constant 0 : i32
    %c0_i32_0 = arith.constant 0 : i32
    %c0_i32_1 = arith.constant 0 : i32
    %c0_i32_2 = arith.constant 0 : i32
    return %c0_i32, %c0_i32_0, %c0_i32_1 : i32, i32, i32
  }
  func.func @transform_9(%arg0: i32) -> (i32, i32, i32) {
    %c0_i32 = arith.constant 0 : i32
    %c0_i32_0 = arith.constant 0 : i32
    %c0_i32_1 = arith.constant 0 : i32
    %c0_i32_2 = arith.constant 0 : i32
    return %c0_i32, %c0_i32_0, %c0_i32_1 : i32, i32, i32
  }
  func.func @transform_10(%arg0: i32) -> (i32, i32, i32) {
    %c0_i32 = arith.constant 0 : i32
    %c0_i32_0 = arith.constant 0 : i32
    %c0_i32_1 = arith.constant 0 : i32
    %c0_i32_2 = arith.constant 0 : i32
    return %c0_i32, %c0_i32_0, %c0_i32_1 : i32, i32, i32
  }
  func.func @transform_11(%arg0: i32) -> (i32, i32, i32) {
    %c0_i32 = arith.constant 0 : i32
    %c0_i32_0 = arith.constant 0 : i32
    %c0_i32_1 = arith.constant 0 : i32
    %c0_i32_2 = arith.constant 0 : i32
    return %c0_i32, %c0_i32_0, %c0_i32_1 : i32, i32, i32
  }
  func.func @transform_12(%arg0: i32) -> (i32, i32, i32) {
    %c0_i32 = arith.constant 0 : i32
    %c0_i32_0 = arith.constant 0 : i32
    %c0_i32_1 = arith.constant 0 : i32
    %c0_i32_2 = arith.constant 0 : i32
    return %c0_i32, %c0_i32_0, %c0_i32_1 : i32, i32, i32
  }
  func.func @transform_13(%arg0: i32) -> (i32, i32, i32) {
    %c0_i32 = arith.constant 0 : i32
    %c0_i32_0 = arith.constant 0 : i32
    %c0_i32_1 = arith.constant 0 : i32
    %c0_i32_2 = arith.constant 0 : i32
    return %c0_i32, %c0_i32_0, %c0_i32_1 : i32, i32, i32
  }
  func.func @transform_14(%arg0: i32) -> (i32, i32, i32) {
    %c0_i32 = arith.constant 0 : i32
    %c0_i32_0 = arith.constant 0 : i32
    %c0_i32_1 = arith.constant 0 : i32
    %c0_i32_2 = arith.constant 0 : i32
    return %c0_i32, %c0_i32_0, %c0_i32_1 : i32, i32, i32
  }
  func.func @transform_15(%arg0: i32) -> (i32, i32, i32) {
    %c0_i32 = arith.constant 0 : i32
    %c0_i32_0 = arith.constant 0 : i32
    %c0_i32_1 = arith.constant 0 : i32
    %c0_i32_2 = arith.constant 0 : i32
    return %c0_i32, %c0_i32_0, %c0_i32_1 : i32, i32, i32
  }
  func.func @transform_16(%arg0: i32) -> (i32, i32) {
    %c0_i32 = arith.constant 0 : i32
    %c0_i32_0 = arith.constant 0 : i32
    %c0_i32_1 = arith.constant 0 : i32
    return %c0_i32, %c0_i32_0 : i32, i32
  }
}

</mosaic_0001>

<llo_original>
// kernel: ernie_forward.1
$region0: #{ernie_forward.1}
  #allocation0 [shape = 'u32[]', space=smem, size = 0x4, offset = 0x4, fixed_abs, tag = 'smem constant byte address 0x4 - core index']
  #allocation1 [shape = 'u32[144,128]{1,0:T(1,128)}', space=vmem, size = 0x12000, scoped, tag = 'internal scratch']
  #allocation2 [shape = 'f32[16,32]{1,0:T(8,128)}', space=vmem, size = 0x2000, scoped, tag = 'scratch operand']
  %s0 = inlined_call_operand.vmem [shape: f32[16,32], index: 0, kind: input, shape index: {}]
  %s1 = inlined_call_operand.vmem [shape: f32[2,8], index: 1, kind: input, shape index: {}]
  %s2 = inlined_call_operand.vmem [shape: f32[1,32], index: 2, kind: input, shape index: {}]
  %s3 = inlined_call_operand.vmem [shape: f32[1,32], index: 3, kind: input, shape index: {}]
  %s4 = inlined_call_operand.vmem [shape: f32[2,32,96], index: 4, kind: input, shape index: {}]
  %s5 = inlined_call_operand.vmem [shape: f32[2,1,96], index: 5, kind: input, shape index: {}]
  %s6 = inlined_call_operand.vmem [shape: f32[2,32,32], index: 6, kind: input, shape index: {}]
  %s7 = inlined_call_operand.vmem [shape: f32[2,1,32], index: 7, kind: input, shape index: {}]
  %s8 = inlined_call_operand.vmem [shape: f32[2,1,32], index: 8, kind: input, shape index: {}]
  %s9 = inlined_call_operand.vmem [shape: f32[2,1,32], index: 9, kind: input, shape index: {}]
  %s10 = inlined_call_operand.vmem [shape: f32[2,32,64], index: 10, kind: input, shape index: {}]
  %s11 = inlined_call_operand.vmem [shape: f32[2,1,64], index: 11, kind: input, shape index: {}]
  %s12 = inlined_call_operand.vmem [shape: f32[2,64,32], index: 12, kind: input, shape index: {}]
  %s13 = inlined_call_operand.vmem [shape: f32[2,1,32], index: 13, kind: input, shape index: {}]
  %s14 = inlined_call_operand.vmem [shape: f32[2,1,32], index: 14, kind: input, shape index: {}]
  %s15 = inlined_call_operand.vmem [shape: f32[2,1,32], index: 15, kind: input, shape index: {}]
  %s16 = inlined_call_operand.hbm [shape: f32[2,32], index: 16, kind: output, shape index: {}]
  %s17 = sld [smem:[#allocation0]]
  $region74: #{ernie_forward.1} parent=0
    _
  %s19 = ssub.s32 1, %s17
  %s20 = scalar_select 0, %s19, %s17
  $region1: #{ernie_forward.1} parent=0
    #allocation3 [shape = 'u8[1024]{0}', space=vmem, size = 0x400, scoped, tag = 'output window, operand 0, single buffered']
    #allocation4 [shape = 's32[1]{0}', space=sflag, size = 0x4, scoped, tag = 'scoped memory for ernie_forward.1']
    %21 = vsyncpa [#allocation4], 0
    // Predicated region
    $region2: #{ernie_forward.1} parent=1 // pred_check
      _
    $region3: #{ernie_forward.1} parent=1 // pred_check_branch
      %23 = sbr.rel (0) target = $region5
    $region4: #{ernie_forward.1} parent=1 // pred_region
      _
    $region5: #{ernie_forward.1} parent=1 // pred_fallthru
      _
    // Predicated region
    $region6: #{ernie_forward.1} parent=1 // pred_check
      _
    $region7: #{ernie_forward.1} parent=1 // pred_check_branch
      %25 = sbr.rel (0) target = $region9
    $region8: #{ernie_forward.1} parent=1 // pred_region
      _
    $region9: #{ernie_forward.1} parent=1 // pred_fallthru
      _
    // Predicated region
    $region10: #{ernie_forward.1} parent=1 // pred_check
      _
    $region11: #{ernie_forward.1} parent=1 // pred_check_branch
      %27 = sbr.rel (0) target = $region13
    $region12: #{ernie_forward.1} parent=1 // pred_region
      _
    $region13: #{ernie_forward.1} parent=1 // pred_fallthru
      _
    // Predicated region
    $region14: #{ernie_forward.1} parent=1 // pred_check
      _
    $region15: #{ernie_forward.1} parent=1 // pred_check_branch
      %29 = sbr.rel (0) target = $region17
    $region16: #{ernie_forward.1} parent=1 // pred_region
      _
    $region17: #{ernie_forward.1} parent=1 // pred_fallthru
      _
    // Predicated region
    $region18: #{ernie_forward.1} parent=1 // pred_check
      _
    $region19: #{ernie_forward.1} parent=1 // pred_check_branch
      %31 = sbr.rel (0) target = $region21
    $region20: #{ernie_forward.1} parent=1 // pred_region
      _
    $region21: #{ernie_forward.1} parent=1 // pred_fallthru
      _
    // Predicated region
    $region22: #{ernie_forward.1} parent=1 // pred_check
      _
    $region23: #{ernie_forward.1} parent=1 // pred_check_branch
      %33 = sbr.rel (0) target = $region25
    $region24: #{ernie_forward.1} parent=1 // pred_region
      _
    $region25: #{ernie_forward.1} parent=1 // pred_fallthru
      _
    // Predicated region
    $region26: #{ernie_forward.1} parent=1 // pred_check
      _
    $region27: #{ernie_forward.1} parent=1 // pred_check_branch
      %35 = sbr.rel (0) target = $region29
    $region28: #{ernie_forward.1} parent=1 // pred_region
      _
    $region29: #{ernie_forward.1} parent=1 // pred_fallthru
      _
    // Predicated region
    $region30: #{ernie_forward.1} parent=1 // pred_check
      _
    $region31: #{ernie_forward.1} parent=1 // pred_check_branch
      %37 = sbr.rel (0) target = $region33
    $region32: #{ernie_forward.1} parent=1 // pred_region
      _
    $region33: #{ernie_forward.1} parent=1 // pred_fallthru
      _
    // Predicated region
    $region34: #{ernie_forward.1} parent=1 // pred_check
      _
    $region35: #{ernie_forward.1} parent=1 // pred_check_branch
      %39 = sbr.rel (0) target = $region37
    $region36: #{ernie_forward.1} parent=1 // pred_region
      _
    $region37: #{ernie_forward.1} parent=1 // pred_fallthru
      _
    // Predicated region
    $region38: #{ernie_forward.1} parent=1 // pred_check
      _
    $region39: #{ernie_forward.1} parent=1 // pred_check_branch
      %41 = sbr.rel (0) target = $region41
    $region40: #{ernie_forward.1} parent=1 // pred_region
      _
    $region41: #{ernie_forward.1} parent=1 // pred_fallthru
      _
    // Predicated region
    $region42: #{ernie_forward.1} parent=1 // pred_check
      _
    $region43: #{ernie_forward.1} parent=1 // pred_check_branch
      %43 = sbr.rel (0) target = $region45
    $region44: #{ernie_forward.1} parent=1 // pred_region
      _
    $region45: #{ernie_forward.1} parent=1 // pred_fallthru
      _
    // Predicated region
    $region46: #{ernie_forward.1} parent=1 // pred_check
      _
    $region47: #{ernie_forward.1} parent=1 // pred_check_branch
      %45 = sbr.rel (0) target = $region49
    $region48: #{ernie_forward.1} parent=1 // pred_region
      _
    $region49: #{ernie_forward.1} parent=1 // pred_fallthru
      _
    // Predicated region
    $region50: #{ernie_forward.1} parent=1 // pred_check
      _
    $region51: #{ernie_forward.1} parent=1 // pred_check_branch
      %47 = sbr.rel (0) target = $region53
    $region52: #{ernie_forward.1} parent=1 // pred_region
      _
    $region53: #{ernie_forward.1} parent=1 // pred_fallthru
      _
    // Predicated region
    $region54: #{ernie_forward.1} parent=1 // pred_check
      _
    $region55: #{ernie_forward.1} parent=1 // pred_check_branch
      %49 = sbr.rel (0) target = $region57
    $region56: #{ernie_forward.1} parent=1 // pred_region
      _
    $region57: #{ernie_forward.1} parent=1 // pred_fallthru
      _
    // Predicated region
    $region58: #{ernie_forward.1} parent=1 // pred_check
      _
    $region59: #{ernie_forward.1} parent=1 // pred_check_branch
      %51 = sbr.rel (0) target = $region61
    $region60: #{ernie_forward.1} parent=1 // pred_region
      _
    $region61: #{ernie_forward.1} parent=1 // pred_fallthru
      _
    // Predicated region
    $region62: #{ernie_forward.1} parent=1 // pred_check
      _
    $region63: #{ernie_forward.1} parent=1 // pred_check_branch
      %53 = sbr.rel (0) target = $region65
    $region64: #{ernie_forward.1} parent=1 // pred_region
      _
    $region65: #{ernie_forward.1} parent=1 // pred_fallthru
      _
    %v54 = vld [vmem:[%s0] sm:$0xff]
    %v55 = vld [vmem:[%s0 + $0x8] sm:$0xff]
    %v56 = vld [vmem:[%s2] sm:$0x1]
    %v57 = vld [vmem:[%s3] sm:$0x1]
    %vm58 = vcmask 261120
    %v59 = vsel %vm58, %v54, 0.0
    %60 = vadd.xlane.f32.xlu0 %v59
    %v61 = vpop.xlane.xlu0 %60
    %v62 = vsel %vm58, %v55, 0.0
    %63 = vadd.xlane.f32.xlu0 %v62
    %v64 = vpop.xlane.xlu0 %63
    %v65 = vrcp.pop 32.0
    %v66 = vmul.f32 %v61, %v65
    %v67 = vmul.f32 %v64, %v65
    %v68 = vsub.f32 %v54, %v66
    %v69 = vsub.f32 %v55, %v67
    %v70 = vmul.f32 %v68, %v68
    %v71 = vmul.f32 %v69, %v69
    %v72 = vsel %vm58, %v70, 0.0
    %73 = vadd.xlane.f32.xlu0 %v72
    %v74 = vpop.xlane.xlu0 %73
    %v75 = vsel %vm58, %v71, 0.0
    %76 = vadd.xlane.f32.xlu0 %v75
    %v77 = vpop.xlane.xlu0 %76
    %v78 = vmul.f32 %v74, %v65
    %v79 = vmul.f32 %v77, %v65
    %v80 = vadd.f32 %v78, 1e-12
    %v81 = vadd.f32 %v79, 1e-12
    %v82 = vrsqrt.pop %v80
    %v83 = vrsqrt.pop %v81
    %v84 = vmul.f32 %v68, %v82
    %v85 = vmul.f32 %v69, %v83
    %v87 = vlaneseq
    %v88 = vshrl.u32 %v87, 7
    %v89 = vsub.s32 0, %v88
    %v90 = vrot.slane %v56, %v89
    %v92 = vmul.f32 %v84, %v90
    %v93 = vmul.f32 %v85, %v90
    %v95 = vlaneseq
    %v96 = vshrl.u32 %v95, 7
    %v97 = vsub.s32 0, %v96
    %v98 = vrot.slane %v57, %v97
    %v100 = vadd.f32 %v92, %v98
    %v101 = vadd.f32 %v93, %v98
    %v102 = vld [vmem:[%s1] sm:$0x3]
    %v103 = vsub.f32 1.0, %v102
    %v104 = vmul.f32 %v103, -10000.0
    %v105 = vld [vmem:[%s4] sm:$0xff]
    %v106 = vld [vmem:[%s4 + $0x8] sm:$0xff]
    %v107 = vld [vmem:[%s4 + $0x10] sm:$0xff]
    %v108 = vld [vmem:[%s4 + $0x18] sm:$0xff]
    %v109 = vld [vmem:[%s5] sm:$0x1]
    %v111 = vlaneseq
    %v112 = vshrl.u32 %v111, 7
    %v113 = vsub.s32 0, %v112
    %v114 = vrot.slane %v109, %v113
    %v117 = vsel %vm58, %v100, 0
    %v120 = vsel %vm58, %v101, 0
    %122 = vmatprep.subr.mxu0 0.0
    %123 = vmatpush1.msra.mxu0 %v105
    %124 = vmatprep.subr.mxu0 0.0
    %125 = vmatpush1.msra.mxu0 %v106
    %126 = vmatprep.subr.mxu0 0.0
    %127 = vmatpush1.msra.mxu0 %v107
    %128 = vmatprep.subr.mxu0 0.0
    %129 = vmatpush1.msra.mxu0 %v108
    %130 = vmatprep.subr.mxu0 0.0
    %131 = vmatpush1.msra.mxu0 0.0
    %132 = vmatprep.subr.mxu0 0.0
    %133 = vmatpush1.msra.mxu0 0.0
    %134 = vmatprep.subr.mxu0 0.0
    %135 = vmatpush1.msra.mxu0 0.0
    %136 = vmatprep.subr.mxu0 0.0
    %137 = vmatpush1.msra.mxu0 0.0
    %138 = vmatprep.subr.mxu0 0.0
    %139 = vmatpush1.msra.mxu0 0.0
    %140 = vmatprep.subr.mxu0 0.0
    %141 = vmatpush1.msra.mxu0 0.0
    %142 = vmatprep.subr.mxu0 0.0
    %143 = vmatpush1.msra.mxu0 0.0
    %144 = vmatprep.subr.mxu0 0.0
    %145 = vmatpush1.msra.mxu0 0.0
    %146 = vmatprep.subr.mxu0 0.0
    %147 = vmatpush1.msra.mxu0 0.0
    %148 = vmatprep.subr.mxu0 0.0
    %149 = vmatpush1.msra.mxu0 0.0
    %150 = vmatprep.subr.mxu0 0.0
    %151 = vmatpush1.msra.mxu0 0.0
    %152 = vmatprep.subr.mxu0 0.0
    %153 = vmatpush1.msra.mxu0 0.0
    %154 = vmatprep.subr.mxu0 0.0
    %155 = vmatpush1.msra.mxu0 0.0
    %156 = vmatprep.subr.mxu0 0.0
    %157 = vmatpush1.msra.mxu0 0.0
    %158 = vmatprep.subr.mxu0 0.0
    %159 = vmatpush1.msra.mxu0 0.0
    %160 = vmatprep.subr.mxu0 0.0
    %161 = vmatpush1.msra.mxu0 0.0
    %162 = vmatprep.subr.mxu0 0.0
    %163 = vmatpush1.msra.mxu0 0.0
    %164 = vmatprep.subr.mxu0 0.0
    %165 = vmatpush1.msra.mxu0 0.0
    %166 = vmatprep.subr.mxu0 0.0
    %167 = vmatpush1.msra.mxu0 0.0
    %168 = vmatprep.subr.mxu0 0.0
    %169 = vmatpush1.msra.mxu0 0.0
    %170 = vmatprep.subr.mxu0 0.0
    %171 = vmatpush1.msra.mxu0 0.0
    %172 = vmatprep.subr.mxu0 0.0
    %173 = vmatpush1.msra.mxu0 0.0
    %174 = vmatprep.subr.mxu0 0.0
    %175 = vmatpush1.msra.mxu0 0.0
    %176 = vmatprep.subr.mxu0 0.0
    %177 = vmatpush1.msra.mxu0 0.0
    %178 = vmatprep.subr.mxu0 0.0
    %179 = vmatpush1.msra.mxu0 0.0
    %180 = vmatprep.subr.mxu0 0.0
    %181 = vmatpush1.msra.mxu0 0.0
    %182 = vmatprep.subr.mxu0 0.0
    %183 = vmatpush1.msra.mxu0 0.0
    %184 = vmatprep.subr.mxu0 0.0
    %185 = vmatpush1.msra.mxu0 0.0
    %186 = vmatprep.mubr.f32.mxu0 0.0
    %187 = vmatmul.mubr.f32.gmra.mrb[0].mxu0 %v117
    %v188 = vpop.f32.mrb[0].mxu0
    %v189 = vadd.f32 %v114, %v188
    %v190 = vpop.f32.mrb[0].mxu0
    %191 = vmatprep.mubr.f32.mxu0 0.0
    %192 = vmatmul.mubr.f32.gmra.mrb[0].mxu0 %v120
    %v193 = vpop.f32.mrb[0].mxu0
    %v194 = vadd.f32 %v114, %v193
    %v195 = vpop.f32.mrb[0].mxu0
    %196 = vdwg.mxu0
    %198 = vrot.lane.b32.xlu0 %v189, 96
    %v199 = vpop.permute.xlu0 %198
    %vm200 = vcmask 130048
    %v201 = vsel %vm200, %v189, 0
    %v203 = vsel %vm200, %v199, 0
    %205 = vmatprep.subr.mxu0 0.0
    %206 = vmatpush1.xpose.msra.mxu0 %v203
    %207 = vmatprep.subr.mxu0 0.0
    %208 = vmatpush1.xpose.msra.mxu0 0.0
    %209 = vmatprep.subr.mxu0 0.0
    %210 = vmatpush1.xpose.msra.mxu0 0.0
    %211 = vmatprep.subr.mxu0 0.0
    %212 = vmatpush1.xpose.msra.mxu0 0.0
    %213 = vmatprep.subr.mxu0 0.0
    %214 = vmatpush1.xpose.msra.mxu0 0.0
    %215 = vmatprep.subr.mxu0 0.0
    %216 = vmatpush1.xpose.msra.mxu0 0.0
    %217 = vmatprep.subr.mxu0 0.0
    %218 = vmatpush1.xpose.msra.mxu0 0.0
    %219 = vmatprep.subr.mxu0 0.0
    %220 = vmatpush1.xpose.msra.mxu0 0.0
    %221 = vmatprep.subr.mxu0 0.0
    %222 = vmatpush1.xpose.msra.mxu0 0.0
    %223 = vmatprep.subr.mxu0 0.0
    %224 = vmatpush1.xpose.msra.mxu0 0.0
    %225 = vmatprep.subr.mxu0 0.0
    %226 = vmatpush1.xpose.msra.mxu0 0.0
    %227 = vmatprep.subr.mxu0 0.0
    %228 = vmatpush1.xpose.msra.mxu0 0.0
    %229 = vmatprep.subr.mxu0 0.0
    %230 = vmatpush1.xpose.msra.mxu0 0.0
    %231 = vmatprep.subr.mxu0 0.0
    %232 = vmatpush1.xpose.msra.mxu0 0.0
    %233 = vmatprep.subr.mxu0 0.0
    %234 = vmatpush1.xpose.msra.mxu0 0.0
    %235 = vmatprep.subr.mxu0 0.0
    %236 = vmatpush1.xpose.msra.mxu0 0.0
    %237 = vmatprep.subr.mxu0 0.0
    %238 = vmatpush1.xpose.msra.mxu0 0.0
    %239 = vmatprep.subr.mxu0 0.0
    %240 = vmatpush1.xpose.msra.mxu0 0.0
    %241 = vmatprep.subr.mxu0 0.0
    %242 = vmatpush1.xpose.msra.mxu0 0.0
    %243 = vmatprep.subr.mxu0 0.0
    %244 = vmatpush1.xpose.msra.mxu0 0.0
    %245 = vmatprep.subr.mxu0 0.0
    %246 = vmatpush1.xpose.msra.mxu0 0.0
    %247 = vmatprep.subr.mxu0 0.0
    %248 = vmatpush1.xpose.msra.mxu0 0.0
    %249 = vmatprep.subr.mxu0 0.0
    %250 = vmatpush1.xpose.msra.mxu0 0.0
    %251 = vmatprep.subr.mxu0 0.0
    %252 = vmatpush1.xpose.msra.mxu0 0.0
    %253 = vmatprep.subr.mxu0 0.0
    %254 = vmatpush1.xpose.msra.mxu0 0.0
    %255 = vmatprep.subr.mxu0 0.0
    %256 = vmatpush1.xpose.msra.mxu0 0.0
    %257 = vmatprep.subr.mxu0 0.0
    %258 = vmatpush1.xpose.msra.mxu0 0.0
    %259 = vmatprep.subr.mxu0 0.0
    %260 = vmatpush1.xpose.msra.mxu0 0.0
    %261 = vmatprep.subr.mxu0 0.0
    %262 = vmatpush1.xpose.msra.mxu0 0.0
    %263 = vmatprep.subr.mxu0 0.0
    %264 = vmatpush1.xpose.msra.mxu0 0.0
    %265 = vmatprep.subr.mxu0 0.0
    %266 = vmatpush1.xpose.msra.mxu0 0.0
    %267 = vmatprep.subr.mxu0 0.0
    %268 = vmatpush1.xpose.msra.mxu0 0.0
    %269 = vmatprep.mubr.f32.mxu0 0.0
    %270 = vmatmul.mubr.f32.gmra.mrb[0].mxu0 %v201
    %v271 = vpop.f32.mrb[0].mxu0
    %v272 = vadd.f32 0.0, %v271
    %v273 = vpop.f32.mrb[0].mxu0
    %274 = vdwg.mxu0
    %v275 = vmul.f32 %v272, 0.25
    %v276 = vlaneseq
    %v277 = vshrl.u32 %v276, 7
    %v278 = vsub.s32 0, %v277
    %v279 = vrot.slane %v104, %v278
    %v280 = vadd.f32 %v275, %v279
    %vm281 = vcmask 64512
    %v282 = vsel %vm281, %v280, -inf
    %283 = vmax.xlane.f32.xlu0 %v282
    %v284 = vpop.xlane.xlu0 %283
    %v285 = vsub.f32 %v280, %v284
    %v286 = vmul.f32 %v285, 1.442695
    %v287 = vpow.pop %v286
    %v288 = vsel %vm281, %v287, 0.0
    %289 = vadd.xlane.f32.xlu0 %v288
    %v290 = vpop.xlane.xlu0 %289
    %v291 = vrcp.pop %v290
    %v292 = vmul.f32 %v287, %v291
    %293 = vrot.lane.b32.xlu0 %v189, 64
    %v294 = vpop.permute.xlu0 %293
    %v297 = vsel %vm281, %v292, 0
    %299 = vmatprep.subr.mxu0 0.0
    %300 = vmatpush1.msra.mxu0 %v294
    %301 = vmatprep.subr.mxu0 0.0
    %302 = vmatpush1.msra.mxu0 0.0
    %303 = vmatprep.subr.mxu0 0.0
    %304 = vmatpush1.msra.mxu0 0.0
    %305 = vmatprep.subr.mxu0 0.0
    %306 = vmatpush1.msra.mxu0 0.0
    %307 = vmatprep.subr.mxu0 0.0
    %308 = vmatpush1.msra.mxu0 0.0
    %309 = vmatprep.subr.mxu0 0.0
    %310 = vmatpush1.msra.mxu0 0.0
    %311 = vmatprep.subr.mxu0 0.0
    %312 = vmatpush1.msra.mxu0 0.0
    %313 = vmatprep.subr.mxu0 0.0
    %314 = vmatpush1.msra.mxu0 0.0
    %315 = vmatprep.subr.mxu0 0.0
    %316 = vmatpush1.msra.mxu0 0.0
    %317 = vmatprep.subr.mxu0 0.0
    %318 = vmatpush1.msra.mxu0 0.0
    %319 = vmatprep.subr.mxu0 0.0
    %320 = vmatpush1.msra.mxu0 0.0
    %321 = vmatprep.subr.mxu0 0.0
    %322 = vmatpush1.msra.mxu0 0.0
    %323 = vmatprep.subr.mxu0 0.0
    %324 = vmatpush1.msra.mxu0 0.0
    %325 = vmatprep.subr.mxu0 0.0
    %326 = vmatpush1.msra.mxu0 0.0
    %327 = vmatprep.subr.mxu0 0.0
    %328 = vmatpush1.msra.mxu0 0.0
    %329 = vmatprep.subr.mxu0 0.0
    %330 = vmatpush1.msra.mxu0 0.0
    %331 = vmatprep.subr.mxu0 0.0
    %332 = vmatpush1.msra.mxu0 0.0
    %333 = vmatprep.subr.mxu0 0.0
    %334 = vmatpush1.msra.mxu0 0.0
    %335 = vmatprep.subr.mxu0 0.0
    %336 = vmatpush1.msra.mxu0 0.0
    %337 = vmatprep.subr.mxu0 0.0
    %338 = vmatpush1.msra.mxu0 0.0
    %339 = vmatprep.subr.mxu0 0.0
    %340 = vmatpush1.msra.mxu0 0.0
    %341 = vmatprep.subr.mxu0 0.0
    %342 = vmatpush1.msra.mxu0 0.0
    %343 = vmatprep.subr.mxu0 0.0
    %344 = vmatpush1.msra.mxu0 0.0
    %345 = vmatprep.subr.mxu0 0.0
    %346 = vmatpush1.msra.mxu0 0.0
    %347 = vmatprep.subr.mxu0 0.0
    %348 = vmatpush1.msra.mxu0 0.0
    %349 = vmatprep.subr.mxu0 0.0
    %350 = vmatpush1.msra.mxu0 0.0
    %351 = vmatprep.subr.mxu0 0.0
    %352 = vmatpush1.msra.mxu0 0.0
    %353 = vmatprep.subr.mxu0 0.0
    %354 = vmatpush1.msra.mxu0 0.0
    %355 = vmatprep.subr.mxu0 0.0
    %356 = vmatpush1.msra.mxu0 0.0
    %357 = vmatprep.subr.mxu0 0.0
    %358 = vmatpush1.msra.mxu0 0.0
    %359 = vmatprep.subr.mxu0 0.0
    %360 = vmatpush1.msra.mxu0 0.0
    %361 = vmatprep.subr.mxu0 0.0
    %362 = vmatpush1.msra.mxu0 0.0
    %363 = vmatprep.mubr.f32.mxu0 0.0
    %364 = vmatmul.mubr.f32.gmra.mrb[0].mxu0 %v297
    %v365 = vpop.f32.mrb[0].mxu0
    %v366 = vadd.f32 0.0, %v365
    %v367 = vpop.f32.mrb[0].mxu0
    %368 = vdwg.mxu0
    %369 = vst.msk [vmem:[#allocation2] sm:$0xff] %vm200, %v366
    %370 = vrot.lane.b32.xlu0 %v189, 112
    %v371 = vpop.permute.xlu0 %370
    %372 = vrot.lane.b32.xlu0 %v189, 80
    %v373 = vpop.permute.xlu0 %372
    %v374 = vsel %vm200, %v371, 0
    %v376 = vsel %vm200, %v373, 0
    %378 = vmatprep.subr.mxu0 0.0
    %379 = vmatpush1.xpose.msra.mxu0 %v376
    %380 = vmatprep.subr.mxu0 0.0
    %381 = vmatpush1.xpose.msra.mxu0 0.0
    %382 = vmatprep.subr.mxu0 0.0
    %383 = vmatpush1.xpose.msra.mxu0 0.0
    %384 = vmatprep.subr.mxu0 0.0
    %385 = vmatpush1.xpose.msra.mxu0 0.0
    %386 = vmatprep.subr.mxu0 0.0
    %387 = vmatpush1.xpose.msra.mxu0 0.0
    %388 = vmatprep.subr.mxu0 0.0
    %389 = vmatpush1.xpose.msra.mxu0 0.0
    %390 = vmatprep.subr.mxu0 0.0
    %391 = vmatpush1.xpose.msra.mxu0 0.0
    %392 = vmatprep.subr.mxu0 0.0
    %393 = vmatpush1.xpose.msra.mxu0 0.0
    %394 = vmatprep.subr.mxu0 0.0
    %395 = vmatpush1.xpose.msra.mxu0 0.0
    %396 = vmatprep.subr.mxu0 0.0
    %397 = vmatpush1.xpose.msra.mxu0 0.0
    %398 = vmatprep.subr.mxu0 0.0
    %399 = vmatpush1.xpose.msra.mxu0 0.0
    %400 = vmatprep.subr.mxu0 0.0
    %401 = vmatpush1.xpose.msra.mxu0 0.0
    %402 = vmatprep.subr.mxu0 0.0
    %403 = vmatpush1.xpose.msra.mxu0 0.0
    %404 = vmatprep.subr.mxu0 0.0
    %405 = vmatpush1.xpose.msra.mxu0 0.0
    %406 = vmatprep.subr.mxu0 0.0
    %407 = vmatpush1.xpose.msra.mxu0 0.0
    %408 = vmatprep.subr.mxu0 0.0
    %409 = vmatpush1.xpose.msra.mxu0 0.0
    %410 = vmatprep.subr.mxu0 0.0
    %411 = vmatpush1.xpose.msra.mxu0 0.0
    %412 = vmatprep.subr.mxu0 0.0
    %413 = vmatpush1.xpose.msra.mxu0 0.0
    %414 = vmatprep.subr.mxu0 0.0
    %415 = vmatpush1.xpose.msra.mxu0 0.0
    %416 = vmatprep.subr.mxu0 0.0
    %417 = vmatpush1.xpose.msra.mxu0 0.0
    %418 = vmatprep.subr.mxu0 0.0
    %419 = vmatpush1.xpose.msra.mxu0 0.0
    %420 = vmatprep.subr.mxu0 0.0
    %421 = vmatpush1.xpose.msra.mxu0 0.0
    %422 = vmatprep.subr.mxu0 0.0
    %423 = vmatpush1.xpose.msra.mxu0 0.0
    %424 = vmatprep.subr.mxu0 0.0
    %425 = vmatpush1.xpose.msra.mxu0 0.0
    %426 = vmatprep.subr.mxu0 0.0
    %427 = vmatpush1.xpose.msra.mxu0 0.0
    %428 = vmatprep.subr.mxu0 0.0
    %429 = vmatpush1.xpose.msra.mxu0 0.0
    %430 = vmatprep.subr.mxu0 0.0
    %431 = vmatpush1.xpose.msra.mxu0 0.0
    %432 = vmatprep.subr.mxu0 0.0
    %433 = vmatpush1.xpose.msra.mxu0 0.0
    %434 = vmatprep.subr.mxu0 0.0
    %435 = vmatpush1.xpose.msra.mxu0 0.0
    %436 = vmatprep.subr.mxu0 0.0
    %437 = vmatpush1.xpose.msra.mxu0 0.0
    %438 = vmatprep.subr.mxu0 0.0
    %439 = vmatpush1.xpose.msra.mxu0 0.0
    %440 = vmatprep.subr.mxu0 0.0
    %441 = vmatpush1.xpose.msra.mxu0 0.0
    %442 = vmatprep.mubr.f32.mxu0 0.0
    %443 = vmatmul.mubr.f32.gmra.mrb[0].mxu0 %v374
    %v444 = vpop.f32.mrb[0].mxu0
    %v445 = vadd.f32 0.0, %v444
    %v446 = vpop.f32.mrb[0].mxu0
    %447 = vdwg.mxu0
    %v448 = vmul.f32 %v445, 0.25
    %v449 = vadd.f32 %v448, %v279
    %v450 = vsel %vm281, %v449, -inf
    %451 = vmax.xlane.f32.xlu0 %v450
    %v452 = vpop.xlane.xlu0 %451
    %v453 = vsub.f32 %v449, %v452
    %v454 = vmul.f32 %v453, 1.442695
    %v455 = vpow.pop %v454
    %v456 = vsel %vm281, %v455, 0.0
    %457 = vadd.xlane.f32.xlu0 %v456
    %v458 = vpop.xlane.xlu0 %457
    %v459 = vrcp.pop %v458
    %v460 = vmul.f32 %v455, %v459
    %461 = vrot.lane.b32.xlu0 %v189, 48
    %v462 = vpop.permute.xlu0 %461
    %v465 = vsel %vm281, %v460, 0
    %467 = vmatprep.subr.mxu0 0.0
    %468 = vmatpush1.msra.mxu0 %v462
    %469 = vmatprep.subr.mxu0 0.0
    %470 = vmatpush1.msra.mxu0 0.0
    %471 = vmatprep.subr.mxu0 0.0
    %472 = vmatpush1.msra.mxu0 0.0
    %473 = vmatprep.subr.mxu0 0.0
    %474 = vmatpush1.msra.mxu0 0.0
    %475 = vmatprep.subr.mxu0 0.0
    %476 = vmatpush1.msra.mxu0 0.0
    %477 = vmatprep.subr.mxu0 0.0
    %478 = vmatpush1.msra.mxu0 0.0
    %479 = vmatprep.subr.mxu0 0.0
    %480 = vmatpush1.msra.mxu0 0.0
    %481 = vmatprep.subr.mxu0 0.0
    %482 = vmatpush1.msra.mxu0 0.0
    %483 = vmatprep.subr.mxu0 0.0
    %484 = vmatpush1.msra.mxu0 0.0
    %485 = vmatprep.subr.mxu0 0.0
    %486 = vmatpush1.msra.mxu0 0.0
    %487 = vmatprep.subr.mxu0 0.0
    %488 = vmatpush1.msra.mxu0 0.0
    %489 = vmatprep.subr.mxu0 0.0
    %490 = vmatpush1.msra.mxu0 0.0
    %491 = vmatprep.subr.mxu0 0.0
    %492 = vmatpush1.msra.mxu0 0.0
    %493 = vmatprep.subr.mxu0 0.0
    %494 = vmatpush1.msra.mxu0 0.0
    %495 = vmatprep.subr.mxu0 0.0
    %496 = vmatpush1.msra.mxu0 0.0
    %497 = vmatprep.subr.mxu0 0.0
    %498 = vmatpush1.msra.mxu0 0.0
    %499 = vmatprep.subr.mxu0 0.0
    %500 = vmatpush1.msra.mxu0 0.0
    %501 = vmatprep.subr.mxu0 0.0
    %502 = vmatpush1.msra.mxu0 0.0
    %503 = vmatprep.subr.mxu0 0.0
    %504 = vmatpush1.msra.mxu0 0.0
    %505 = vmatprep.subr.mxu0 0.0
    %506 = vmatpush1.msra.mxu0 0.0
    %507 = vmatprep.subr.mxu0 0.0
    %508 = vmatpush1.msra.mxu0 0.0
    %509 = vmatprep.subr.mxu0 0.0
    %510 = vmatpush1.msra.mxu0 0.0
    %511 = vmatprep.subr.mxu0 0.0
    %512 = vmatpush1.msra.mxu0 0.0
    %513 = vmatprep.subr.mxu0 0.0
    %514 = vmatpush1.msra.mxu0 0.0
    %515 = vmatprep.subr.mxu0 0.0
    %516 = vmatpush1.msra.mxu0 0.0
    %517 = vmatprep.subr.mxu0 0.0
    %518 = vmatpush1.msra.mxu0 0.0
    %519 = vmatprep.subr.mxu0 0.0
    %520 = vmatpush1.msra.mxu0 0.0
    %521 = vmatprep.subr.mxu0 0.0
    %522 = vmatpush1.msra.mxu0 0.0
    %523 = vmatprep.subr.mxu0 0.0
    %524 = vmatpush1.msra.mxu0 0.0
    %525 = vmatprep.subr.mxu0 0.0
    %526 = vmatpush1.msra.mxu0 0.0
    %527 = vmatprep.subr.mxu0 0.0
    %528 = vmatpush1.msra.mxu0 0.0
    %529 = vmatprep.subr.mxu0 0.0
    %530 = vmatpush1.msra.mxu0 0.0
    %531 = vmatprep.mubr.f32.mxu0 0.0
    %532 = vmatmul.mubr.f32.gmra.mrb[0].mxu0 %v465
    %v533 = vpop.f32.mrb[0].mxu0
    %v534 = vadd.f32 0.0, %v533
    %v535 = vpop.f32.mrb[0].mxu0
    %536 = vdwg.mxu0
    %538 = vrot.lane.b32.xlu0 %v534, 16
    %v539 = vpop.permute.xlu0 %538
    %vm541 = vcmask 261248
    %542 = vst.msk [vmem:[#allocation2] sm:$0xff] %vm541, %v539
    %544 = vrot.lane.b32.xlu0 %v194, 96
    %v545 = vpop.permute.xlu0 %544
    %v546 = vsel %vm200, %v194, 0
    %v548 = vsel %vm200, %v545, 0
    %550 = vmatprep.subr.mxu0 0.0
    %551 = vmatpush1.xpose.msra.mxu0 %v548
    %552 = vmatprep.subr.mxu0 0.0
    %553 = vmatpush1.xpose.msra.mxu0 0.0
    %554 = vmatprep.subr.mxu0 0.0
    %555 = vmatpush1.xpose.msra.mxu0 0.0
    %556 = vmatprep.subr.mxu0 0.0
    %557 = vmatpush1.xpose.msra.mxu0 0.0
    %558 = vmatprep.subr.mxu0 0.0
    %559 = vmatpush1.xpose.msra.mxu0 0.0
    %560 = vmatprep.subr.mxu0 0.0
    %561 = vmatpush1.xpose.msra.mxu0 0.0
    %562 = vmatprep.subr.mxu0 0.0
    %563 = vmatpush1.xpose.msra.mxu0 0.0
    %564 = vmatprep.subr.mxu0 0.0
    %565 = vmatpush1.xpose.msra.mxu0 0.0
    %566 = vmatprep.subr.mxu0 0.0
    %567 = vmatpush1.xpose.msra.mxu0 0.0
    %568 = vmatprep.subr.mxu0 0.0
    %569 = vmatpush1.xpose.msra.mxu0 0.0
    %570 = vmatprep.subr.mxu0 0.0
    %571 = vmatpush1.xpose.msra.mxu0 0.0
    %572 = vmatprep.subr.mxu0 0.0
    %573 = vmatpush1.xpose.msra.mxu0 0.0
    %574 = vmatprep.subr.mxu0 0.0
    %575 = vmatpush1.xpose.msra.mxu0 0.0
    %576 = vmatprep.subr.mxu0 0.0
    %577 = vmatpush1.xpose.msra.mxu0 0.0
    %578 = vmatprep.subr.mxu0 0.0
    %579 = vmatpush1.xpose.msra.mxu0 0.0
    %580 = vmatprep.subr.mxu0 0.0
    %581 = vmatpush1.xpose.msra.mxu0 0.0
    %582 = vmatprep.subr.mxu0 0.0
    %583 = vmatpush1.xpose.msra.mxu0 0.0
    %584 = vmatprep.subr.mxu0 0.0
    %585 = vmatpush1.xpose.msra.mxu0 0.0
    %586 = vmatprep.subr.mxu0 0.0
    %587 = vmatpush1.xpose.msra.mxu0 0.0
    %588 = vmatprep.subr.mxu0 0.0
    %589 = vmatpush1.xpose.msra.mxu0 0.0
    %590 = vmatprep.subr.mxu0 0.0
    %591 = vmatpush1.xpose.msra.mxu0 0.0
    %592 = vmatprep.subr.mxu0 0.0
    %593 = vmatpush1.xpose.msra.mxu0 0.0
    %594 = vmatprep.subr.mxu0 0.0
    %595 = vmatpush1.xpose.msra.mxu0 0.0
    %596 = vmatprep.subr.mxu0 0.0
    %597 = vmatpush1.xpose.msra.mxu0 0.0
    %598 = vmatprep.subr.mxu0 0.0
    %599 = vmatpush1.xpose.msra.mxu0 0.0
    %600 = vmatprep.subr.mxu0 0.0
    %601 = vmatpush1.xpose.msra.mxu0 0.0
    %602 = vmatprep.subr.mxu0 0.0
    %603 = vmatpush1.xpose.msra.mxu0 0.0
    %604 = vmatprep.subr.mxu0 0.0
    %605 = vmatpush1.xpose.msra.mxu0 0.0
    %606 = vmatprep.subr.mxu0 0.0
    %607 = vmatpush1.xpose.msra.mxu0 0.0
    %608 = vmatprep.subr.mxu0 0.0
    %609 = vmatpush1.xpose.msra.mxu0 0.0
    %610 = vmatprep.subr.mxu0 0.0
    %611 = vmatpush1.xpose.msra.mxu0 0.0
    %612 = vmatprep.subr.mxu0 0.0
    %613 = vmatpush1.xpose.msra.mxu0 0.0
    %614 = vmatprep.mubr.f32.mxu0 0.0
    %615 = vmatmul.mubr.f32.gmra.mrb[0].mxu0 %v546
    %v616 = vpop.f32.mrb[0].mxu0
    %v617 = vadd.f32 0.0, %v616
    %v618 = vpop.f32.mrb[0].mxu0
    %619 = vdwg.mxu0
    %v620 = vmul.f32 %v617, 0.25
    %v621 = vlaneseq
    %v622 = vshrl.u32 %v621, 7
    %v623 = vsub.s32 1, %v622
    %v624 = vrot.slane %v104, %v623
    %v625 = vadd.f32 %v620, %v624
    %v626 = vsel %vm281, %v625, -inf
    %627 = vmax.xlane.f32.xlu0 %v626
    %v628 = vpop.xlane.xlu0 %627
    %v629 = vsub.f32 %v625, %v628
    %v630 = vmul.f32 %v629, 1.442695
    %v631 = vpow.pop %v630
    %v632 = vsel %vm281, %v631, 0.0
    %633 = vadd.xlane.f32.xlu0 %v632
    %v634 = vpop.xlane.xlu0 %633
    %v635 = vrcp.pop %v634
    %v636 = vmul.f32 %v631, %v635
    %637 = vrot.lane.b32.xlu0 %v194, 64
    %v638 = vpop.permute.xlu0 %637
    %v641 = vsel %vm281, %v636, 0
    %643 = vmatprep.subr.mxu0 0.0
    %644 = vmatpush1.msra.mxu0 %v638
    %645 = vmatprep.subr.mxu0 0.0
    %646 = vmatpush1.msra.mxu0 0.0
    %647 = vmatprep.subr.mxu0 0.0
    %648 = vmatpush1.msra.mxu0 0.0
    %649 = vmatprep.subr.mxu0 0.0
    %650 = vmatpush1.msra.mxu0 0.0
    %651 = vmatprep.subr.mxu0 0.0
    %652 = vmatpush1.msra.mxu0 0.0
    %653 = vmatprep.subr.mxu0 0.0
    %654 = vmatpush1.msra.mxu0 0.0
    %655 = vmatprep.subr.mxu0 0.0
    %656 = vmatpush1.msra.mxu0 0.0
    %657 = vmatprep.subr.mxu0 0.0
    %658 = vmatpush1.msra.mxu0 0.0
    %659 = vmatprep.subr.mxu0 0.0
    %660 = vmatpush1.msra.mxu0 0.0
    %661 = vmatprep.subr.mxu0 0.0
    %662 = vmatpush1.msra.mxu0 0.0
    %663 = vmatprep.subr.mxu0 0.0
    %664 = vmatpush1.msra.mxu0 0.0
    %665 = vmatprep.subr.mxu0 0.0
    %666 = vmatpush1.msra.mxu0 0.0
    %667 = vmatprep.subr.mxu0 0.0
    %668 = vmatpush1.msra.mxu0 0.0
    %669 = vmatprep.subr.mxu0 0.0
    %670 = vmatpush1.msra.mxu0 0.0
    %671 = vmatprep.subr.mxu0 0.0
    %672 = vmatpush1.msra.mxu0 0.0
    %673 = vmatprep.subr.mxu0 0.0
    %674 = vmatpush1.msra.mxu0 0.0
    %675 = vmatprep.subr.mxu0 0.0
    %676 = vmatpush1.msra.mxu0 0.0
    %677 = vmatprep.subr.mxu0 0.0
    %678 = vmatpush1.msra.mxu0 0.0
    %679 = vmatprep.subr.mxu0 0.0
    %680 = vmatpush1.msra.mxu0 0.0
    %681 = vmatprep.subr.mxu0 0.0
    %682 = vmatpush1.msra.mxu0 0.0
    %683 = vmatprep.subr.mxu0 0.0
    %684 = vmatpush1.msra.mxu0 0.0
    %685 = vmatprep.subr.mxu0 0.0
    %686 = vmatpush1.msra.mxu0 0.0
    %687 = vmatprep.subr.mxu0 0.0
    %688 = vmatpush1.msra.mxu0 0.0
    %689 = vmatprep.subr.mxu0 0.0
    %690 = vmatpush1.msra.mxu0 0.0
    %691 = vmatprep.subr.mxu0 0.0
    %692 = vmatpush1.msra.mxu0 0.0
    %693 = vmatprep.subr.mxu0 0.0
    %694 = vmatpush1.msra.mxu0 0.0
    %695 = vmatprep.subr.mxu0 0.0
    %696 = vmatpush1.msra.mxu0 0.0
    %697 = vmatprep.subr.mxu0 0.0
    %698 = vmatpush1.msra.mxu0 0.0
    %699 = vmatprep.subr.mxu0 0.0
    %700 = vmatpush1.msra.mxu0 0.0
    %701 = vmatprep.subr.mxu0 0.0
    %702 = vmatpush1.msra.mxu0 0.0
    %703 = vmatprep.subr.mxu0 0.0
    %704 = vmatpush1.msra.mxu0 0.0
    %705 = vmatprep.subr.mxu0 0.0
    %706 = vmatpush1.msra.mxu0 0.0
    %707 = vmatprep.mubr.f32.mxu0 0.0
    %708 = vmatmul.mubr.f32.gmra.mrb[0].mxu0 %v641
    %v709 = vpop.f32.mrb[0].mxu0
    %v710 = vadd.f32 0.0, %v709
    %v711 = vpop.f32.mrb[0].mxu0
    %712 = vdwg.mxu0
    %713 = vst.msk [vmem:[#allocation2 + $0x8] sm:$0xff] %vm200, %v710
    %714 = vrot.lane.b32.xlu0 %v194, 112
    %v715 = vpop.permute.xlu0 %714
    %716 = vrot.lane.b32.xlu0 %v194, 80
    %v717 = vpop.permute.xlu0 %716
    %v718 = vsel %vm200, %v715, 0
    %v720 = vsel %vm200, %v717, 0
    %722 = vmatprep.subr.mxu0 0.0
    %723 = vmatpush1.xpose.msra.mxu0 %v720
    %724 = vmatprep.subr.mxu0 0.0
    %725 = vmatpush1.xpose.msra.mxu0 0.0
    %726 = vmatprep.subr.mxu0 0.0
    %727 = vmatpush1.xpose.msra.mxu0 0.0
    %728 = vmatprep.subr.mxu0 0.0
    %729 = vmatpush1.xpose.msra.mxu0 0.0
    %730 = vmatprep.subr.mxu0 0.0
    %731 = vmatpush1.xpose.msra.mxu0 0.0
    %732 = vmatprep.subr.mxu0 0.0
    %733 = vmatpush1.xpose.msra.mxu0 0.0
    %734 = vmatprep.subr.mxu0 0.0
    %735 = vmatpush1.xpose.msra.mxu0 0.0
    %736 = vmatprep.subr.mxu0 0.0
    %737 = vmatpush1.xpose.msra.mxu0 0.0
    %738 = vmatprep.subr.mxu0 0.0
    %739 = vmatpush1.xpose.msra.mxu0 0.0
    %740 = vmatprep.subr.mxu0 0.0
    %741 = vmatpush1.xpose.msra.mxu0 0.0
    %742 = vmatprep.subr.mxu0 0.0
    %743 = vmatpush1.xpose.msra.mxu0 0.0
    %744 = vmatprep.subr.mxu0 0.0
    %745 = vmatpush1.xpose.msra.mxu0 0.0
    %746 = vmatprep.subr.mxu0 0.0
    %747 = vmatpush1.xpose.msra.mxu0 0.0
    %748 = vmatprep.subr.mxu0 0.0
    %749 = vmatpush1.xpose.msra.mxu0 0.0
    %750 = vmatprep.subr.mxu0 0.0
    %751 = vmatpush1.xpose.msra.mxu0 0.0
    %752 = vmatprep.subr.mxu0 0.0
    %753 = vmatpush1.xpose.msra.mxu0 0.0
    %754 = vmatprep.subr.mxu0 0.0
    %755 = vmatpush1.xpose.msra.mxu0 0.0
    %756 = vmatprep.subr.mxu0 0.0
    %757 = vmatpush1.xpose.msra.mxu0 0.0
    %758 = vmatprep.subr.mxu0 0.0
    %759 = vmatpush1.xpose.msra.mxu0 0.0
    %760 = vmatprep.subr.mxu0 0.0
    %761 = vmatpush1.xpose.msra.mxu0 0.0
    %762 = vmatprep.subr.mxu0 0.0
    %763 = vmatpush1.xpose.msra.mxu0 0.0
    %764 = vmatprep.subr.mxu0 0.0
    %765 = vmatpush1.xpose.msra.mxu0 0.0
    %766 = vmatprep.subr.mxu0 0.0
    %767 = vmatpush1.xpose.msra.mxu0 0.0
    %768 = vmatprep.subr.mxu0 0.0
    %769 = vmatpush1.xpose.msra.mxu0 0.0
    %770 = vmatprep.subr.mxu0 0.0
    %771 = vmatpush1.xpose.msra.mxu0 0.0
    %772 = vmatprep.subr.mxu0 0.0
    %773 = vmatpush1.xpose.msra.mxu0 0.0
    %774 = vmatprep.subr.mxu0 0.0
    %775 = vmatpush1.xpose.msra.mxu0 0.0
    %776 = vmatprep.subr.mxu0 0.0
    %777 = vmatpush1.xpose.msra.mxu0 0.0
    %778 = vmatprep.subr.mxu0 0.0
    %779 = vmatpush1.xpose.msra.mxu0 0.0
    %780 = vmatprep.subr.mxu0 0.0
    %781 = vmatpush1.xpose.msra.mxu0 0.0
    %782 = vmatprep.subr.mxu0 0.0
    %783 = vmatpush1.xpose.msra.mxu0 0.0
    %784 = vmatprep.subr.mxu0 0.0
    %785 = vmatpush1.xpose.msra.mxu0 0.0
    %786 = vmatprep.mubr.f32.mxu0 0.0
    %787 = vmatmul.mubr.f32.gmra.mrb[0].mxu0 %v718
    %v788 = vpop.f32.mrb[0].mxu0
    %v789 = vadd.f32 0.0, %v788
    %v790 = vpop.f32.mrb[0].mxu0
    %791 = vdwg.mxu0
    %v792 = vmul.f32 %v789, 0.25
    %v793 = vadd.f32 %v792, %v624
    %v794 = vsel %vm281, %v793, -inf
    %795 = vmax.xlane.f32.xlu0 %v794
    %v796 = vpop.xlane.xlu0 %795
    %v797 = vsub.f32 %v793, %v796
    %v798 = vmul.f32 %v797, 1.442695
    %v799 = vpow.pop %v798
    %v800 = vsel %vm281, %v799, 0.0
    %801 = vadd.xlane.f32.xlu0 %v800
    %v802 = vpop.xlane.xlu0 %801
    %v803 = vrcp.pop %v802
    %v804 = vmul.f32 %v799, %v803
    %805 = vrot.lane.b32.xlu0 %v194, 48
    %v806 = vpop.permute.xlu0 %805
    %v809 = vsel %vm281, %v804, 0
    %811 = vmatprep.subr.mxu0 0.0
    %812 = vmatpush1.msra.mxu0 %v806
    %813 = vmatprep.subr.mxu0 0.0
    %814 = vmatpush1.msra.mxu0 0.0
    %815 = vmatprep.subr.mxu0 0.0
    %816 = vmatpush1.msra.mxu0 0.0
    %817 = vmatprep.subr.mxu0 0.0
    %818 = vmatpush1.msra.mxu0 0.0
    %819 = vmatprep.subr.mxu0 0.0
    %820 = vmatpush1.msra.mxu0 0.0
    %821 = vmatprep.subr.mxu0 0.0
    %822 = vmatpush1.msra.mxu0 0.0
    %823 = vmatprep.subr.mxu0 0.0
    %824 = vmatpush1.msra.mxu0 0.0
    %825 = vmatprep.subr.mxu0 0.0
    %826 = vmatpush1.msra.mxu0 0.0
    %827 = vmatprep.subr.mxu0 0.0
    %828 = vmatpush1.msra.mxu0 0.0
    %829 = vmatprep.subr.mxu0 0.0
    %830 = vmatpush1.msra.mxu0 0.0
    %831 = vmatprep.subr.mxu0 0.0
    %832 = vmatpush1.msra.mxu0 0.0
    %833 = vmatprep.subr.mxu0 0.0
    %834 = vmatpush1.msra.mxu0 0.0
    %835 = vmatprep.subr.mxu0 0.0
    %836 = vmatpush1.msra.mxu0 0.0
    %837 = vmatprep.subr.mxu0 0.0
    %838 = vmatpush1.msra.mxu0 0.0
    %839 = vmatprep.subr.mxu0 0.0
    %840 = vmatpush1.msra.mxu0 0.0
    %841 = vmatprep.subr.mxu0 0.0
    %842 = vmatpush1.msra.mxu0 0.0
    %843 = vmatprep.subr.mxu0 0.0
    %844 = vmatpush1.msra.mxu0 0.0
    %845 = vmatprep.subr.mxu0 0.0
    %846 = vmatpush1.msra.mxu0 0.0
    %847 = vmatprep.subr.mxu0 0.0
    %848 = vmatpush1.msra.mxu0 0.0
    %849 = vmatprep.subr.mxu0 0.0
    %850 = vmatpush1.msra.mxu0 0.0
    %851 = vmatprep.subr.mxu0 0.0
    %852 = vmatpush1.msra.mxu0 0.0
    %853 = vmatprep.subr.mxu0 0.0
    %854 = vmatpush1.msra.mxu0 0.0
    %855 = vmatprep.subr.mxu0 0.0
    %856 = vmatpush1.msra.mxu0 0.0
    %857 = vmatprep.subr.mxu0 0.0
    %858 = vmatpush1.msra.mxu0 0.0
    %859 = vmatprep.subr.mxu0 0.0
    %860 = vmatpush1.msra.mxu0 0.0
    %861 = vmatprep.subr.mxu0 0.0
    %862 = vmatpush1.msra.mxu0 0.0
    %863 = vmatprep.subr.mxu0 0.0
    %864 = vmatpush1.msra.mxu0 0.0
    %865 = vmatprep.subr.mxu0 0.0
    %866 = vmatpush1.msra.mxu0 0.0
    %867 = vmatprep.subr.mxu0 0.0
    %868 = vmatpush1.msra.mxu0 0.0
    %869 = vmatprep.subr.mxu0 0.0
    %870 = vmatpush1.msra.mxu0 0.0
    %871 = vmatprep.subr.mxu0 0.0
    %872 = vmatpush1.msra.mxu0 0.0
    %873 = vmatprep.subr.mxu0 0.0
    %874 = vmatpush1.msra.mxu0 0.0
    %875 = vmatprep.mubr.f32.mxu0 0.0
    %876 = vmatmul.mubr.f32.gmra.mrb[0].mxu0 %v809
    %v877 = vpop.f32.mrb[0].mxu0
    %v878 = vadd.f32 0.0, %v877
    %v879 = vpop.f32.mrb[0].mxu0
    %880 = vdwg.mxu0
    %882 = vrot.lane.b32.xlu0 %v878, 16
    %v883 = vpop.permute.xlu0 %882
    %885 = vst.msk [vmem:[#allocation2 + $0x8] sm:$0xff] %vm541, %v883
    %v886 = vld [vmem:[#allocation2] sm:$0xff]
    %v887 = vld [vmem:[#allocation2 + $0x8] sm:$0xff]
    %v888 = vld [vmem:[%s6] sm:$0xff]
    %v889 = vld [vmem:[%s6 + $0x8] sm:$0xff]
    %v890 = vld [vmem:[%s6 + $0x10] sm:$0xff]
    %v891 = vld [vmem:[%s6 + $0x18] sm:$0xff]
    %v892 = vld [vmem:[%s7] sm:$0x1]
    %v894 = vlaneseq
    %v895 = vshrl.u32 %v894, 7
    %v896 = vsub.s32 0, %v895
    %v897 = vrot.slane %v892, %v896
    %v900 = vsel %vm58, %v886, 0
    %v903 = vsel %vm58, %v887, 0
    %905 = vmatprep.subr.mxu0 0.0
    %906 = vmatpush1.msra.mxu0 %v888
    %907 = vmatprep.subr.mxu0 0.0
    %908 = vmatpush1.msra.mxu0 %v889
    %909 = vmatprep.subr.mxu0 0.0
    %910 = vmatpush1.msra.mxu0 %v890
    %911 = vmatprep.subr.mxu0 0.0
    %912 = vmatpush1.msra.mxu0 %v891
    %913 = vmatprep.subr.mxu0 0.0
    %914 = vmatpush1.msra.mxu0 0.0
    %915 = vmatprep.subr.mxu0 0.0
    %916 = vmatpush1.msra.mxu0 0.0
    %917 = vmatprep.subr.mxu0 0.0
    %918 = vmatpush1.msra.mxu0 0.0
    %919 = vmatprep.subr.mxu0 0.0
    %920 = vmatpush1.msra.mxu0 0.0
    %921 = vmatprep.subr.mxu0 0.0
    %922 = vmatpush1.msra.mxu0 0.0
    %923 = vmatprep.subr.mxu0 0.0
    %924 = vmatpush1.msra.mxu0 0.0
    %925 = vmatprep.subr.mxu0 0.0
    %926 = vmatpush1.msra.mxu0 0.0
    %927 = vmatprep.subr.mxu0 0.0
    %928 = vmatpush1.msra.mxu0 0.0
    %929 = vmatprep.subr.mxu0 0.0
    %930 = vmatpush1.msra.mxu0 0.0
    %931 = vmatprep.subr.mxu0 0.0
    %932 = vmatpush1.msra.mxu0 0.0
    %933 = vmatprep.subr.mxu0 0.0
    %934 = vmatpush1.msra.mxu0 0.0
    %935 = vmatprep.subr.mxu0 0.0
    %936 = vmatpush1.msra.mxu0 0.0
    %937 = vmatprep.subr.mxu0 0.0
    %938 = vmatpush1.msra.mxu0 0.0
    %939 = vmatprep.subr.mxu0 0.0
    %940 = vmatpush1.msra.mxu0 0.0
    %941 = vmatprep.subr.mxu0 0.0
    %942 = vmatpush1.msra.mxu0 0.0
    %943 = vmatprep.subr.mxu0 0.0
    %944 = vmatpush1.msra.mxu0 0.0
    %945 = vmatprep.subr.mxu0 0.0
    %946 = vmatpush1.msra.mxu0 0.0
    %947 = vmatprep.subr.mxu0 0.0
    %948 = vmatpush1.msra.mxu0 0.0
    %949 = vmatprep.subr.mxu0 0.0
    %950 = vmatpush1.msra.mxu0 0.0
    %951 = vmatprep.subr.mxu0 0.0
    %952 = vmatpush1.msra.mxu0 0.0
    %953 = vmatprep.subr.mxu0 0.0
    %954 = vmatpush1.msra.mxu0 0.0
    %955 = vmatprep.subr.mxu0 0.0
    %956 = vmatpush1.msra.mxu0 0.0
    %957 = vmatprep.subr.mxu0 0.0
    %958 = vmatpush1.msra.mxu0 0.0
    %959 = vmatprep.subr.mxu0 0.0
    %960 = vmatpush1.msra.mxu0 0.0
    %961 = vmatprep.subr.mxu0 0.0
    %962 = vmatpush1.msra.mxu0 0.0
    %963 = vmatprep.subr.mxu0 0.0
    %964 = vmatpush1.msra.mxu0 0.0
    %965 = vmatprep.subr.mxu0 0.0
    %966 = vmatpush1.msra.mxu0 0.0
    %967 = vmatprep.subr.mxu0 0.0
    %968 = vmatpush1.msra.mxu0 0.0
    %969 = vmatprep.mubr.f32.mxu0 0.0
    %970 = vmatmul.mubr.f32.gmra.mrb[0].mxu0 %v900
    %v971 = vpop.f32.mrb[0].mxu0
    %v972 = vadd.f32 %v897, %v971
    %v973 = vpop.f32.mrb[0].mxu0
    %974 = vmatprep.mubr.f32.mxu0 0.0
    %975 = vmatmul.mubr.f32.gmra.mrb[0].mxu0 %v903
    %v976 = vpop.f32.mrb[0].mxu0
    %v977 = vadd.f32 %v897, %v976
    %v978 = vpop.f32.mrb[0].mxu0
    %979 = vdwg.mxu0
    %v980 = vadd.f32 %v972, %v100
    %v981 = vadd.f32 %v977, %v101
    %v982 = vld [vmem:[%s8] sm:$0x1]
    %v983 = vld [vmem:[%s9] sm:$0x1]
    %v984 = vsel %vm58, %v980, 0.0
    %985 = vadd.xlane.f32.xlu0 %v984
    %v986 = vpop.xlane.xlu0 %985
    %v987 = vsel %vm58, %v981, 0.0
    %988 = vadd.xlane.f32.xlu0 %v987
    %v989 = vpop.xlane.xlu0 %988
    %v990 = vmul.f32 %v986, %v65
    %v991 = vmul.f32 %v989, %v65
    %v992 = vsub.f32 %v980, %v990
    %v993 = vsub.f32 %v981, %v991
    %v994 = vmul.f32 %v992, %v992
    %v995 = vmul.f32 %v993, %v993
    %v996 = vsel %vm58, %v994, 0.0
    %997 = vadd.xlane.f32.xlu0 %v996
    %v998 = vpop.xlane.xlu0 %997
    %v999 = vsel %vm58, %v995, 0.0
    %1000 = vadd.xlane.f32.xlu0 %v999
    %v1001 = vpop.xlane.xlu0 %1000
    %v1002 = vmul.f32 %v998, %v65
    %v1003 = vmul.f32 %v1001, %v65
    %v1004 = vadd.f32 %v1002, 1e-12
    %v1005 = vadd.f32 %v1003, 1e-12
    %v1006 = vrsqrt.pop %v1004
    %v1007 = vrsqrt.pop %v1005
    %v1008 = vmul.f32 %v992, %v1006
    %v1009 = vmul.f32 %v993, %v1007
    %v1011 = vlaneseq
    %v1012 = vshrl.u32 %v1011, 7
    %v1013 = vsub.s32 0, %v1012
    %v1014 = vrot.slane %v982, %v1013
    %v1016 = vmul.f32 %v1008, %v1014
    %v1017 = vmul.f32 %v1009, %v1014
    %v1019 = vlaneseq
    %v1020 = vshrl.u32 %v1019, 7
    %v1021 = vsub.s32 0, %v1020
    %v1022 = vrot.slane %v983, %v1021
    %v1024 = vadd.f32 %v1016, %v1022
    %v1025 = vadd.f32 %v1017, %v1022
    %v1026 = vld [vmem:[%s10] sm:$0xff]
    %v1027 = vld [vmem:[%s10 + $0x8] sm:$0xff]
    %v1028 = vld [vmem:[%s10 + $0x10] sm:$0xff]
    %v1029 = vld [vmem:[%s10 + $0x18] sm:$0xff]
    %v1030 = vld [vmem:[%s11] sm:$0x1]
    %v1032 = vlaneseq
    %v1033 = vshrl.u32 %v1032, 7
    %v1034 = vsub.s32 0, %v1033
    %v1035 = vrot.slane %v1030, %v1034
    %v1038 = vsel %vm58, %v1024, 0
    %v1041 = vsel %vm58, %v1025, 0
    %1043 = vmatprep.subr.mxu0 0.0
    %1044 = vmatpush1.msra.mxu0 %v1026
    %1045 = vmatprep.subr.mxu0 0.0
    %1046 = vmatpush1.msra.mxu0 %v1027
    %1047 = vmatprep.subr.mxu0 0.0
    %1048 = vmatpush1.msra.mxu0 %v1028
    %1049 = vmatprep.subr.mxu0 0.0
    %1050 = vmatpush1.msra.mxu0 %v1029
    %1051 = vmatprep.subr.mxu0 0.0
    %1052 = vmatpush1.msra.mxu0 0.0
    %1053 = vmatprep.subr.mxu0 0.0
    %1054 = vmatpush1.msra.mxu0 0.0
    %1055 = vmatprep.subr.mxu0 0.0
    %1056 = vmatpush1.msra.mxu0 0.0
    %1057 = vmatprep.subr.mxu0 0.0
    %1058 = vmatpush1.msra.mxu0 0.0
    %1059 = vmatprep.subr.mxu0 0.0
    %1060 = vmatpush1.msra.mxu0 0.0
    %1061 = vmatprep.subr.mxu0 0.0
    %1062 = vmatpush1.msra.mxu0 0.0
    %1063 = vmatprep.subr.mxu0 0.0
    %1064 = vmatpush1.msra.mxu0 0.0
    %1065 = vmatprep.subr.mxu0 0.0
    %1066 = vmatpush1.msra.mxu0 0.0
    %1067 = vmatprep.subr.mxu0 0.0
    %1068 = vmatpush1.msra.mxu0 0.0
    %1069 = vmatprep.subr.mxu0 0.0
    %1070 = vmatpush1.msra.mxu0 0.0
    %1071 = vmatprep.subr.mxu0 0.0
    %1072 = vmatpush1.msra.mxu0 0.0
    %1073 = vmatprep.subr.mxu0 0.0
    %1074 = vmatpush1.msra.mxu0 0.0
    %1075 = vmatprep.subr.mxu0 0.0
    %1076 = vmatpush1.msra.mxu0 0.0
    %1077 = vmatprep.subr.mxu0 0.0
    %1078 = vmatpush1.msra.mxu0 0.0
    %1079 = vmatprep.subr.mxu0 0.0
    %1080 = vmatpush1.msra.mxu0 0.0
    %1081 = vmatprep.subr.mxu0 0.0
    %1082 = vmatpush1.msra.mxu0 0.0
    %1083 = vmatprep.subr.mxu0 0.0
    %1084 = vmatpush1.msra.mxu0 0.0
    %1085 = vmatprep.subr.mxu0 0.0
    %1086 = vmatpush1.msra.mxu0 0.0
    %1087 = vmatprep.subr.mxu0 0.0
    %1088 = vmatpush1.msra.mxu0 0.0
    %1089 = vmatprep.subr.mxu0 0.0
    %1090 = vmatpush1.msra.mxu0 0.0
    %1091 = vmatprep.subr.mxu0 0.0
    %1092 = vmatpush1.msra.mxu0 0.0
    %1093 = vmatprep.subr.mxu0 0.0
    %1094 = vmatpush1.msra.mxu0 0.0
    %1095 = vmatprep.subr.mxu0 0.0
    %1096 = vmatpush1.msra.mxu0 0.0
    %1097 = vmatprep.subr.mxu0 0.0
    %1098 = vmatpush1.msra.mxu0 0.0
    %1099 = vmatprep.subr.mxu0 0.0
    %1100 = vmatpush1.msra.mxu0 0.0
    %1101 = vmatprep.subr.mxu0 0.0
    %1102 = vmatpush1.msra.mxu0 0.0
    %1103 = vmatprep.subr.mxu0 0.0
    %1104 = vmatpush1.msra.mxu0 0.0
    %1105 = vmatprep.subr.mxu0 0.0
    %1106 = vmatpush1.msra.mxu0 0.0
    %1107 = vmatprep.mubr.f32.mxu0 0.0
    %1108 = vmatmul.mubr.f32.gmra.mrb[0].mxu0 %v1038
    %v1109 = vpop.f32.mrb[0].mxu0
    %v1110 = vadd.f32 %v1035, %v1109
    %v1111 = vpop.f32.mrb[0].mxu0
    %1112 = vmatprep.mubr.f32.mxu0 0.0
    %1113 = vmatmul.mubr.f32.gmra.mrb[0].mxu0 %v1041
    %v1114 = vpop.f32.mrb[0].mxu0
    %v1115 = vadd.f32 %v1035, %v1114
    %v1116 = vpop.f32.mrb[0].mxu0
    %1117 = vdwg.mxu0
    %v1118 = vmul.f32 %v1110, 0.5
    %v1119 = vmul.f32 %v1115, 0.5
    %v1120 = vmul.f32 %v1110, 0.044715
    %v1121 = vmul.f32 %v1115, 0.044715
    %v1122 = vmul.f32 %v1120, %v1110
    %v1123 = vmul.f32 %v1121, %v1115
    %v1124 = vmul.f32 %v1122, %v1110
    %v1125 = vmul.f32 %v1123, %v1115
    %v1126 = vadd.f32 %v1110, %v1124
    %v1127 = vadd.f32 %v1115, %v1125
    %v1128 = vmul.f32 %v1126, 0.7978846
    %v1129 = vmul.f32 %v1127, 0.7978846
    %v1130 = vtanh.pop %v1128
    %v1131 = vtanh.pop %v1129
    %v1132 = vadd.f32 %v1130, 1.0
    %v1133 = vadd.f32 %v1131, 1.0
    %v1134 = vmul.f32 %v1118, %v1132
    %v1135 = vmul.f32 %v1119, %v1133
    %v1136 = vld [vmem:[%s12] sm:$0xff]
    %v1137 = vld [vmem:[%s12 + $0x8] sm:$0xff]
    %v1138 = vld [vmem:[%s12 + $0x10] sm:$0xff]
    %v1139 = vld [vmem:[%s12 + $0x18] sm:$0xff]
    %v1140 = vld [vmem:[%s12 + $0x20] sm:$0xff]
    %v1141 = vld [vmem:[%s12 + $0x28] sm:$0xff]
    %v1142 = vld [vmem:[%s12 + $0x30] sm:$0xff]
    %v1143 = vld [vmem:[%s12 + $0x38] sm:$0xff]
    %v1144 = vld [vmem:[%s13] sm:$0x1]
    %v1146 = vlaneseq
    %v1147 = vshrl.u32 %v1146, 7
    %v1148 = vsub.s32 0, %v1147
    %v1149 = vrot.slane %v1144, %v1148
    %vm1151 = vcmask 523264
    %v1153 = vsel %vm1151, %v1134, 0
    %v1156 = vsel %vm1151, %v1135, 0
    %1158 = vmatprep.subr.mxu0 0.0
    %1159 = vmatpush1.msra.mxu0 %v1136
    %1160 = vmatprep.subr.mxu0 0.0
    %1161 = vmatpush1.msra.mxu0 %v1137
    %1162 = vmatprep.subr.mxu0 0.0
    %1163 = vmatpush1.msra.mxu0 %v1138
    %1164 = vmatprep.subr.mxu0 0.0
    %1165 = vmatpush1.msra.mxu0 %v1139
    %1166 = vmatprep.subr.mxu0 0.0
    %1167 = vmatpush1.msra.mxu0 %v1140
    %1168 = vmatprep.subr.mxu0 0.0
    %1169 = vmatpush1.msra.mxu0 %v1141
    %1170 = vmatprep.subr.mxu0 0.0
    %1171 = vmatpush1.msra.mxu0 %v1142
    %1172 = vmatprep.subr.mxu0 0.0
    %1173 = vmatpush1.msra.mxu0 %v1143
    %1174 = vmatprep.subr.mxu0 0.0
    %1175 = vmatpush1.msra.mxu0 0.0
    %1176 = vmatprep.subr.mxu0 0.0
    %1177 = vmatpush1.msra.mxu0 0.0
    %1178 = vmatprep.subr.mxu0 0.0
    %1179 = vmatpush1.msra.mxu0 0.0
    %1180 = vmatprep.subr.mxu0 0.0
    %1181 = vmatpush1.msra.mxu0 0.0
    %1182 = vmatprep.subr.mxu0 0.0
    %1183 = vmatpush1.msra.mxu0 0.0
    %1184 = vmatprep.subr.mxu0 0.0
    %1185 = vmatpush1.msra.mxu0 0.0
    %1186 = vmatprep.subr.mxu0 0.0
    %1187 = vmatpush1.msra.mxu0 0.0
    %1188 = vmatprep.subr.mxu0 0.0
    %1189 = vmatpush1.msra.mxu0 0.0
    %1190 = vmatprep.subr.mxu0 0.0
    %1191 = vmatpush1.msra.mxu0 0.0
    %1192 = vmatprep.subr.mxu0 0.0
    %1193 = vmatpush1.msra.mxu0 0.0
    %1194 = vmatprep.subr.mxu0 0.0
    %1195 = vmatpush1.msra.mxu0 0.0
    %1196 = vmatprep.subr.mxu0 0.0
    %1197 = vmatpush1.msra.mxu0 0.0
    %1198 = vmatprep.subr.mxu0 0.0
    %1199 = vmatpush1.msra.mxu0 0.0
    %1200 = vmatprep.subr.mxu0 0.0
    %1201 = vmatpush1.msra.mxu0 0.0
    %1202 = vmatprep.subr.mxu0 0.0
    %1203 = vmatpush1.msra.mxu0 0.0
    %1204 = vmatprep.subr.mxu0 0.0
    %1205 = vmatpush1.msra.mxu0 0.0
    %1206 = vmatprep.subr.mxu0 0.0
    %1207 = vmatpush1.msra.mxu0 0.0
    %1208 = vmatprep.subr.mxu0 0.0
    %1209 = vmatpush1.msra.mxu0 0.0
    %1210 = vmatprep.subr.mxu0 0.0
    %1211 = vmatpush1.msra.mxu0 0.0
    %1212 = vmatprep.subr.mxu0 0.0
    %1213 = vmatpush1.msra.mxu0 0.0
    %1214 = vmatprep.subr.mxu0 0.0
    %1215 = vmatpush1.msra.mxu0 0.0
    %1216 = vmatprep.subr.mxu0 0.0
    %1217 = vmatpush1.msra.mxu0 0.0
    %1218 = vmatprep.subr.mxu0 0.0
    %1219 = vmatpush1.msra.mxu0 0.0
    %1220 = vmatprep.subr.mxu0 0.0
    %1221 = vmatpush1.msra.mxu0 0.0
    %1222 = vmatprep.mubr.f32.mxu0 0.0
    %1223 = vmatmul.mubr.f32.gmra.mrb[0].mxu0 %v1153
    %v1224 = vpop.f32.mrb[0].mxu0
    %v1225 = vadd.f32 %v1149, %v1224
    %v1226 = vpop.f32.mrb[0].mxu0
    %1227 = vmatprep.mubr.f32.mxu0 0.0
    %1228 = vmatmul.mubr.f32.gmra.mrb[0].mxu0 %v1156
    %v1229 = vpop.f32.mrb[0].mxu0
    %v1230 = vadd.f32 %v1149, %v1229
    %v1231 = vpop.f32.mrb[0].mxu0
    %1232 = vdwg.mxu0
    %v1233 = vadd.f32 %v1225, %v1024
    %v1234 = vadd.f32 %v1230, %v1025
    %v1235 = vld [vmem:[%s14] sm:$0x1]
    %v1236 = vld [vmem:[%s15] sm:$0x1]
    %v1237 = vsel %vm58, %v1233, 0.0
    %1238 = vadd.xlane.f32.xlu0 %v1237
    %v1239 = vpop.xlane.xlu0 %1238
    %v1240 = vsel %vm58, %v1234, 0.0
    %1241 = vadd.xlane.f32.xlu0 %v1240
    %v1242 = vpop.xlane.xlu0 %1241
    %v1243 = vmul.f32 %v1239, %v65
    %v1244 = vmul.f32 %v1242, %v65
    %v1245 = vsub.f32 %v1233, %v1243
    %v1246 = vsub.f32 %v1234, %v1244
    %v1247 = vmul.f32 %v1245, %v1245
    %v1248 = vmul.f32 %v1246, %v1246
    %v1249 = vsel %vm58, %v1247, 0.0
    %1250 = vadd.xlane.f32.xlu0 %v1249
    %v1251 = vpop.xlane.xlu0 %1250
    %v1252 = vsel %vm58, %v1248, 0.0
    %1253 = vadd.xlane.f32.xlu0 %v1252
    %v1254 = vpop.xlane.xlu0 %1253
    %v1255 = vmul.f32 %v1251, %v65
    %v1256 = vmul.f32 %v1254, %v65
    %v1257 = vadd.f32 %v1255, 1e-12
    %v1258 = vadd.f32 %v1256, 1e-12
    %v1259 = vrsqrt.pop %v1257
    %v1260 = vrsqrt.pop %v1258
    %v1261 = vmul.f32 %v1245, %v1259
    %v1262 = vmul.f32 %v1246, %v1260
    %v1264 = vlaneseq
    %v1265 = vshrl.u32 %v1264, 7
    %v1266 = vsub.s32 0, %v1265
    %v1267 = vrot.slane %v1235, %v1266
    %v1269 = vmul.f32 %v1261, %v1267
    %v1270 = vmul.f32 %v1262, %v1267
    %v1272 = vlaneseq
    %v1273 = vshrl.u32 %v1272, 7
    %v1274 = vsub.s32 0, %v1273
    %v1275 = vrot.slane %v1236, %v1274
    %v1277 = vadd.f32 %v1269, %v1275
    %v1278 = vadd.f32 %v1270, %v1275
    %s1279 = scalar_lea.vmem %s4, 32
    %v1280 = vld [vmem:[%s1279] sm:$0xff]
    %v1281 = vld [vmem:[%s1279 + $0x8] sm:$0xff]
    %v1282 = vld [vmem:[%s1279 + $0x10] sm:$0xff]
    %v1283 = vld [vmem:[%s1279 + $0x18] sm:$0xff]
    %s1284 = scalar_lea.vmem %s5, 1
    %v1285 = vld [vmem:[%s1284] sm:$0x1]
    %v1287 = vlaneseq
    %v1288 = vshrl.u32 %v1287, 7
    %v1289 = vsub.s32 0, %v1288
    %v1290 = vrot.slane %v1285, %v1289
    %v1293 = vsel %vm58, %v1277, 0
    %v1296 = vsel %vm58, %v1278, 0
    %1298 = vmatprep.subr.mxu0 0.0
    %1299 = vmatpush1.msra.mxu0 %v1280
    %1300 = vmatprep.subr.mxu0 0.0
    %1301 = vmatpush1.msra.mxu0 %v1281
    %1302 = vmatprep.subr.mxu0 0.0
    %1303 = vmatpush1.msra.mxu0 %v1282
    %1304 = vmatprep.subr.mxu0 0.0
    %1305 = vmatpush1.msra.mxu0 %v1283
    %1306 = vmatprep.subr.mxu0 0.0
    %1307 = vmatpush1.msra.mxu0 0.0
    %1308 = vmatprep.subr.mxu0 0.0
    %1309 = vmatpush1.msra.mxu0 0.0
    %1310 = vmatprep.subr.mxu0 0.0
    %1311 = vmatpush1.msra.mxu0 0.0
    %1312 = vmatprep.subr.mxu0 0.0
    %1313 = vmatpush1.msra.mxu0 0.0
    %1314 = vmatprep.subr.mxu0 0.0
    %1315 = vmatpush1.msra.mxu0 0.0
    %1316 = vmatprep.subr.mxu0 0.0
    %1317 = vmatpush1.msra.mxu0 0.0
    %1318 = vmatprep.subr.mxu0 0.0
    %1319 = vmatpush1.msra.mxu0 0.0
    %1320 = vmatprep.subr.mxu0 0.0
    %1321 = vmatpush1.msra.mxu0 0.0
    %1322 = vmatprep.subr.mxu0 0.0
    %1323 = vmatpush1.msra.mxu0 0.0
    %1324 = vmatprep.subr.mxu0 0.0
    %1325 = vmatpush1.msra.mxu0 0.0
    %1326 = vmatprep.subr.mxu0 0.0
    %1327 = vmatpush1.msra.mxu0 0.0
    %1328 = vmatprep.subr.mxu0 0.0
    %1329 = vmatpush1.msra.mxu0 0.0
    %1330 = vmatprep.subr.mxu0 0.0
    %1331 = vmatpush1.msra.mxu0 0.0
    %1332 = vmatprep.subr.mxu0 0.0
    %1333 = vmatpush1.msra.mxu0 0.0
    %1334 = vmatprep.subr.mxu0 0.0
    %1335 = vmatpush1.msra.mxu0 0.0
    %1336 = vmatprep.subr.mxu0 0.0
    %1337 = vmatpush1.msra.mxu0 0.0
    %1338 = vmatprep.subr.mxu0 0.0
    %1339 = vmatpush1.msra.mxu0 0.0
    %1340 = vmatprep.subr.mxu0 0.0
    %1341 = vmatpush1.msra.mxu0 0.0
    %1342 = vmatprep.subr.mxu0 0.0
    %1343 = vmatpush1.msra.mxu0 0.0
    %1344 = vmatprep.subr.mxu0 0.0
    %1345 = vmatpush1.msra.mxu0 0.0
    %1346 = vmatprep.subr.mxu0 0.0
    %1347 = vmatpush1.msra.mxu0 0.0
    %1348 = vmatprep.subr.mxu0 0.0
    %1349 = vmatpush1.msra.mxu0 0.0
    %1350 = vmatprep.subr.mxu0 0.0
    %1351 = vmatpush1.msra.mxu0 0.0
    %1352 = vmatprep.subr.mxu0 0.0
    %1353 = vmatpush1.msra.mxu0 0.0
    %1354 = vmatprep.subr.mxu0 0.0
    %1355 = vmatpush1.msra.mxu0 0.0
    %1356 = vmatprep.subr.mxu0 0.0
    %1357 = vmatpush1.msra.mxu0 0.0
    %1358 = vmatprep.subr.mxu0 0.0
    %1359 = vmatpush1.msra.mxu0 0.0
    %1360 = vmatprep.subr.mxu0 0.0
    %1361 = vmatpush1.msra.mxu0 0.0
    %1362 = vmatprep.mubr.f32.mxu0 0.0
    %1363 = vmatmul.mubr.f32.gmra.mrb[0].mxu0 %v1293
    %v1364 = vpop.f32.mrb[0].mxu0
    %v1365 = vadd.f32 %v1290, %v1364
    %v1366 = vpop.f32.mrb[0].mxu0
    %1367 = vmatprep.mubr.f32.mxu0 0.0
    %1368 = vmatmul.mubr.f32.gmra.mrb[0].mxu0 %v1296
    %v1369 = vpop.f32.mrb[0].mxu0
    %v1370 = vadd.f32 %v1290, %v1369
    %v1371 = vpop.f32.mrb[0].mxu0
    %1372 = vdwg.mxu0
    %1374 = vrot.lane.b32.xlu0 %v1365, 96
    %v1375 = vpop.permute.xlu0 %1374
    %v1376 = vsel %vm200, %v1365, 0
    %v1378 = vsel %vm200, %v1375, 0
    %1380 = vmatprep.subr.mxu0 0.0
    %1381 = vmatpush1.xpose.msra.mxu0 %v1378
    %1382 = vmatprep.subr.mxu0 0.0
    %1383 = vmatpush1.xpose.msra.mxu0 0.0
    %1384 = vmatprep.subr.mxu0 0.0
    %1385 = vmatpush1.xpose.msra.mxu0 0.0
    %1386 = vmatprep.subr.mxu0 0.0
    %1387 = vmatpush1.xpose.msra.mxu0 0.0
    %1388 = vmatprep.subr.mxu0 0.0
    %1389 = vmatpush1.xpose.msra.mxu0 0.0
    %1390 = vmatprep.subr.mxu0 0.0
    %1391 = vmatpush1.xpose.msra.mxu0 0.0
    %1392 = vmatprep.subr.mxu0 0.0
    %1393 = vmatpush1.xpose.msra.mxu0 0.0
    %1394 = vmatprep.subr.mxu0 0.0
    %1395 = vmatpush1.xpose.msra.mxu0 0.0
    %1396 = vmatprep.subr.mxu0 0.0
    %1397 = vmatpush1.xpose.msra.mxu0 0.0
    %1398 = vmatprep.subr.mxu0 0.0
    %1399 = vmatpush1.xpose.msra.mxu0 0.0
    %1400 = vmatprep.subr.mxu0 0.0
    %1401 = vmatpush1.xpose.msra.mxu0 0.0
    %1402 = vmatprep.subr.mxu0 0.0
    %1403 = vmatpush1.xpose.msra.mxu0 0.0
    %1404 = vmatprep.subr.mxu0 0.0
    %1405 = vmatpush1.xpose.msra.mxu0 0.0
    %1406 = vmatprep.subr.mxu0 0.0
    %1407 = vmatpush1.xpose.msra.mxu0 0.0
    %1408 = vmatprep.subr.mxu0 0.0
    %1409 = vmatpush1.xpose.msra.mxu0 0.0
    %1410 = vmatprep.subr.mxu0 0.0
    %1411 = vmatpush1.xpose.msra.mxu0 0.0
    %1412 = vmatprep.subr.mxu0 0.0
    %1413 = vmatpush1.xpose.msra.mxu0 0.0
    %1414 = vmatprep.subr.mxu0 0.0
    %1415 = vmatpush1.xpose.msra.mxu0 0.0
    %1416 = vmatprep.subr.mxu0 0.0
    %1417 = vmatpush1.xpose.msra.mxu0 0.0
    %1418 = vmatprep.subr.mxu0 0.0
    %1419 = vmatpush1.xpose.msra.mxu0 0.0
    %1420 = vmatprep.subr.mxu0 0.0
    %1421 = vmatpush1.xpose.msra.mxu0 0.0
    %1422 = vmatprep.subr.mxu0 0.0
    %1423 = vmatpush1.xpose.msra.mxu0 0.0
    %1424 = vmatprep.subr.mxu0 0.0
    %1425 = vmatpush1.xpose.msra.mxu0 0.0
    %1426 = vmatprep.subr.mxu0 0.0
    %1427 = vmatpush1.xpose.msra.mxu0 0.0
    %1428 = vmatprep.subr.mxu0 0.0
    %1429 = vmatpush1.xpose.msra.mxu0 0.0
    %1430 = vmatprep.subr.mxu0 0.0
    %1431 = vmatpush1.xpose.msra.mxu0 0.0
    %1432 = vmatprep.subr.mxu0 0.0
    %1433 = vmatpush1.xpose.msra.mxu0 0.0
    %1434 = vmatprep.subr.mxu0 0.0
    %1435 = vmatpush1.xpose.msra.mxu0 0.0
    %1436 = vmatprep.subr.mxu0 0.0
    %1437 = vmatpush1.xpose.msra.mxu0 0.0
    %1438 = vmatprep.subr.mxu0 0.0
    %1439 = vmatpush1.xpose.msra.mxu0 0.0
    %1440 = vmatprep.subr.mxu0 0.0
    %1441 = vmatpush1.xpose.msra.mxu0 0.0
    %1442 = vmatprep.subr.mxu0 0.0
    %1443 = vmatpush1.xpose.msra.mxu0 0.0
    %1444 = vmatprep.mubr.f32.mxu0 0.0
    %1445 = vmatmul.mubr.f32.gmra.mrb[0].mxu0 %v1376
    %v1446 = vpop.f32.mrb[0].mxu0
    %v1447 = vadd.f32 0.0, %v1446
    %v1448 = vpop.f32.mrb[0].mxu0
    %1449 = vdwg.mxu0
    %v1450 = vmul.f32 %v1447, 0.25
    %v1451 = vadd.f32 %v1450, %v279
    %v1452 = vsel %vm281, %v1451, -inf
    %1453 = vmax.xlane.f32.xlu0 %v1452
    %v1454 = vpop.xlane.xlu0 %1453
    %v1455 = vsub.f32 %v1451, %v1454
    %v1456 = vmul.f32 %v1455, 1.442695
    %v1457 = vpow.pop %v1456
    %v1458 = vsel %vm281, %v1457, 0.0
    %1459 = vadd.xlane.f32.xlu0 %v1458
    %v1460 = vpop.xlane.xlu0 %1459
    %v1461 = vrcp.pop %v1460
    %v1462 = vmul.f32 %v1457, %v1461
    %1463 = vrot.lane.b32.xlu0 %v1365, 64
    %v1464 = vpop.permute.xlu0 %1463
    %v1467 = vsel %vm281, %v1462, 0
    %1469 = vmatprep.subr.mxu0 0.0
    %1470 = vmatpush1.msra.mxu0 %v1464
    %1471 = vmatprep.subr.mxu0 0.0
    %1472 = vmatpush1.msra.mxu0 0.0
    %1473 = vmatprep.subr.mxu0 0.0
    %1474 = vmatpush1.msra.mxu0 0.0
    %1475 = vmatprep.subr.mxu0 0.0
    %1476 = vmatpush1.msra.mxu0 0.0
    %1477 = vmatprep.subr.mxu0 0.0
    %1478 = vmatpush1.msra.mxu0 0.0
    %1479 = vmatprep.subr.mxu0 0.0
    %1480 = vmatpush1.msra.mxu0 0.0
    %1481 = vmatprep.subr.mxu0 0.0
    %1482 = vmatpush1.msra.mxu0 0.0
    %1483 = vmatprep.subr.mxu0 0.0
    %1484 = vmatpush1.msra.mxu0 0.0
    %1485 = vmatprep.subr.mxu0 0.0
    %1486 = vmatpush1.msra.mxu0 0.0
    %1487 = vmatprep.subr.mxu0 0.0
    %1488 = vmatpush1.msra.mxu0 0.0
    %1489 = vmatprep.subr.mxu0 0.0
    %1490 = vmatpush1.msra.mxu0 0.0
    %1491 = vmatprep.subr.mxu0 0.0
    %1492 = vmatpush1.msra.mxu0 0.0
    %1493 = vmatprep.subr.mxu0 0.0
    %1494 = vmatpush1.msra.mxu0 0.0
    %1495 = vmatprep.subr.mxu0 0.0
    %1496 = vmatpush1.msra.mxu0 0.0
    %1497 = vmatprep.subr.mxu0 0.0
    %1498 = vmatpush1.msra.mxu0 0.0
    %1499 = vmatprep.subr.mxu0 0.0
    %1500 = vmatpush1.msra.mxu0 0.0
    %1501 = vmatprep.subr.mxu0 0.0
    %1502 = vmatpush1.msra.mxu0 0.0
    %1503 = vmatprep.subr.mxu0 0.0
    %1504 = vmatpush1.msra.mxu0 0.0
    %1505 = vmatprep.subr.mxu0 0.0
    %1506 = vmatpush1.msra.mxu0 0.0
    %1507 = vmatprep.subr.mxu0 0.0
    %1508 = vmatpush1.msra.mxu0 0.0
    %1509 = vmatprep.subr.mxu0 0.0
    %1510 = vmatpush1.msra.mxu0 0.0
    %1511 = vmatprep.subr.mxu0 0.0
    %1512 = vmatpush1.msra.mxu0 0.0
    %1513 = vmatprep.subr.mxu0 0.0
    %1514 = vmatpush1.msra.mxu0 0.0
    %1515 = vmatprep.subr.mxu0 0.0
    %1516 = vmatpush1.msra.mxu0 0.0
    %1517 = vmatprep.subr.mxu0 0.0
    %1518 = vmatpush1.msra.mxu0 0.0
    %1519 = vmatprep.subr.mxu0 0.0
    %1520 = vmatpush1.msra.mxu0 0.0
    %1521 = vmatprep.subr.mxu0 0.0
    %1522 = vmatpush1.msra.mxu0 0.0
    %1523 = vmatprep.subr.mxu0 0.0
    %1524 = vmatpush1.msra.mxu0 0.0
    %1525 = vmatprep.subr.mxu0 0.0
    %1526 = vmatpush1.msra.mxu0 0.0
    %1527 = vmatprep.subr.mxu0 0.0
    %1528 = vmatpush1.msra.mxu0 0.0
    %1529 = vmatprep.subr.mxu0 0.0
    %1530 = vmatpush1.msra.mxu0 0.0
    %1531 = vmatprep.subr.mxu0 0.0
    %1532 = vmatpush1.msra.mxu0 0.0
    %1533 = vmatprep.mubr.f32.mxu0 0.0
    %1534 = vmatmul.mubr.f32.gmra.mrb[0].mxu0 %v1467
    %v1535 = vpop.f32.mrb[0].mxu0
    %v1536 = vadd.f32 0.0, %v1535
    %v1537 = vpop.f32.mrb[0].mxu0
    %1538 = vdwg.mxu0
    %1539 = vst.msk [vmem:[#allocation2] sm:$0xff] %vm200, %v1536
    %1540 = vrot.lane.b32.xlu0 %v1365, 112
    %v1541 = vpop.permute.xlu0 %1540
    %1542 = vrot.lane.b32.xlu0 %v1365, 80
    %v1543 = vpop.permute.xlu0 %1542
    %v1544 = vsel %vm200, %v1541, 0
    %v1546 = vsel %vm200, %v1543, 0
    %1548 = vmatprep.subr.mxu0 0.0
    %1549 = vmatpush1.xpose.msra.mxu0 %v1546
    %1550 = vmatprep.subr.mxu0 0.0
    %1551 = vmatpush1.xpose.msra.mxu0 0.0
    %1552 = vmatprep.subr.mxu0 0.0
    %1553 = vmatpush1.xpose.msra.mxu0 0.0
    %1554 = vmatprep.subr.mxu0 0.0
    %1555 = vmatpush1.xpose.msra.mxu0 0.0
    %1556 = vmatprep.subr.mxu0 0.0
    %1557 = vmatpush1.xpose.msra.mxu0 0.0
    %1558 = vmatprep.subr.mxu0 0.0
    %1559 = vmatpush1.xpose.msra.mxu0 0.0
    %1560 = vmatprep.subr.mxu0 0.0
    %1561 = vmatpush1.xpose.msra.mxu0 0.0
    %1562 = vmatprep.subr.mxu0 0.0
    %1563 = vmatpush1.xpose.msra.mxu0 0.0
    %1564 = vmatprep.subr.mxu0 0.0
    %1565 = vmatpush1.xpose.msra.mxu0 0.0
    %1566 = vmatprep.subr.mxu0 0.0
    %1567 = vmatpush1.xpose.msra.mxu0 0.0
    %1568 = vmatprep.subr.mxu0 0.0
    %1569 = vmatpush1.xpose.msra.mxu0 0.0
    %1570 = vmatprep.subr.mxu0 0.0
    %1571 = vmatpush1.xpose.msra.mxu0 0.0
    %1572 = vmatprep.subr.mxu0 0.0
    %1573 = vmatpush1.xpose.msra.mxu0 0.0
    %1574 = vmatprep.subr.mxu0 0.0
    %1575 = vmatpush1.xpose.msra.mxu0 0.0
    %1576 = vmatprep.subr.mxu0 0.0
    %1577 = vmatpush1.xpose.msra.mxu0 0.0
    %1578 = vmatprep.subr.mxu0 0.0
    %1579 = vmatpush1.xpose.msra.mxu0 0.0
    %1580 = vmatprep.subr.mxu0 0.0
    %1581 = vmatpush1.xpose.msra.mxu0 0.0
    %1582 = vmatprep.subr.mxu0 0.0
    %1583 = vmatpush1.xpose.msra.mxu0 0.0
    %1584 = vmatprep.subr.mxu0 0.0
    %1585 = vmatpush1.xpose.msra.mxu0 0.0
    %1586 = vmatprep.subr.mxu0 0.0
    %1587 = vmatpush1.xpose.msra.mxu0 0.0
    %1588 = vmatprep.subr.mxu0 0.0
    %1589 = vmatpush1.xpose.msra.mxu0 0.0
    %1590 = vmatprep.subr.mxu0 0.0
    %1591 = vmatpush1.xpose.msra.mxu0 0.0
    %1592 = vmatprep.subr.mxu0 0.0
    %1593 = vmatpush1.xpose.msra.mxu0 0.0
    %1594 = vmatprep.subr.mxu0 0.0
    %1595 = vmatpush1.xpose.msra.mxu0 0.0
    %1596 = vmatprep.subr.mxu0 0.0
    %1597 = vmatpush1.xpose.msra.mxu0 0.0
    %1598 = vmatprep.subr.mxu0 0.0
    %1599 = vmatpush1.xpose.msra.mxu0 0.0
    %1600 = vmatprep.subr.mxu0 0.0
    %1601 = vmatpush1.xpose.msra.mxu0 0.0
    %1602 = vmatprep.subr.mxu0 0.0
    %1603 = vmatpush1.xpose.msra.mxu0 0.0
    %1604 = vmatprep.subr.mxu0 0.0
    %1605 = vmatpush1.xpose.msra.mxu0 0.0
    %1606 = vmatprep.subr.mxu0 0.0
    %1607 = vmatpush1.xpose.msra.mxu0 0.0
    %1608 = vmatprep.subr.mxu0 0.0
    %1609 = vmatpush1.xpose.msra.mxu0 0.0
    %1610 = vmatprep.subr.mxu0 0.0
    %1611 = vmatpush1.xpose.msra.mxu0 0.0
    %1612 = vmatprep.mubr.f32.mxu0 0.0
    %1613 = vmatmul.mubr.f32.gmra.mrb[0].mxu0 %v1544
    %v1614 = vpop.f32.mrb[0].mxu0
    %v1615 = vadd.f32 0.0, %v1614
    %v1616 = vpop.f32.mrb[0].mxu0
    %1617 = vdwg.mxu0
    %v1618 = vmul.f32 %v1615, 0.25
    %v1619 = vadd.f32 %v1618, %v279
    %v1620 = vsel %vm281, %v1619, -inf
    %1621 = vmax.xlane.f32.xlu0 %v1620
    %v1622 = vpop.xlane.xlu0 %1621
    %v1623 = vsub.f32 %v1619, %v1622
    %v1624 = vmul.f32 %v1623, 1.442695
    %v1625 = vpow.pop %v1624
    %v1626 = vsel %vm281, %v1625, 0.0
    %1627 = vadd.xlane.f32.xlu0 %v1626
    %v1628 = vpop.xlane.xlu0 %1627
    %v1629 = vrcp.pop %v1628
    %v1630 = vmul.f32 %v1625, %v1629
    %1631 = vrot.lane.b32.xlu0 %v1365, 48
    %v1632 = vpop.permute.xlu0 %1631
    %v1635 = vsel %vm281, %v1630, 0
    %1637 = vmatprep.subr.mxu0 0.0
    %1638 = vmatpush1.msra.mxu0 %v1632
    %1639 = vmatprep.subr.mxu0 0.0
    %1640 = vmatpush1.msra.mxu0 0.0
    %1641 = vmatprep.subr.mxu0 0.0
    %1642 = vmatpush1.msra.mxu0 0.0
    %1643 = vmatprep.subr.mxu0 0.0
    %1644 = vmatpush1.msra.mxu0 0.0
    %1645 = vmatprep.subr.mxu0 0.0
    %1646 = vmatpush1.msra.mxu0 0.0
    %1647 = vmatprep.subr.mxu0 0.0
    %1648 = vmatpush1.msra.mxu0 0.0
    %1649 = vmatprep.subr.mxu0 0.0
    %1650 = vmatpush1.msra.mxu0 0.0
    %1651 = vmatprep.subr.mxu0 0.0
    %1652 = vmatpush1.msra.mxu0 0.0
    %1653 = vmatprep.subr.mxu0 0.0
    %1654 = vmatpush1.msra.mxu0 0.0
    %1655 = vmatprep.subr.mxu0 0.0
    %1656 = vmatpush1.msra.mxu0 0.0
    %1657 = vmatprep.subr.mxu0 0.0
    %1658 = vmatpush1.msra.mxu0 0.0
    %1659 = vmatprep.subr.mxu0 0.0
    %1660 = vmatpush1.msra.mxu0 0.0
    %1661 = vmatprep.subr.mxu0 0.0
    %1662 = vmatpush1.msra.mxu0 0.0
    %1663 = vmatprep.subr.mxu0 0.0
    %1664 = vmatpush1.msra.mxu0 0.0
    %1665 = vmatprep.subr.mxu0 0.0
    %1666 = vmatpush1.msra.mxu0 0.0
    %1667 = vmatprep.subr.mxu0 0.0
    %1668 = vmatpush1.msra.mxu0 0.0
    %1669 = vmatprep.subr.mxu0 0.0
    %1670 = vmatpush1.msra.mxu0 0.0
    %1671 = vmatprep.subr.mxu0 0.0
    %1672 = vmatpush1.msra.mxu0 0.0
    %1673 = vmatprep.subr.mxu0 0.0
    %1674 = vmatpush1.msra.mxu0 0.0
    %1675 = vmatprep.subr.mxu0 0.0
    %1676 = vmatpush1.msra.mxu0 0.0
    %1677 = vmatprep.subr.mxu0 0.0
    %1678 = vmatpush1.msra.mxu0 0.0
    %1679 = vmatprep.subr.mxu0 0.0
    %1680 = vmatpush1.msra.mxu0 0.0
    %1681 = vmatprep.subr.mxu0 0.0
    %1682 = vmatpush1.msra.mxu0 0.0
    %1683 = vmatprep.subr.mxu0 0.0
    %1684 = vmatpush1.msra.mxu0 0.0
    %1685 = vmatprep.subr.mxu0 0.0
    %1686 = vmatpush1.msra.mxu0 0.0
    %1687 = vmatprep.subr.mxu0 0.0
    %1688 = vmatpush1.msra.mxu0 0.0
    %1689 = vmatprep.subr.mxu0 0.0
    %1690 = vmatpush1.msra.mxu0 0.0
    %1691 = vmatprep.subr.mxu0 0.0
    %1692 = vmatpush1.msra.mxu0 0.0
    %1693 = vmatprep.subr.mxu0 0.0
    %1694 = vmatpush1.msra.mxu0 0.0
    %1695 = vmatprep.subr.mxu0 0.0
    %1696 = vmatpush1.msra.mxu0 0.0
    %1697 = vmatprep.subr.mxu0 0.0
    %1698 = vmatpush1.msra.mxu0 0.0
    %1699 = vmatprep.subr.mxu0 0.0
    %1700 = vmatpush1.msra.mxu0 0.0
    %1701 = vmatprep.mubr.f32.mxu0 0.0
    %1702 = vmatmul.mubr.f32.gmra.mrb[0].mxu0 %v1635
    %v1703 = vpop.f32.mrb[0].mxu0
    %v1704 = vadd.f32 0.0, %v1703
    %v1705 = vpop.f32.mrb[0].mxu0
    %1706 = vdwg.mxu0
    %1708 = vrot.lane.b32.xlu0 %v1704, 16
    %v1709 = vpop.permute.xlu0 %1708
    %1711 = vst.msk [vmem:[#allocation2] sm:$0xff] %vm541, %v1709
    %1713 = vrot.lane.b32.xlu0 %v1370, 96
    %v1714 = vpop.permute.xlu0 %1713
    %v1715 = vsel %vm200, %v1370, 0
    %v1717 = vsel %vm200, %v1714, 0
    %1719 = vmatprep.subr.mxu0 0.0
    %1720 = vmatpush1.xpose.msra.mxu0 %v1717
    %1721 = vmatprep.subr.mxu0 0.0
    %1722 = vmatpush1.xpose.msra.mxu0 0.0
    %1723 = vmatprep.subr.mxu0 0.0
    %1724 = vmatpush1.xpose.msra.mxu0 0.0
    %1725 = vmatprep.subr.mxu0 0.0
    %1726 = vmatpush1.xpose.msra.mxu0 0.0
    %1727 = vmatprep.subr.mxu0 0.0
    %1728 = vmatpush1.xpose.msra.mxu0 0.0
    %1729 = vmatprep.subr.mxu0 0.0
    %1730 = vmatpush1.xpose.msra.mxu0 0.0
    %1731 = vmatprep.subr.mxu0 0.0
    %1732 = vmatpush1.xpose.msra.mxu0 0.0
    %1733 = vmatprep.subr.mxu0 0.0
    %1734 = vmatpush1.xpose.msra.mxu0 0.0
    %1735 = vmatprep.subr.mxu0 0.0
    %1736 = vmatpush1.xpose.msra.mxu0 0.0
    %1737 = vmatprep.subr.mxu0 0.0
    %1738 = vmatpush1.xpose.msra.mxu0 0.0
    %1739 = vmatprep.subr.mxu0 0.0
    %1740 = vmatpush1.xpose.msra.mxu0 0.0
    %1741 = vmatprep.subr.mxu0 0.0
    %1742 = vmatpush1.xpose.msra.mxu0 0.0
    %1743 = vmatprep.subr.mxu0 0.0
    %1744 = vmatpush1.xpose.msra.mxu0 0.0
    %1745 = vmatprep.subr.mxu0 0.0
    %1746 = vmatpush1.xpose.msra.mxu0 0.0
    %1747 = vmatprep.subr.mxu0 0.0
    %1748 = vmatpush1.xpose.msra.mxu0 0.0
    %1749 = vmatprep.subr.mxu0 0.0
    %1750 = vmatpush1.xpose.msra.mxu0 0.0
    %1751 = vmatprep.subr.mxu0 0.0
    %1752 = vmatpush1.xpose.msra.mxu0 0.0
    %1753 = vmatprep.subr.mxu0 0.0
    %1754 = vmatpush1.xpose.msra.mxu0 0.0
    %1755 = vmatprep.subr.mxu0 0.0
    %1756 = vmatpush1.xpose.msra.mxu0 0.0
    %1757 = vmatprep.subr.mxu0 0.0
    %1758 = vmatpush1.xpose.msra.mxu0 0.0
    %1759 = vmatprep.subr.mxu0 0.0
    %1760 = vmatpush1.xpose.msra.mxu0 0.0
    %1761 = vmatprep.subr.mxu0 0.0
    %1762 = vmatpush1.xpose.msra.mxu0 0.0
    %1763 = vmatprep.subr.mxu0 0.0
    %1764 = vmatpush1.xpose.msra.mxu0 0.0
    %1765 = vmatprep.subr.mxu0 0.0
    %1766 = vmatpush1.xpose.msra.mxu0 0.0
    %1767 = vmatprep.subr.mxu0 0.0
    %1768 = vmatpush1.xpose.msra.mxu0 0.0
    %1769 = vmatprep.subr.mxu0 0.0
    %1770 = vmatpush1.xpose.msra.mxu0 0.0
    %1771 = vmatprep.subr.mxu0 0.0
    %1772 = vmatpush1.xpose.msra.mxu0 0.0
    %1773 = vmatprep.subr.mxu0 0.0
    %1774 = vmatpush1.xpose.msra.mxu0 0.0
    %1775 = vmatprep.subr.mxu0 0.0
    %1776 = vmatpush1.xpose.msra.mxu0 0.0
    %1777 = vmatprep.subr.mxu0 0.0
    %1778 = vmatpush1.xpose.msra.mxu0 0.0
    %1779 = vmatprep.subr.mxu0 0.0
    %1780 = vmatpush1.xpose.msra.mxu0 0.0
    %1781 = vmatprep.subr.mxu0 0.0
    %1782 = vmatpush1.xpose.msra.mxu0 0.0
    %1783 = vmatprep.mubr.f32.mxu0 0.0
    %1784 = vmatmul.mubr.f32.gmra.mrb[0].mxu0 %v1715
    %v1785 = vpop.f32.mrb[0].mxu0
    %v1786 = vadd.f32 0.0, %v1785
    %v1787 = vpop.f32.mrb[0].mxu0
    %1788 = vdwg.mxu0
    %v1789 = vmul.f32 %v1786, 0.25
    %v1790 = vadd.f32 %v1789, %v624
    %v1791 = vsel %vm281, %v1790, -inf
    %1792 = vmax.xlane.f32.xlu0 %v1791
    %v1793 = vpop.xlane.xlu0 %1792
    %v1794 = vsub.f32 %v1790, %v1793
    %v1795 = vmul.f32 %v1794, 1.442695
    %v1796 = vpow.pop %v1795
    %v1797 = vsel %vm281, %v1796, 0.0
    %1798 = vadd.xlane.f32.xlu0 %v1797
    %v1799 = vpop.xlane.xlu0 %1798
    %v1800 = vrcp.pop %v1799
    %v1801 = vmul.f32 %v1796, %v1800
    %1802 = vrot.lane.b32.xlu0 %v1370, 64
    %v1803 = vpop.permute.xlu0 %1802
    %v1806 = vsel %vm281, %v1801, 0
    %1808 = vmatprep.subr.mxu0 0.0
    %1809 = vmatpush1.msra.mxu0 %v1803
    %1810 = vmatprep.subr.mxu0 0.0
    %1811 = vmatpush1.msra.mxu0 0.0
    %1812 = vmatprep.subr.mxu0 0.0
    %1813 = vmatpush1.msra.mxu0 0.0
    %1814 = vmatprep.subr.mxu0 0.0
    %1815 = vmatpush1.msra.mxu0 0.0
    %1816 = vmatprep.subr.mxu0 0.0
    %1817 = vmatpush1.msra.mxu0 0.0
    %1818 = vmatprep.subr.mxu0 0.0
    %1819 = vmatpush1.msra.mxu0 0.0
    %1820 = vmatprep.subr.mxu0 0.0
    %1821 = vmatpush1.msra.mxu0 0.0
    %1822 = vmatprep.subr.mxu0 0.0
    %1823 = vmatpush1.msra.mxu0 0.0
    %1824 = vmatprep.subr.mxu0 0.0
    %1825 = vmatpush1.msra.mxu0 0.0
    %1826 = vmatprep.subr.mxu0 0.0
    %1827 = vmatpush1.msra.mxu0 0.0
    %1828 = vmatprep.subr.mxu0 0.0
    %1829 = vmatpush1.msra.mxu0 0.0
    %1830 = vmatprep.subr.mxu0 0.0
    %1831 = vmatpush1.msra.mxu0 0.0
    %1832 = vmatprep.subr.mxu0 0.0
    %1833 = vmatpush1.msra.mxu0 0.0
    %1834 = vmatprep.subr.mxu0 0.0
    %1835 = vmatpush1.msra.mxu0 0.0
    %1836 = vmatprep.subr.mxu0 0.0
    %1837 = vmatpush1.msra.mxu0 0.0
    %1838 = vmatprep.subr.mxu0 0.0
    %1839 = vmatpush1.msra.mxu0 0.0
    %1840 = vmatprep.subr.mxu0 0.0
    %1841 = vmatpush1.msra.mxu0 0.0
    %1842 = vmatprep.subr.mxu0 0.0
    %1843 = vmatpush1.msra.mxu0 0.0
    %1844 = vmatprep.subr.mxu0 0.0
    %1845 = vmatpush1.msra.mxu0 0.0
    %1846 = vmatprep.subr.mxu0 0.0
    %1847 = vmatpush1.msra.mxu0 0.0
    %1848 = vmatprep.subr.mxu0 0.0
    %1849 = vmatpush1.msra.mxu0 0.0
    %1850 = vmatprep.subr.mxu0 0.0
    %1851 = vmatpush1.msra.mxu0 0.0
    %1852 = vmatprep.subr.mxu0 0.0
    %1853 = vmatpush1.msra.mxu0 0.0
    %1854 = vmatprep.subr.mxu0 0.0
    %1855 = vmatpush1.msra.mxu0 0.0
    %1856 = vmatprep.subr.mxu0 0.0
    %1857 = vmatpush1.msra.mxu0 0.0
    %1858 = vmatprep.subr.mxu0 0.0
    %1859 = vmatpush1.msra.mxu0 0.0
    %1860 = vmatprep.subr.mxu0 0.0
    %1861 = vmatpush1.msra.mxu0 0.0
    %1862 = vmatprep.subr.mxu0 0.0
    %1863 = vmatpush1.msra.mxu0 0.0
    %1864 = vmatprep.subr.mxu0 0.0
    %1865 = vmatpush1.msra.mxu0 0.0
    %1866 = vmatprep.subr.mxu0 0.0
    %1867 = vmatpush1.msra.mxu0 0.0
    %1868 = vmatprep.subr.mxu0 0.0
    %1869 = vmatpush1.msra.mxu0 0.0
    %1870 = vmatprep.subr.mxu0 0.0
    %1871 = vmatpush1.msra.mxu0 0.0
    %1872 = vmatprep.mubr.f32.mxu0 0.0
    %1873 = vmatmul.mubr.f32.gmra.mrb[0].mxu0 %v1806
    %v1874 = vpop.f32.mrb[0].mxu0
    %v1875 = vadd.f32 0.0, %v1874
    %v1876 = vpop.f32.mrb[0].mxu0
    %1877 = vdwg.mxu0
    %1878 = vst.msk [vmem:[#allocation2 + $0x8] sm:$0xff] %vm200, %v1875
    %1879 = vrot.lane.b32.xlu0 %v1370, 112
    %v1880 = vpop.permute.xlu0 %1879
    %1881 = vrot.lane.b32.xlu0 %v1370, 80
    %v1882 = vpop.permute.xlu0 %1881
    %v1883 = vsel %vm200, %v1880, 0
    %v1885 = vsel %vm200, %v1882, 0
    %1887 = vmatprep.subr.mxu0 0.0
    %1888 = vmatpush1.xpose.msra.mxu0 %v1885
    %1889 = vmatprep.subr.mxu0 0.0
    %1890 = vmatpush1.xpose.msra.mxu0 0.0
    %1891 = vmatprep.subr.mxu0 0.0
    %1892 = vmatpush1.xpose.msra.mxu0 0.0
    %1893 = vmatprep.subr.mxu0 0.0
    %1894 = vmatpush1.xpose.msra.mxu0 0.0
    %1895 = vmatprep.subr.mxu0 0.0
    %1896 = vmatpush1.xpose.msra.mxu0 0.0
    %1897 = vmatprep.subr.mxu0 0.0
    %1898 = vmatpush1.xpose.msra.mxu0 0.0
    %1899 = vmatprep.subr.mxu0 0.0
    %1900 = vmatpush1.xpose.msra.mxu0 0.0
    %1901 = vmatprep.subr.mxu0 0.0
    %1902 = vmatpush1.xpose.msra.mxu0 0.0
    %1903 = vmatprep.subr.mxu0 0.0
    %1904 = vmatpush1.xpose.msra.mxu0 0.0
    %1905 = vmatprep.subr.mxu0 0.0
    %1906 = vmatpush1.xpose.msra.mxu0 0.0
    %1907 = vmatprep.subr.mxu0 0.0
    %1908 = vmatpush1.xpose.msra.mxu0 0.0
    %1909 = vmatprep.subr.mxu0 0.0
    %1910 = vmatpush1.xpose.msra.mxu0 0.0
    %1911 = vmatprep.subr.mxu0 0.0
    %1912 = vmatpush1.xpose.msra.mxu0 0.0
    %1913 = vmatprep.subr.mxu0 0.0
    %1914 = vmatpush1.xpose.msra.mxu0 0.0
    %1915 = vmatprep.subr.mxu0 0.0
    %1916 = vmatpush1.xpose.msra.mxu0 0.0
    %1917 = vmatprep.subr.mxu0 0.0
    %1918 = vmatpush1.xpose.msra.mxu0 0.0
    %1919 = vmatprep.subr.mxu0 0.0
    %1920 = vmatpush1.xpose.msra.mxu0 0.0
    %1921 = vmatprep.subr.mxu0 0.0
    %1922 = vmatpush1.xpose.msra.mxu0 0.0
    %1923 = vmatprep.subr.mxu0 0.0
    %1924 = vmatpush1.xpose.msra.mxu0 0.0
    %1925 = vmatprep.subr.mxu0 0.0
    %1926 = vmatpush1.xpose.msra.mxu0 0.0
    %1927 = vmatprep.subr.mxu0 0.0
    %1928 = vmatpush1.xpose.msra.mxu0 0.0
    %1929 = vmatprep.subr.mxu0 0.0
    %1930 = vmatpush1.xpose.msra.mxu0 0.0
    %1931 = vmatprep.subr.mxu0 0.0
    %1932 = vmatpush1.xpose.msra.mxu0 0.0
    %1933 = vmatprep.subr.mxu0 0.0
    %1934 = vmatpush1.xpose.msra.mxu0 0.0
    %1935 = vmatprep.subr.mxu0 0.0
    %1936 = vmatpush1.xpose.msra.mxu0 0.0
    %1937 = vmatprep.subr.mxu0 0.0
    %1938 = vmatpush1.xpose.msra.mxu0 0.0
    %1939 = vmatprep.subr.mxu0 0.0
    %1940 = vmatpush1.xpose.msra.mxu0 0.0
    %1941 = vmatprep.subr.mxu0 0.0
    %1942 = vmatpush1.xpose.msra.mxu0 0.0
    %1943 = vmatprep.subr.mxu0 0.0
    %1944 = vmatpush1.xpose.msra.mxu0 0.0
    %1945 = vmatprep.subr.mxu0 0.0
    %1946 = vmatpush1.xpose.msra.mxu0 0.0
    %1947 = vmatprep.subr.mxu0 0.0
    %1948 = vmatpush1.xpose.msra.mxu0 0.0
    %1949 = vmatprep.subr.mxu0 0.0
    %1950 = vmatpush1.xpose.msra.mxu0 0.0
    %1951 = vmatprep.mubr.f32.mxu0 0.0
    %1952 = vmatmul.mubr.f32.gmra.mrb[0].mxu0 %v1883
    %v1953 = vpop.f32.mrb[0].mxu0
    %v1954 = vadd.f32 0.0, %v1953
    %v1955 = vpop.f32.mrb[0].mxu0
    %1956 = vdwg.mxu0
    %v1957 = vmul.f32 %v1954, 0.25
    %v1958 = vadd.f32 %v1957, %v624
    %v1959 = vsel %vm281, %v1958, -inf
    %1960 = vmax.xlane.f32.xlu0 %v1959
    %v1961 = vpop.xlane.xlu0 %1960
    %v1962 = vsub.f32 %v1958, %v1961
    %v1963 = vmul.f32 %v1962, 1.442695
    %v1964 = vpow.pop %v1963
    %v1965 = vsel %vm281, %v1964, 0.0
    %1966 = vadd.xlane.f32.xlu0 %v1965
    %v1967 = vpop.xlane.xlu0 %1966
    %v1968 = vrcp.pop %v1967
    %v1969 = vmul.f32 %v1964, %v1968
    %1970 = vrot.lane.b32.xlu0 %v1370, 48
    %v1971 = vpop.permute.xlu0 %1970
    %v1974 = vsel %vm281, %v1969, 0
    %1976 = vmatprep.subr.mxu0 0.0
    %1977 = vmatpush1.msra.mxu0 %v1971
    %1978 = vmatprep.subr.mxu0 0.0
    %1979 = vmatpush1.msra.mxu0 0.0
    %1980 = vmatprep.subr.mxu0 0.0
    %1981 = vmatpush1.msra.mxu0 0.0
    %1982 = vmatprep.subr.mxu0 0.0
    %1983 = vmatpush1.msra.mxu0 0.0
    %1984 = vmatprep.subr.mxu0 0.0
    %1985 = vmatpush1.msra.mxu0 0.0
    %1986 = vmatprep.subr.mxu0 0.0
    %1987 = vmatpush1.msra.mxu0 0.0
    %1988 = vmatprep.subr.mxu0 0.0
    %1989 = vmatpush1.msra.mxu0 0.0
    %1990 = vmatprep.subr.mxu0 0.0
    %1991 = vmatpush1.msra.mxu0 0.0
    %1992 = vmatprep.subr.mxu0 0.0
    %1993 = vmatpush1.msra.mxu0 0.0
    %1994 = vmatprep.subr.mxu0 0.0
    %1995 = vmatpush1.msra.mxu0 0.0
    %1996 = vmatprep.subr.mxu0 0.0
    %1997 = vmatpush1.msra.mxu0 0.0
    %1998 = vmatprep.subr.mxu0 0.0
    %1999 = vmatpush1.msra.mxu0 0.0
    %2000 = vmatprep.subr.mxu0 0.0
    %2001 = vmatpush1.msra.mxu0 0.0
    %2002 = vmatprep.subr.mxu0 0.0
    %2003 = vmatpush1.msra.mxu0 0.0
    %2004 = vmatprep.subr.mxu0 0.0
    %2005 = vmatpush1.msra.mxu0 0.0
    %2006 = vmatprep.subr.mxu0 0.0
    %2007 = vmatpush1.msra.mxu0 0.0
    %2008 = vmatprep.subr.mxu0 0.0
    %2009 = vmatpush1.msra.mxu0 0.0
    %2010 = vmatprep.subr.mxu0 0.0
    %2011 = vmatpush1.msra.mxu0 0.0
    %2012 = vmatprep.subr.mxu0 0.0
    %2013 = vmatpush1.msra.mxu0 0.0
    %2014 = vmatprep.subr.mxu0 0.0
    %2015 = vmatpush1.msra.mxu0 0.0
    %2016 = vmatprep.subr.mxu0 0.0
    %2017 = vmatpush1.msra.mxu0 0.0
    %2018 = vmatprep.subr.mxu0 0.0
    %2019 = vmatpush1.msra.mxu0 0.0
    %2020 = vmatprep.subr.mxu0 0.0
    %2021 = vmatpush1.msra.mxu0 0.0
    %2022 = vmatprep.subr.mxu0 0.0
    %2023 = vmatpush1.msra.mxu0 0.0
    %2024 = vmatprep.subr.mxu0 0.0
    %2025 = vmatpush1.msra.mxu0 0.0
    %2026 = vmatprep.subr.mxu0 0.0
    %2027 = vmatpush1.msra.mxu0 0.0
    %2028 = vmatprep.subr.mxu0 0.0
    %2029 = vmatpush1.msra.mxu0 0.0
    %2030 = vmatprep.subr.mxu0 0.0
    %2031 = vmatpush1.msra.mxu0 0.0
    %2032 = vmatprep.subr.mxu0 0.0
    %2033 = vmatpush1.msra.mxu0 0.0
    %2034 = vmatprep.subr.mxu0 0.0
    %2035 = vmatpush1.msra.mxu0 0.0
    %2036 = vmatprep.subr.mxu0 0.0
    %2037 = vmatpush1.msra.mxu0 0.0
    %2038 = vmatprep.subr.mxu0 0.0
    %2039 = vmatpush1.msra.mxu0 0.0
    %2040 = vmatprep.mubr.f32.mxu0 0.0
    %2041 = vmatmul.mubr.f32.gmra.mrb[0].mxu0 %v1974
    %v2042 = vpop.f32.mrb[0].mxu0
    %v2043 = vadd.f32 0.0, %v2042
    %v2044 = vpop.f32.mrb[0].mxu0
    %2045 = vdwg.mxu0
    %2047 = vrot.lane.b32.xlu0 %v2043, 16
    %v2048 = vpop.permute.xlu0 %2047
    %2050 = vst.msk [vmem:[#allocation2 + $0x8] sm:$0xff] %vm541, %v2048
    %v2051 = vld [vmem:[#allocation2] sm:$0xff]
    %v2052 = vld [vmem:[#allocation2 + $0x8] sm:$0xff]
    %s2053 = scalar_lea.vmem %s6, 32
    %v2054 = vld [vmem:[%s2053] sm:$0xff]
    %v2055 = vld [vmem:[%s2053 + $0x8] sm:$0xff]
    %v2056 = vld [vmem:[%s2053 + $0x10] sm:$0xff]
    %v2057 = vld [vmem:[%s2053 + $0x18] sm:$0xff]
    %s2058 = scalar_lea.vmem %s7, 1
    %v2059 = vld [vmem:[%s2058] sm:$0x1]
    %v2061 = vlaneseq
    %v2062 = vshrl.u32 %v2061, 7
    %v2063 = vsub.s32 0, %v2062
    %v2064 = vrot.slane %v2059, %v2063
    %v2067 = vsel %vm58, %v2051, 0
    %v2070 = vsel %vm58, %v2052, 0
    %2072 = vmatprep.subr.mxu0 0.0
    %2073 = vmatpush1.msra.mxu0 %v2054
    %2074 = vmatprep.subr.mxu0 0.0
    %2075 = vmatpush1.msra.mxu0 %v2055
    %2076 = vmatprep.subr.mxu0 0.0
    %2077 = vmatpush1.msra.mxu0 %v2056
    %2078 = vmatprep.subr.mxu0 0.0
    %2079 = vmatpush1.msra.mxu0 %v2057
    %2080 = vmatprep.subr.mxu0 0.0
    %2081 = vmatpush1.msra.mxu0 0.0
    %2082 = vmatprep.subr.mxu0 0.0
    %2083 = vmatpush1.msra.mxu0 0.0
    %2084 = vmatprep.subr.mxu0 0.0
    %2085 = vmatpush1.msra.mxu0 0.0
    %2086 = vmatprep.subr.mxu0 0.0
    %2087 = vmatpush1.msra.mxu0 0.0
    %2088 = vmatprep.subr.mxu0 0.0
    %2089 = vmatpush1.msra.mxu0 0.0
    %2090 = vmatprep.subr.mxu0 0.0
    %2091 = vmatpush1.msra.mxu0 0.0
    %2092 = vmatprep.subr.mxu0 0.0
    %2093 = vmatpush1.msra.mxu0 0.0
    %2094 = vmatprep.subr.mxu0 0.0
    %2095 = vmatpush1.msra.mxu0 0.0
    %2096 = vmatprep.subr.mxu0 0.0
    %2097 = vmatpush1.msra.mxu0 0.0
    %2098 = vmatprep.subr.mxu0 0.0
    %2099 = vmatpush1.msra.mxu0 0.0
    %2100 = vmatprep.subr.mxu0 0.0
    %2101 = vmatpush1.msra.mxu0 0.0
    %2102 = vmatprep.subr.mxu0 0.0
    %2103 = vmatpush1.msra.mxu0 0.0
    %2104 = vmatprep.subr.mxu0 0.0
    %2105 = vmatpush1.msra.mxu0 0.0
    %2106 = vmatprep.subr.mxu0 0.0
    %2107 = vmatpush1.msra.mxu0 0.0
    %2108 = vmatprep.subr.mxu0 0.0
    %2109 = vmatpush1.msra.mxu0 0.0
    %2110 = vmatprep.subr.mxu0 0.0
    %2111 = vmatpush1.msra.mxu0 0.0
    %2112 = vmatprep.subr.mxu0 0.0
    %2113 = vmatpush1.msra.mxu0 0.0
    %2114 = vmatprep.subr.mxu0 0.0
    %2115 = vmatpush1.msra.mxu0 0.0
    %2116 = vmatprep.subr.mxu0 0.0
    %2117 = vmatpush1.msra.mxu0 0.0
    %2118 = vmatprep.subr.mxu0 0.0
    %2119 = vmatpush1.msra.mxu0 0.0
    %2120 = vmatprep.subr.mxu0 0.0
    %2121 = vmatpush1.msra.mxu0 0.0
    %2122 = vmatprep.subr.mxu0 0.0
    %2123 = vmatpush1.msra.mxu0 0.0
    %2124 = vmatprep.subr.mxu0 0.0
    %2125 = vmatpush1.msra.mxu0 0.0
    %2126 = vmatprep.subr.mxu0 0.0
    %2127 = vmatpush1.msra.mxu0 0.0
    %2128 = vmatprep.subr.mxu0 0.0
    %2129 = vmatpush1.msra.mxu0 0.0
    %2130 = vmatprep.subr.mxu0 0.0
    %2131 = vmatpush1.msra.mxu0 0.0
    %2132 = vmatprep.subr.mxu0 0.0
    %2133 = vmatpush1.msra.mxu0 0.0
    %2134 = vmatprep.subr.mxu0 0.0
    %2135 = vmatpush1.msra.mxu0 0.0
    %2136 = vmatprep.mubr.f32.mxu0 0.0
    %2137 = vmatmul.mubr.f32.gmra.mrb[0].mxu0 %v2067
    %v2138 = vpop.f32.mrb[0].mxu0
    %v2139 = vadd.f32 %v2064, %v2138
    %v2140 = vpop.f32.mrb[0].mxu0
    %2141 = vmatprep.mubr.f32.mxu0 0.0
    %2142 = vmatmul.mubr.f32.gmra.mrb[0].mxu0 %v2070
    %v2143 = vpop.f32.mrb[0].mxu0
    %v2144 = vadd.f32 %v2064, %v2143
    %v2145 = vpop.f32.mrb[0].mxu0
    %2146 = vdwg.mxu0
    %v2147 = vadd.f32 %v2139, %v1277
    %v2148 = vadd.f32 %v2144, %v1278
    %s2149 = scalar_lea.vmem %s8, 1
    %v2150 = vld [vmem:[%s2149] sm:$0x1]
    %s2151 = scalar_lea.vmem %s9, 1
    %v2152 = vld [vmem:[%s2151] sm:$0x1]
    %v2153 = vsel %vm58, %v2147, 0.0
    %2154 = vadd.xlane.f32.xlu0 %v2153
    %v2155 = vpop.xlane.xlu0 %2154
    %v2156 = vsel %vm58, %v2148, 0.0
    %2157 = vadd.xlane.f32.xlu0 %v2156
    %v2158 = vpop.xlane.xlu0 %2157
    %v2159 = vmul.f32 %v2155, %v65
    %v2160 = vmul.f32 %v2158, %v65
    %v2161 = vsub.f32 %v2147, %v2159
    %v2162 = vsub.f32 %v2148, %v2160
    %v2163 = vmul.f32 %v2161, %v2161
    %v2164 = vmul.f32 %v2162, %v2162
    %v2165 = vsel %vm58, %v2163, 0.0
    %2166 = vadd.xlane.f32.xlu0 %v2165
    %v2167 = vpop.xlane.xlu0 %2166
    %v2168 = vsel %vm58, %v2164, 0.0
    %2169 = vadd.xlane.f32.xlu0 %v2168
    %v2170 = vpop.xlane.xlu0 %2169
    %v2171 = vmul.f32 %v2167, %v65
    %v2172 = vmul.f32 %v2170, %v65
    %v2173 = vadd.f32 %v2171, 1e-12
    %v2174 = vadd.f32 %v2172, 1e-12
    %v2175 = vrsqrt.pop %v2173
    %v2176 = vrsqrt.pop %v2174
    %v2177 = vmul.f32 %v2161, %v2175
    %v2178 = vmul.f32 %v2162, %v2176
    %v2180 = vlaneseq
    %v2181 = vshrl.u32 %v2180, 7
    %v2182 = vsub.s32 0, %v2181
    %v2183 = vrot.slane %v2150, %v2182
    %v2185 = vmul.f32 %v2177, %v2183
    %v2186 = vmul.f32 %v2178, %v2183
    %v2188 = vlaneseq
    %v2189 = vshrl.u32 %v2188, 7
    %v2190 = vsub.s32 0, %v2189
    %v2191 = vrot.slane %v2152, %v2190
    %v2193 = vadd.f32 %v2185, %v2191
    %v2194 = vadd.f32 %v2186, %v2191
    %s2195 = scalar_lea.vmem %s10, 32
    %v2196 = vld [vmem:[%s2195] sm:$0xff]
    %v2197 = vld [vmem:[%s2195 + $0x8] sm:$0xff]
    %v2198 = vld [vmem:[%s2195 + $0x10] sm:$0xff]
    %v2199 = vld [vmem:[%s2195 + $0x18] sm:$0xff]
    %s2200 = scalar_lea.vmem %s11, 1
    %v2201 = vld [vmem:[%s2200] sm:$0x1]
    %v2203 = vlaneseq
    %v2204 = vshrl.u32 %v2203, 7
    %v2205 = vsub.s32 0, %v2204
    %v2206 = vrot.slane %v2201, %v2205
    %v2209 = vsel %vm58, %v2193, 0
    %v2212 = vsel %vm58, %v2194, 0
    %2214 = vmatprep.subr.mxu0 0.0
    %2215 = vmatpush1.msra.mxu0 %v2196
    %2216 = vmatprep.subr.mxu0 0.0
    %2217 = vmatpush1.msra.mxu0 %v2197
    %2218 = vmatprep.subr.mxu0 0.0
    %2219 = vmatpush1.msra.mxu0 %v2198
    %2220 = vmatprep.subr.mxu0 0.0
    %2221 = vmatpush1.msra.mxu0 %v2199
    %2222 = vmatprep.subr.mxu0 0.0
    %2223 = vmatpush1.msra.mxu0 0.0
    %2224 = vmatprep.subr.mxu0 0.0
    %2225 = vmatpush1.msra.mxu0 0.0
    %2226 = vmatprep.subr.mxu0 0.0
    %2227 = vmatpush1.msra.mxu0 0.0
    %2228 = vmatprep.subr.mxu0 0.0
    %2229 = vmatpush1.msra.mxu0 0.0
    %2230 = vmatprep.subr.mxu0 0.0
    %2231 = vmatpush1.msra.mxu0 0.0
    %2232 = vmatprep.subr.mxu0 0.0
    %2233 = vmatpush1.msra.mxu0 0.0
    %2234 = vmatprep.subr.mxu0 0.0
    %2235 = vmatpush1.msra.mxu0 0.0
    %2236 = vmatprep.subr.mxu0 0.0
    %2237 = vmatpush1.msra.mxu0 0.0
    %2238 = vmatprep.subr.mxu0 0.0
    %2239 = vmatpush1.msra.mxu0 0.0
    %2240 = vmatprep.subr.mxu0 0.0
    %2241 = vmatpush1.msra.mxu0 0.0
    %2242 = vmatprep.subr.mxu0 0.0
    %2243 = vmatpush1.msra.mxu0 0.0
    %2244 = vmatprep.subr.mxu0 0.0
    %2245 = vmatpush1.msra.mxu0 0.0
    %2246 = vmatprep.subr.mxu0 0.0
    %2247 = vmatpush1.msra.mxu0 0.0
    %2248 = vmatprep.subr.mxu0 0.0
    %2249 = vmatpush1.msra.mxu0 0.0
    %2250 = vmatprep.subr.mxu0 0.0
    %2251 = vmatpush1.msra.mxu0 0.0
    %2252 = vmatprep.subr.mxu0 0.0
    %2253 = vmatpush1.msra.mxu0 0.0
    %2254 = vmatprep.subr.mxu0 0.0
    %2255 = vmatpush1.msra.mxu0 0.0
    %2256 = vmatprep.subr.mxu0 0.0
    %2257 = vmatpush1.msra.mxu0 0.0
    %2258 = vmatprep.subr.mxu0 0.0
    %2259 = vmatpush1.msra.mxu0 0.0
    %2260 = vmatprep.subr.mxu0 0.0
    %2261 = vmatpush1.msra.mxu0 0.0
    %2262 = vmatprep.subr.mxu0 0.0
    %2263 = vmatpush1.msra.mxu0 0.0
    %2264 = vmatprep.subr.mxu0 0.0
    %2265 = vmatpush1.msra.mxu0 0.0
    %2266 = vmatprep.subr.mxu0 0.0
    %2267 = vmatpush1.msra.mxu0 0.0
    %2268 = vmatprep.subr.mxu0 0.0
    %2269 = vmatpush1.msra.mxu0 0.0
    %2270 = vmatprep.subr.mxu0 0.0
    %2271 = vmatpush1.msra.mxu0 0.0
    %2272 = vmatprep.subr.mxu0 0.0
    %2273 = vmatpush1.msra.mxu0 0.0
    %2274 = vmatprep.subr.mxu0 0.0
    %2275 = vmatpush1.msra.mxu0 0.0
    %2276 = vmatprep.subr.mxu0 0.0
    %2277 = vmatpush1.msra.mxu0 0.0
    %2278 = vmatprep.mubr.f32.mxu0 0.0
    %2279 = vmatmul.mubr.f32.gmra.mrb[0].mxu0 %v2209
    %v2280 = vpop.f32.mrb[0].mxu0
    %v2281 = vadd.f32 %v2206, %v2280
    %v2282 = vpop.f32.mrb[0].mxu0
    %2283 = vmatprep.mubr.f32.mxu0 0.0
    %2284 = vmatmul.mubr.f32.gmra.mrb[0].mxu0 %v2212
    %v2285 = vpop.f32.mrb[0].mxu0
    %v2286 = vadd.f32 %v2206, %v2285
    %v2287 = vpop.f32.mrb[0].mxu0
    %2288 = vdwg.mxu0
    %v2289 = vmul.f32 %v2281, 0.5
    %v2290 = vmul.f32 %v2286, 0.5
    %v2291 = vmul.f32 %v2281, 0.044715
    %v2292 = vmul.f32 %v2286, 0.044715
    %v2293 = vmul.f32 %v2291, %v2281
    %v2294 = vmul.f32 %v2292, %v2286
    %v2295 = vmul.f32 %v2293, %v2281
    %v2296 = vmul.f32 %v2294, %v2286
    %v2297 = vadd.f32 %v2281, %v2295
    %v2298 = vadd.f32 %v2286, %v2296
    %v2299 = vmul.f32 %v2297, 0.7978846
    %v2300 = vmul.f32 %v2298, 0.7978846
    %v2301 = vtanh.pop %v2299
    %v2302 = vtanh.pop %v2300
    %v2303 = vadd.f32 %v2301, 1.0
    %v2304 = vadd.f32 %v2302, 1.0
    %v2305 = vmul.f32 %v2289, %v2303
    %v2306 = vmul.f32 %v2290, %v2304
    %s2307 = scalar_lea.vmem %s12, 64
    %v2308 = vld [vmem:[%s2307] sm:$0xff]
    %v2309 = vld [vmem:[%s2307 + $0x8] sm:$0xff]
    %v2310 = vld [vmem:[%s2307 + $0x10] sm:$0xff]
    %v2311 = vld [vmem:[%s2307 + $0x18] sm:$0xff]
    %v2312 = vld [vmem:[%s2307 + $0x20] sm:$0xff]
    %v2313 = vld [vmem:[%s2307 + $0x28] sm:$0xff]
    %v2314 = vld [vmem:[%s2307 + $0x30] sm:$0xff]
    %v2315 = vld [vmem:[%s2307 + $0x38] sm:$0xff]
    %s2316 = scalar_lea.vmem %s13, 1
    %v2317 = vld [vmem:[%s2316] sm:$0x1]
    %v2319 = vlaneseq
    %v2320 = vshrl.u32 %v2319, 7
    %v2321 = vsub.s32 0, %v2320
    %v2322 = vrot.slane %v2317, %v2321
    %v2325 = vsel %vm1151, %v2305, 0
    %v2328 = vsel %vm1151, %v2306, 0
    %2330 = vmatprep.subr.mxu0 0.0
    %2331 = vmatpush1.msra.mxu0 %v2308
    %2332 = vmatprep.subr.mxu0 0.0
    %2333 = vmatpush1.msra.mxu0 %v2309
    %2334 = vmatprep.subr.mxu0 0.0
    %2335 = vmatpush1.msra.mxu0 %v2310
    %2336 = vmatprep.subr.mxu0 0.0
    %2337 = vmatpush1.msra.mxu0 %v2311
    %2338 = vmatprep.subr.mxu0 0.0
    %2339 = vmatpush1.msra.mxu0 %v2312
    %2340 = vmatprep.subr.mxu0 0.0
    %2341 = vmatpush1.msra.mxu0 %v2313
    %2342 = vmatprep.subr.mxu0 0.0
    %2343 = vmatpush1.msra.mxu0 %v2314
    %2344 = vmatprep.subr.mxu0 0.0
    %2345 = vmatpush1.msra.mxu0 %v2315
    %2346 = vmatprep.subr.mxu0 0.0
    %2347 = vmatpush1.msra.mxu0 0.0
    %2348 = vmatprep.subr.mxu0 0.0
    %2349 = vmatpush1.msra.mxu0 0.0
    %2350 = vmatprep.subr.mxu0 0.0
    %2351 = vmatpush1.msra.mxu0 0.0
    %2352 = vmatprep.subr.mxu0 0.0
    %2353 = vmatpush1.msra.mxu0 0.0
    %2354 = vmatprep.subr.mxu0 0.0
    %2355 = vmatpush1.msra.mxu0 0.0
    %2356 = vmatprep.subr.mxu0 0.0
    %2357 = vmatpush1.msra.mxu0 0.0
    %2358 = vmatprep.subr.mxu0 0.0
    %2359 = vmatpush1.msra.mxu0 0.0
    %2360 = vmatprep.subr.mxu0 0.0
    %2361 = vmatpush1.msra.mxu0 0.0
    %2362 = vmatprep.subr.mxu0 0.0
    %2363 = vmatpush1.msra.mxu0 0.0
    %2364 = vmatprep.subr.mxu0 0.0
    %2365 = vmatpush1.msra.mxu0 0.0
    %2366 = vmatprep.subr.mxu0 0.0
    %2367 = vmatpush1.msra.mxu0 0.0
    %2368 = vmatprep.subr.mxu0 0.0
    %2369 = vmatpush1.msra.mxu0 0.0
    %2370 = vmatprep.subr.mxu0 0.0
    %2371 = vmatpush1.msra.mxu0 0.0
    %2372 = vmatprep.subr.mxu0 0.0
    %2373 = vmatpush1.msra.mxu0 0.0
    %2374 = vmatprep.subr.mxu0 0.0
    %2375 = vmatpush1.msra.mxu0 0.0
    %2376 = vmatprep.subr.mxu0 0.0
    %2377 = vmatpush1.msra.mxu0 0.0
    %2378 = vmatprep.subr.mxu0 0.0
    %2379 = vmatpush1.msra.mxu0 0.0
    %2380 = vmatprep.subr.mxu0 0.0
    %2381 = vmatpush1.msra.mxu0 0.0
    %2382 = vmatprep.subr.mxu0 0.0
    %2383 = vmatpush1.msra.mxu0 0.0
    %2384 = vmatprep.subr.mxu0 0.0
    %2385 = vmatpush1.msra.mxu0 0.0
    %2386 = vmatprep.subr.mxu0 0.0
    %2387 = vmatpush1.msra.mxu0 0.0
    %2388 = vmatprep.subr.mxu0 0.0
    %2389 = vmatpush1.msra.mxu0 0.0
    %2390 = vmatprep.subr.mxu0 0.0
    %2391 = vmatpush1.msra.mxu0 0.0
    %2392 = vmatprep.subr.mxu0 0.0
    %2393 = vmatpush1.msra.mxu0 0.0
    %2394 = vmatprep.mubr.f32.mxu0 0.0
    %2395 = vmatmul.mubr.f32.gmra.mrb[0].mxu0 %v2325
    %v2396 = vpop.f32.mrb[0].mxu0
    %v2397 = vadd.f32 %v2322, %v2396
    %v2398 = vpop.f32.mrb[0].mxu0
    %2399 = vmatprep.mubr.f32.mxu0 0.0
    %2400 = vmatmul.mubr.f32.gmra.mrb[0].mxu0 %v2328
    %v2401 = vpop.f32.mrb[0].mxu0
    %v2402 = vadd.f32 %v2322, %v2401
    %v2403 = vpop.f32.mrb[0].mxu0
    %2404 = vdwg.mxu0
    %v2405 = vadd.f32 %v2397, %v2193
    %v2406 = vadd.f32 %v2402, %v2194
    %s2407 = scalar_lea.vmem %s14, 1
    %v2408 = vld [vmem:[%s2407] sm:$0x1]
    %s2409 = scalar_lea.vmem %s15, 1
    %v2410 = vld [vmem:[%s2409] sm:$0x1]
    %v2411 = vsel %vm58, %v2405, 0.0
    %2412 = vadd.xlane.f32.xlu0 %v2411
    %v2413 = vpop.xlane.xlu0 %2412
    %v2414 = vsel %vm58, %v2406, 0.0
    %2415 = vadd.xlane.f32.xlu0 %v2414
    %v2416 = vpop.xlane.xlu0 %2415
    %v2417 = vmul.f32 %v2413, %v65
    %v2418 = vmul.f32 %v2416, %v65
    %v2419 = vsub.f32 %v2405, %v2417
    %v2420 = vsub.f32 %v2406, %v2418
    %v2421 = vmul.f32 %v2419, %v2419
    %v2422 = vmul.f32 %v2420, %v2420
    %v2423 = vsel %vm58, %v2421, 0.0
    %2424 = vadd.xlane.f32.xlu0 %v2423
    %v2425 = vpop.xlane.xlu0 %2424
    %v2426 = vsel %vm58, %v2422, 0.0
    %2427 = vadd.xlane.f32.xlu0 %v2426
    %v2428 = vpop.xlane.xlu0 %2427
    %v2429 = vmul.f32 %v2425, %v65
    %v2430 = vmul.f32 %v2428, %v65
    %v2431 = vadd.f32 %v2429, 1e-12
    %v2432 = vadd.f32 %v2430, 1e-12
    %v2433 = vrsqrt.pop %v2431
    %v2434 = vrsqrt.pop %v2432
    %v2435 = vmul.f32 %v2419, %v2433
    %v2436 = vmul.f32 %v2420, %v2434
    %v2438 = vlaneseq
    %v2439 = vshrl.u32 %v2438, 7
    %v2440 = vsub.s32 0, %v2439
    %v2441 = vrot.slane %v2408, %v2440
    %v2443 = vmul.f32 %v2435, %v2441
    %v2444 = vmul.f32 %v2436, %v2441
    %v2446 = vlaneseq
    %v2447 = vshrl.u32 %v2446, 7
    %v2448 = vsub.s32 0, %v2447
    %v2449 = vrot.slane %v2410, %v2448
    %v2451 = vadd.f32 %v2443, %v2449
    %v2452 = vadd.f32 %v2444, %v2449
    %vm2453 = vcmask 253952
    %2454 = vst.msk [vmem:[#allocation3] sm:$0x1] %vm2453, %v2451
    %2455 = vst.msk [vmem:[#allocation3 + $0x1] sm:$0x1] %vm2453, %v2452
    // Predicated region
    $region66: #{ernie_forward.1} parent=1 // pred_check
      _
    $region67: #{ernie_forward.1} parent=1 // pred_check_branch
      %2457 = sbr.rel (0) target = $region69
    $region68: #{ernie_forward.1} parent=1 // pred_region
      %s2459 = ssub.s32 32, 32
      %2460 = vsyncadd [#allocation4], %s2459
      %s2462 = sshll.u32 [#allocation3], 4
      %s2463 = int_to_ptr.vmem [resolvable:$true] %s2462
      %2465 = dma.vmem_to_hbm [thread:$0]  %s2463, 32, %s16, [#allocation4]
    $region69: #{ernie_forward.1} parent=1 // pred_fallthru
      _
    // Predicated region
    $region70: #{ernie_forward.1} parent=1 // pred_check
      _
    $region71: #{ernie_forward.1} parent=1 // pred_check_branch
      %2467 = sbr.rel (0) target = $region73
    $region72: #{ernie_forward.1} parent=1 // pred_region
      %2468 = dma.done [#allocation4], 32
    $region73: #{ernie_forward.1} parent=1 // pred_fallthru
      _
    %2469 = vsyncpa [#allocation4], 1

</llo_original>
